<compile_context>
chip_gen: v6e
topology: v6e:2x2x1
jax: 0.10.0
libtpu: 0.0.40
codegen_flags: <defaults>
</compile_context>

<pallas_src>
import numpy as np
import jax
import jax.numpy as jnp
from jax.experimental import pallas as pl
from jax.experimental.pallas import tpu as pltpu

# ---- module constants (mirror the PyTorch file) ----
H = 16
W = 16
BATCH = 1
T = 6                  # block_size
MAX_WINDOW = H         # 16
NUM_PATCHES = 16
PATCH_SIZE = 4
N_EMBED = 16           # = patch_size ** 2
NUM_NEURONS = 32
EA = 32                # augmented embed dim: n_embed + 1 bias/mask row, padded to 32
PB = 8                 # patches per grid step -> grid=(2,)


def patchify_jax(imgs, patch_size):
    """Exact replica of the torch `patchify`, including the final raw
    row-major reinterpretation (B, N, C, p, p) -> (B, C, N, p*p)."""
    B, C, Hh, Ww = imgs.shape
    hp, wp = Hh // patch_size, Ww // patch_size
    N = hp * wp
    p = jnp.reshape(imgs, (B, C, hp, patch_size, wp, patch_size))
    p = jnp.transpose(p, (0, 2, 4, 1, 3, 5))                 # (B, hp, wp, C, p, p)
    p = jnp.reshape(p, (B, N, C, patch_size, patch_size))    # (B, N, C, p, p)
    # NOTE: this reshape is NOT a transpose; it reinterprets row-major memory,
    # exactly as torch's .reshape(B, C, N, patch_dim) does.
    return jnp.reshape(p, (B, C, N, patch_size * patch_size))


def lc_index_lists(C):
    """Static (channel, patch) index lists reproducing lcpatchify's jagged gather
    for an input with C channels."""
    lists = [[(C - 1, j)] for j in range(NUM_PATCHES)]
    li = 2
    for c in range(C - 1, -1, -1):            # `for img in reversed(patches[0])`
        for j in range(NUM_PATCHES):
            for k in range(-li + 1, li):
                for l in range(-li + 1, li):
                    idx = j + MAX_WINDOW * k + l
                    if (not (j == 0 and l == 0 and li == 2)) and 0 <= idx < NUM_PATCHES:
                        lists[j].append((c, idx))
        li += 1
    return lists


def build_kv_aug(x):
    """Dense padded light-cone kv stacks, laid out (patch, t, embed_aug, L) so the
    large L axis maps to lanes.  Row N_EMBED holds the validity mask, which after
    weight augmentation carries the key/value bias term (and masks it on pads).
    Stored in bfloat16 to halve the dominant HBM->VMEM DMA (review item)."""
    all_lists = [lc_index_lists(i + 1) for i in range(T)]
    L_max = max(len(lst) for lists_i in all_lists for lst in lists_i)
    L_pad = ((L_max + 7) // 8) * 8
    kvt = np.zeros((NUM_PATCHES, T, EA, L_pad), np.float32)
    for i in range(T):
        patches_i = np.asarray(patchify_jax(x[:, : i + 1], PATCH_SIZE))[0]  # (i+1, 16, 16)
        for j in range(NUM_PATCHES):
            for r, (c, pidx) in enumerate(all_lists[i][j]):
                kvt[j, i, :N_EMBED, r] = patches_i[c, pidx]
                kvt[j, i, N_EMBED, r] = 1.0      # valid-row indicator / bias input
    return jnp.asarray(kvt, dtype=jnp.bfloat16), L_pad


def augment_weights(w, b):
    """Concatenate the bias as an extra input row of the weight (rows > n_embed are zero)."""
    wa = np.zeros((NUM_PATCHES, EA, NUM_NEURONS), np.float32)
    wa[:, :N_EMBED] = np.asarray(w)
    wa[:, N_EMBED] = np.asarray(b).reshape(NUM_PATCHES, NUM_NEURONS)
    return jnp.asarray(wa)


def head_kernel(qp_ref, kvt_ref, wqk_ref, wva_ref, out_ref):
    qp = qp_ref[...]                            # (PB, T, E)      query patches, f32
    kvt = kvt_ref[...].astype(jnp.float32)      # (PB, T, EA, L)  bf16 in HBM, upcast once
    wqk = wqk_ref[...]                          # (PB, E, EA)     wq folded into aug. key weights
    wva = wva_ref[...]                          # (PB, EA, NN)    value weight, bias in row E

    # a[j,t,f] = sum_e qp[j,t,e] wqk[j,e,f]   (f = E carries the scalar q.bk term)
    a = jnp.einsum('jte,jef->jtf', qp, wqk, preferred_element_type=jnp.float32)   # (PB,T,EA)
    # attention scores against every light-cone row: wei[j,t,l] = sum_f kvt[j,t,f,l] a[j,t,f]
    wei = jnp.sum(kvt * a[:, :, :, None], axis=2)                                  # (PB,T,L)
    # pool rows with the scores: pooled[j,t,f] = sum_l wei[j,t,l] kvt[j,t,f,l]
    # (pooled[:, :, E] = sum(wei) -> value-bias coefficient)
    # NOTE: if a bundle dump shows the lane reduce / vreg pressure binding, this pair can be
    # re-expressed as per-t einsums inside lax.fori_loop(unroll=True) — measured-only change.
    pooled = jnp.sum(kvt * wei[:, :, None, :], axis=3)                              # (PB,T,EA)
    # value projection after pooling (bias via augmented row)
    out = jnp.einsum('jtf,jfn->jtn', pooled, wva,
                     preferred_element_type=jnp.float32)                            # (PB,T,NN)
    # lane-dense store: one (PB, T*NN) = (8, 192) block instead of 48 masked 32-lane rows
    out_ref[...] = out.reshape(out.shape[0], T * NUM_NEURONS)


def head_forward(qp, kvt, wqk, wva):
    L_pad = kvt.shape[-1]
    return pl.pallas_call(
        head_kernel,
        out_shape=jax.ShapeDtypeStruct((NUM_PATCHES, T * NUM_NEURONS), jnp.float32),
        grid=(NUM_PATCHES // PB,),
        in_specs=[
            pl.BlockSpec((PB, T, N_EMBED), lambda i: (i, 0, 0)),
            pl.BlockSpec((PB, T, EA, L_pad), lambda i: (i, 0, 0, 0)),
            pl.BlockSpec((PB, N_EMBED, EA), lambda i: (i, 0, 0)),
            pl.BlockSpec((PB, EA, NUM_NEURONS), lambda i: (i, 0, 0)),
        ],
        out_specs=pl.BlockSpec((PB, T * NUM_NEURONS), lambda i: (i, 0)),
        compiler_params=pltpu.CompilerParams(dimension_semantics=("parallel",)),
    )(qp, kvt, wqk, wva)


def reference(x, wq, wk_all, bk_all, wv_all, bv_all):
    """Pure numpy replica of Head.forward (jagged, unpadded, full f32) for sanity checking."""
    qpatches = np.asarray(patchify_jax(x, PATCH_SIZE))          # (1, T, 16, 16)
    q = qpatches @ np.asarray(wq)                               # (1, T, 16, 32)
    out = np.zeros((BATCH, T, NUM_PATCHES, NUM_NEURONS), np.float32)
    wk_np, bk_np = np.asarray(wk_all), np.asarray(bk_all)
    wv_np, bv_np = np.asarray(wv_all), np.asarray(bv_all)
    for i in range(T):
        patches_i = np.asarray(patchify_jax(x[:, : i + 1], PATCH_SIZE))[0]
        lists = lc_index_lists(i + 1)
        for j in range(NUM_PATCHES):
            kvrows = np.stack([patches_i[c, p] for (c, p) in lists[j]], axis=0)  # (L, 16)
            k = kvrows @ wk_np[j] + bk_np[j]          # (L, 32)
            v = kvrows @ wv_np[j] + bv_np[j]          # (L, 32)
            wei = q[0, i, j] @ k.T                    # (L,)
            out[0, i, j] = wei @ v                    # (32,)
    return out


if __name__ == "__main__":
    key = jax.random.PRNGKey(0)
    kx, kq, kk, kbk, kvk, kbv = jax.random.split(key, 6)

    # input: (batch_size=1, block_size=6, H=16, W=16)  -- NCHW, channels = time steps
    x = jax.random.normal(kx, (BATCH, T, H, W), jnp.float32)

    # deterministic parameter init (shapes from nn.Linear(n_embed, num_neurons))
    bound = 1.0 / np.sqrt(N_EMBED)
    wq = jax.random.uniform(kq, (N_EMBED, NUM_NEURONS), jnp.float32, -bound, bound)
    wk_all = jax.random.uniform(kk, (NUM_PATCHES, N_EMBED, NUM_NEURONS), jnp.float32, -bound, bound)
    bk_all = jax.random.uniform(kbk, (NUM_PATCHES, 1, NUM_NEURONS), jnp.float32, -bound, bound)
    wv_all = jax.random.uniform(kvk, (NUM_PATCHES, N_EMBED, NUM_NEURONS), jnp.float32, -bound, bound)
    bv_all = jax.random.uniform(kbv, (NUM_PATCHES, 1, NUM_NEURONS), jnp.float32, -bound, bound)

    # host-side glue: patch-major query patches, bf16 padded light-cone kv stacks (L in lanes),
    # bias-augmented value weights, and the query projection folded into the augmented key
    # weights:  wqk[j] = wq @ wka[j].T   (zero runtime cost, one fewer kernel matmul + DMA).
    qpatches = patchify_jax(x, PATCH_SIZE)                 # (1, T, NUM_PATCHES, 16)
    qp = jnp.transpose(qpatches[0], (1, 0, 2))             # (NUM_PATCHES, T, 16)
    kvt_aug, L_pad = build_kv_aug(np.asarray(x))           # (NP, T, EA, L_pad) bf16
    wka = augment_weights(wk_all, bk_all)                  # (NP, EA, NN)
    wva = augment_weights(wv_all, bv_all)                  # (NP, EA, NN)
    wqk = jnp.einsum('en,jfn->jef', wq, wka)               # (NP, N_EMBED, EA), f32 host precompute

    out_flat = head_forward(qp, kvt_aug, wqk, wva)         # (NP, T*NN) lane-dense
    out_flat = jax.block_until_ready(out_flat)
    out = jnp.transpose(out_flat.reshape(NUM_PATCHES, T, NUM_NEURONS), (1, 0, 2))[None]

    ref = reference(np.asarray(x), wq, wk_all, bk_all, wv_all, bv_all)
    # Tolerance budget: outputs have scale ~10; the deliberate bf16 quantization of the
    # light-cone tensor contributes <~0.1 abs deviation worst-case, plus headroom for
    # reduced-precision MXU passes on the two small projections.  rtol covers the bulk.
    np.testing.assert_allclose(np.asarray(out), ref, rtol=2e-2, atol=1.5e-1)

    print("KERNEL_OK")
</pallas_src>

<mosaic_0001>
module attributes {stable_mosaic.version = 11 : i64} {
  func.func @head_kernel(%arg0: i32, %arg1: memref<8x6x16xf32, #tpu.memory_space<vmem>>, %arg2: memref<8x6x32x56xbf16, #tpu.memory_space<vmem>>, %arg3: memref<8x16x32xf32, #tpu.memory_space<vmem>>, %arg4: memref<8x32x32xf32, #tpu.memory_space<vmem>>, %arg5: memref<8x192xf32, #tpu.memory_space<vmem>>) attributes {dimension_semantics = [#tpu.dimension_semantics<parallel>], iteration_bounds = array<i64: 2>, scalar_prefetch = 0 : i64, scratch_operands = 0 : i64, tpu.core_type = #tpu.core_type<tc>, window_params = [{transform_indices = @transform_0, window_bounds = array<i64: 8, 6, 16>}, {transform_indices = @transform_1, window_bounds = array<i64: 8, 6, 32, 56>}, {transform_indices = @transform_2, window_bounds = array<i64: 8, 16, 32>}, {transform_indices = @transform_3, window_bounds = array<i64: 8, 32, 32>}, {transform_indices = @transform_4, window_bounds = array<i64: 8, 192>}]} {
    %c0 = arith.constant 0 : index
    %c0_0 = arith.constant 0 : index
    %c0_1 = arith.constant 0 : index
    %0 = vector.load %arg1[%c0, %c0_0, %c0_1] : memref<8x6x16xf32, #tpu.memory_space<vmem>>, vector<8x6x16xf32>
    %c0_2 = arith.constant 0 : index
    %c0_3 = arith.constant 0 : index
    %c0_4 = arith.constant 0 : index
    %c0_5 = arith.constant 0 : index
    %1 = vector.load %arg2[%c0_2, %c0_3, %c0_4, %c0_5] : memref<8x6x32x56xbf16, #tpu.memory_space<vmem>>, vector<8x6x32x56xbf16>
    %2 = arith.extf %1 : vector<8x6x32x56xbf16> to vector<8x6x32x56xf32>
    %c0_6 = arith.constant 0 : index
    %c0_7 = arith.constant 0 : index
    %c0_8 = arith.constant 0 : index
    %3 = vector.load %arg3[%c0_6, %c0_7, %c0_8] : memref<8x16x32xf32, #tpu.memory_space<vmem>>, vector<8x16x32xf32>
    %c0_9 = arith.constant 0 : index
    %c0_10 = arith.constant 0 : index
    %c0_11 = arith.constant 0 : index
    %4 = vector.load %arg4[%c0_9, %c0_10, %c0_11] : memref<8x32x32xf32, #tpu.memory_space<vmem>>, vector<8x32x32xf32>
    "tpu.trace_start"() <{level = 10 : i32, message = "jte,jef->jtf"}> : () -> ()
    %cst = arith.constant dense<0.000000e+00> : vector<8x6x32xf32>
    %5 = tpu.matmul %0, %3, %cst {dimension_numbers = #tpu.dot_dimension_numbers<[2], [1], [1], [2], [0, 0, 0, 1, 1, 2], [0], [0]>} : vector<8x6x16xf32>, vector<8x16x32xf32>, vector<8x6x32xf32> -> vector<8x6x32xf32>
    "tpu.trace_stop"() : () -> ()
    %6 = vector.shape_cast %5 : vector<8x6x32xf32> to vector<8x6x32x1xf32>
    %7 = vector.broadcast %6 : vector<8x6x32x1xf32> to vector<8x6x32x56xf32>
    %8 = arith.mulf %2, %7 : vector<8x6x32x56xf32>
    %cst_12 = arith.constant dense<0.000000e+00> : vector<8x6x56xf32>
    %9 = vector.multi_reduction <add>, %8, %cst_12 [2] : vector<8x6x32x56xf32> to vector<8x6x56xf32>
    %10 = vector.shape_cast %9 : vector<8x6x56xf32> to vector<8x6x1x56xf32>
    %11 = vector.broadcast %10 : vector<8x6x1x56xf32> to vector<8x6x32x56xf32>
    %12 = arith.mulf %2, %11 : vector<8x6x32x56xf32>
    %cst_13 = arith.constant dense<0.000000e+00> : vector<8x6x32xf32>
    %13 = vector.multi_reduction <add>, %12, %cst_13 [3] : vector<8x6x32x56xf32> to vector<8x6x32xf32>
    "tpu.trace_start"() <{level = 10 : i32, message = "jtf,jfn->jtn"}> : () -> ()
    %cst_14 = arith.constant dense<0.000000e+00> : vector<8x6x32xf32>
    %14 = tpu.matmul %13, %4, %cst_14 {dimension_numbers = #tpu.dot_dimension_numbers<[2], [1], [1], [2], [0, 0, 0, 1, 1, 2], [0], [0]>} : vector<8x6x32xf32>, vector<8x32x32xf32>, vector<8x6x32xf32> -> vector<8x6x32xf32>
    "tpu.trace_stop"() : () -> ()
    %15 = vector.shape_cast %14 : vector<8x6x32xf32> to vector<8x192xf32>
    %c0_15 = arith.constant 0 : index
    %c0_16 = arith.constant 0 : index
    %16 = vector.load %arg5[%c0_15, %c0_16] : memref<8x192xf32, #tpu.memory_space<vmem>>, vector<8x192xf32>
    tpu.vector_store %arg5[%c0_15, %c0_16], %15 {strides = array<i32>} : memref<8x192xf32, #tpu.memory_space<vmem>>, vector<8x192xf32>,
    return
  }
  func.func @transform_0(%arg0: i32) -> (i32, i32, i32) {
    %c0_i32 = arith.constant 0 : i32
    %c0_i32_0 = arith.constant 0 : i32
    %c0_i32_1 = arith.constant 0 : i32
    return %arg0, %c0_i32, %c0_i32_0 : i32, i32, i32
  }
  func.func @transform_1(%arg0: i32) -> (i32, i32, i32, i32) {
    %c0_i32 = arith.constant 0 : i32
    %c0_i32_0 = arith.constant 0 : i32
    %c0_i32_1 = arith.constant 0 : i32
    %c0_i32_2 = arith.constant 0 : i32
    return %arg0, %c0_i32, %c0_i32_0, %c0_i32_1 : i32, i32, i32, i32
  }
  func.func @transform_2(%arg0: i32) -> (i32, i32, i32) {
    %c0_i32 = arith.constant 0 : i32
    %c0_i32_0 = arith.constant 0 : i32
    %c0_i32_1 = arith.constant 0 : i32
    return %arg0, %c0_i32, %c0_i32_0 : i32, i32, i32
  }
  func.func @transform_3(%arg0: i32) -> (i32, i32, i32) {
    %c0_i32 = arith.constant 0 : i32
    %c0_i32_0 = arith.constant 0 : i32
    %c0_i32_1 = arith.constant 0 : i32
    return %arg0, %c0_i32, %c0_i32_0 : i32, i32, i32
  }
  func.func @transform_4(%arg0: i32) -> (i32, i32) {
    %c0_i32 = arith.constant 0 : i32
    %c0_i32_0 = arith.constant 0 : i32
    return %arg0, %c0_i32 : i32, i32
  }
}

</mosaic_0001>

<llo_original>
// kernel: tpu_custom_call.1
$region0: #{tpu_custom_call.1}
  #allocation0 [shape = 'u32[]', space=smem, size = 0x4, offset = 0x4, fixed_abs, tag = 'smem constant byte address 0x4 - core index']
  #allocation1 [shape = 'u32[144,128]{1,0:T(1,128)}', space=vmem, size = 0x12000, scoped, tag = 'internal scratch']
  %s0 = inlined_call_operand.vmem [shape: f32[16,6,16], index: 0, kind: input, shape index: {}]
  %s1 = inlined_call_operand.hbm [shape: bf16[16,6,32,56], index: 1, kind: input, shape index: {}]
  %s2 = inlined_call_operand.hbm [shape: f32[16,16,32], index: 2, kind: input, shape index: {}]
  %s3 = inlined_call_operand.hbm [shape: f32[16,32,32], index: 3, kind: input, shape index: {}]
  %s4 = inlined_call_operand.hbm [shape: f32[16,192], index: 4, kind: output, shape index: {}]
  %s5 = sld [smem:[#allocation0]]
  $region61: #{tpu_custom_call.1} parent=0
    _
  %s7 = ssub.s32 1, %s5
  %s8 = scalar_select 0, %s7, %s5
  $region1: #{tpu_custom_call.1} parent=0
    #allocation2 [shape = 'u8[786432]{0}', space=vmem, size = 0xc0000, scoped, tag = 'input window, operand 1']
    #allocation3 [shape = 's32[2]{0}', space=sflag, size = 0x8, scoped, tag = 'scoped memory for tpu_custom_call.1']
    #allocation4 [shape = 's32[2]{0}', space=sflag, size = 0x8, scoped, tag = 'scoped memory for tpu_custom_call.1']
    #allocation5 [shape = 'u8[131072]{0}', space=vmem, size = 0x20000, scoped, tag = 'input window, operand 2']
    #allocation6 [shape = 's32[2]{0}', space=sflag, size = 0x8, scoped, tag = 'scoped memory for tpu_custom_call.1']
    #allocation7 [shape = 'u8[262144]{0}', space=vmem, size = 0x40000, scoped, tag = 'input window, operand 3']
    #allocation8 [shape = 'u8[16384]{0}', space=vmem, size = 0x4000, scoped, tag = 'output window, operand 0']
    %9 = vsyncpa [#allocation3], 0
    %s10 = scalar_lea.sflag [#allocation3], 1
    %11 = vsyncpa %s10, 0
    %12 = vsyncpa [#allocation6], 0
    %s13 = scalar_lea.sflag [#allocation6], 1
    %14 = vsyncpa %s13, 0
    %15 = vsyncpa [#allocation4], 0
    %s16 = scalar_lea.sflag [#allocation4], 1
    %17 = vsyncpa %s16, 0
    loop: start=0, step=1, limit=4
    $region2: #{tpu_custom_call.1} parent=1 // loop_pre_header
      _
    $region3: #{tpu_custom_call.1} parent=1 // loop_header
      %s19 = sphi 0, %s23
      %p20 = scmp.ge.s32.totalorder %s19, 4
      %s29 = sphi 0, %s31
      %s32 = sphi 0, %s29
      %s33 = sphi 0, %s32
      %s49 = sphi 0, %s33
      %s55 = sphi 0, %s57
      %s58 = sphi 0, %s55
      %s59 = sphi 0, %s58
      %s75 = sphi 0, %s59
      %s81 = sphi 0, %s83
      %s84 = sphi 0, %s81
      %s85 = sphi 0, %s84
      %s101 = sphi 0, %s85
      %s107 = sphi 0, %s109
      %s110 = sphi 0, %s107
      %s111 = sphi 0, %s110
      %s127 = sphi 0, %s111
      %s133 = sphi 0, %s135
      %s136 = sphi 0, %s133
      %s137 = sphi 0, %s136
      %s153 = sphi 0, %s137
    $region4: #{tpu_custom_call.1} parent=1 // loop_header_branch
      %22 = sbr.rel (%p20) target = $region8
    $region5: #{tpu_custom_call.1} parent=1 // loop_body
      %s24 = ssub.s32 %s19, 1
      %s25 = ssub.s32 %s19, 2
      %s26 = sadd.s32 %s19, 1
      %s27 = ssub.s32 %s19, %s26
      %p28 = scmp.eq.s32.totalorder %s27, 0
      %s30 = sadd.s32 %s29, 1
      %s31 = scalar_select %p28, %s29, %s30
      %p34 = pneg %p28
      %p35 = scmp.eq.s32.totalorder %s19, 1
      %p36 = por %p34, %p35
      %p37 = scmp.ne.s32.totalorder %s29, %s32
      %p38 = scmp.eq.s32.totalorder %s19, 0
      %p39 = por %p37, %p38
      %p40 = scmp.ne.s32.totalorder %s29, %s32
      %p41 = scmp.eq.s32.totalorder %s24, 1
      %p42 = por %p40, %p41
      %p43 = scmp.ne.s32.totalorder %s32, %s33
      %p44 = scmp.eq.s32.totalorder %s24, 0
      %p45 = por %p43, %p44
      %p46 = scmp.ne.s32.totalorder %s32, %s33
      %p47 = scmp.eq.s32.totalorder %s25, 1
      %p48 = por %p46, %p47
      %p50 = scmp.ne.s32.totalorder %s33, %s49
      %p51 = scmp.eq.s32.totalorder %s25, 0
      %p52 = por %p50, %p51
      %s53 = ssub.s32 %s19, %s26
      %p54 = scmp.eq.s32.totalorder %s53, 0
      %s56 = sadd.s32 %s55, 1
      %s57 = scalar_select %p54, %s55, %s56
      %p60 = pneg %p54
      %p61 = scmp.eq.s32.totalorder %s19, 1
      %p62 = por %p60, %p61
      %p63 = scmp.ne.s32.totalorder %s55, %s58
      %p64 = scmp.eq.s32.totalorder %s19, 0
      %p65 = por %p63, %p64
      %p66 = scmp.ne.s32.totalorder %s55, %s58
      %p67 = scmp.eq.s32.totalorder %s24, 1
      %p68 = por %p66, %p67
      %p69 = scmp.ne.s32.totalorder %s58, %s59
      %p70 = scmp.eq.s32.totalorder %s24, 0
      %p71 = por %p69, %p70
      %p72 = scmp.ne.s32.totalorder %s58, %s59
      %p73 = scmp.eq.s32.totalorder %s25, 1
      %p74 = por %p72, %p73
      %p76 = scmp.ne.s32.totalorder %s59, %s75
      %p77 = scmp.eq.s32.totalorder %s25, 0
      %p78 = por %p76, %p77
      %s79 = ssub.s32 %s19, %s26
      %p80 = scmp.eq.s32.totalorder %s79, 0
      %s82 = sadd.s32 %s81, 1
      %s83 = scalar_select %p80, %s81, %s82
      %p86 = pneg %p80
      %p87 = scmp.eq.s32.totalorder %s19, 1
      %p88 = por %p86, %p87
      %p89 = scmp.ne.s32.totalorder %s81, %s84
      %p90 = scmp.eq.s32.totalorder %s19, 0
      %p91 = por %p89, %p90
      %p92 = scmp.ne.s32.totalorder %s81, %s84
      %p93 = scmp.eq.s32.totalorder %s24, 1
      %p94 = por %p92, %p93
      %p95 = scmp.ne.s32.totalorder %s84, %s85
      %p96 = scmp.eq.s32.totalorder %s24, 0
      %p97 = por %p95, %p96
      %p98 = scmp.ne.s32.totalorder %s84, %s85
      %p99 = scmp.eq.s32.totalorder %s25, 1
      %p100 = por %p98, %p99
      %p102 = scmp.ne.s32.totalorder %s85, %s101
      %p103 = scmp.eq.s32.totalorder %s25, 0
      %p104 = por %p102, %p103
      %s105 = ssub.s32 %s19, %s26
      %p106 = scmp.eq.s32.totalorder %s105, 0
      %s108 = sadd.s32 %s107, 1
      %s109 = scalar_select %p106, %s107, %s108
      %p112 = pneg %p106
      %p113 = scmp.eq.s32.totalorder %s19, 1
      %p114 = por %p112, %p113
      %p115 = scmp.ne.s32.totalorder %s107, %s110
      %p116 = scmp.eq.s32.totalorder %s19, 0
      %p117 = por %p115, %p116
      %p118 = scmp.ne.s32.totalorder %s107, %s110
      %p119 = scmp.eq.s32.totalorder %s24, 1
      %p120 = por %p118, %p119
      %p121 = scmp.ne.s32.totalorder %s110, %s111
      %p122 = scmp.eq.s32.totalorder %s24, 0
      %p123 = por %p121, %p122
      %p124 = scmp.ne.s32.totalorder %s110, %s111
      %p125 = scmp.eq.s32.totalorder %s25, 1
      %p126 = por %p124, %p125
      %p128 = scmp.ne.s32.totalorder %s111, %s127
      %p129 = scmp.eq.s32.totalorder %s25, 0
      %p130 = por %p128, %p129
      %s131 = ssub.s32 %s19, %s26
      %p132 = scmp.eq.s32.totalorder %s131, 0
      %s134 = sadd.s32 %s133, 1
      %s135 = scalar_select %p132, %s133, %s134
      %p138 = pneg %p132
      %p139 = scmp.eq.s32.totalorder %s19, 1
      %p140 = por %p138, %p139
      %p141 = scmp.ne.s32.totalorder %s133, %s136
      %p142 = scmp.eq.s32.totalorder %s19, 0
      %p143 = por %p141, %p142
      %p144 = scmp.ne.s32.totalorder %s133, %s136
      %p145 = scmp.eq.s32.totalorder %s24, 1
      %p146 = por %p144, %p145
      %p147 = scmp.ne.s32.totalorder %s136, %s137
      %p148 = scmp.eq.s32.totalorder %s24, 0
      %p149 = por %p147, %p148
      %p150 = scmp.ne.s32.totalorder %s136, %s137
      %p151 = scmp.eq.s32.totalorder %s25, 1
      %p152 = por %p150, %p151
      %p154 = scmp.ne.s32.totalorder %s137, %s153
      %p155 = scmp.eq.s32.totalorder %s25, 0
      %p156 = por %p154, %p155
      %p157 = scmp.le.s32.totalorder 1, %s19
      %p158 = scmp.lt.s32.totalorder %s19, 3
      %p159 = pnand %p157, %p158
      %p160 = pneg %p159
      // Predicated region
      $region9: #{tpu_custom_call.1} parent=5 // pred_check
        _
      $region10: #{tpu_custom_call.1} parent=5 // pred_check_branch
        %162 = sbr.rel (%p159) target = $region12
      $region11: #{tpu_custom_call.1} parent=5 // pred_region
        %s163 = ssub.s32 %s19, 1
      $region12: #{tpu_custom_call.1} parent=5 // pred_fallthru
        _
      %p164 = scmp.lt.s32.totalorder %s19, 2
      // Predicated region
      $region13: #{tpu_custom_call.1} parent=5 // pred_check
        %p165 = pneg %p164
      $region14: #{tpu_custom_call.1} parent=5 // pred_check_branch
        %167 = sbr.rel (%p165) target = $region16
      $region15: #{tpu_custom_call.1} parent=5 // pred_region
        // Predicated region
        $region17: #{tpu_custom_call.1} parent=15 // pred_check
          %p168 = pneg %p39
        $region18: #{tpu_custom_call.1} parent=15 // pred_check_branch
          %170 = sbr.rel (%p168) target = $region20
        $region19: #{tpu_custom_call.1} parent=15 // pred_region
          %s171 = smul.u32 8, %s19
          %p172 = scmp.lt.s32.totalorder %s171, 15
          %s173 = scalar_select %p172, %s171, 15
          %s174 = smul.addr %s173, 8
          %s175 = scalar_lea.vmem %s0, %s174
          %s176 = smul.u32 8, %s19
        $region20: #{tpu_custom_call.1} parent=15 // pred_fallthru
          _
        // Predicated region
        $region21: #{tpu_custom_call.1} parent=15 // pred_check
          %p177 = pneg %p65
        $region22: #{tpu_custom_call.1} parent=15 // pred_check_branch
          %179 = sbr.rel (%p177) target = $region24
        $region23: #{tpu_custom_call.1} parent=15 // pred_region
          %s180 = sand.u32 %s55, 1
          %s181 = scalar_lea.sflag [#allocation3], %s180
          %s182 = sand.u32 %s55, 1
          %s183 = smul.addr %s182, 768
          %s184 = scalar_lea.vmem [#allocation2], %s183
          %s185 = smul.u32 8, %s19
          %s187 = ssub.s32 12288, 12288
          %188 = vsyncadd %s181, %s187
          %s189 = smul.addr %s185, 24
          %s190 = smul.addr %s189, 64
          %s191 = scalar_lea.hbm %s1, %s190
          %s192 = sshll.u32 %s184, 4
          %s193 = int_to_ptr.vmem [resolvable:$true] %s192
          %198 = dma.hbm_to_vmem [thread:$0]  %s191, 12288, %s193, %s181, 64, 64, 4
        $region24: #{tpu_custom_call.1} parent=15 // pred_fallthru
          _
        // Predicated region
        $region25: #{tpu_custom_call.1} parent=15 // pred_check
          %p199 = pneg %p91
        $region26: #{tpu_custom_call.1} parent=15 // pred_check_branch
          %201 = sbr.rel (%p199) target = $region28
        $region27: #{tpu_custom_call.1} parent=15 // pred_region
          %s202 = sand.u32 %s19, 1
          %s203 = scalar_lea.sflag [#allocation6], %s202
          %s204 = sand.u32 %s81, 1
          %s205 = smul.addr %s204, 128
          %s206 = scalar_lea.vmem [#allocation5], %s205
          %s207 = smul.u32 8, %s19
          %s209 = ssub.s32 2048, 2048
          %210 = vsyncadd %s203, %s209
          %s211 = smul.addr %s207, 2
          %s212 = smul.addr %s211, 128
          %s213 = scalar_lea.hbm %s2, %s212
          %s214 = sshll.u32 %s206, 4
          %s215 = int_to_ptr.vmem [resolvable:$true] %s214
          %220 = dma.hbm_to_vmem [thread:$0]  %s213, 2048, %s215, %s203, 128, 128, 8
        $region28: #{tpu_custom_call.1} parent=15 // pred_fallthru
          _
        // Predicated region
        $region29: #{tpu_custom_call.1} parent=15 // pred_check
          %p221 = pneg %p117
        $region30: #{tpu_custom_call.1} parent=15 // pred_check_branch
          %223 = sbr.rel (%p221) target = $region32
        $region31: #{tpu_custom_call.1} parent=15 // pred_region
          %s224 = sand.u32 %s19, 1
          %s225 = scalar_lea.sflag [#allocation6], %s224
          %s226 = sand.u32 %s107, 1
          %s227 = smul.addr %s226, 256
          %s228 = scalar_lea.vmem [#allocation7], %s227
          %s229 = smul.u32 8, %s19
          %s231 = ssub.s32 4096, 4096
          %232 = vsyncadd %s225, %s231
          %s233 = smul.addr %s229, 4
          %s234 = smul.addr %s233, 128
          %s235 = scalar_lea.hbm %s3, %s234
          %s236 = sshll.u32 %s228, 4
          %s237 = int_to_ptr.vmem [resolvable:$true] %s236
          %242 = dma.hbm_to_vmem [thread:$0]  %s235, 4096, %s237, %s225, 128, 128, 8
        $region32: #{tpu_custom_call.1} parent=15 // pred_fallthru
          _
      $region16: #{tpu_custom_call.1} parent=5 // pred_fallthru
        _
      %p243 = scmp.le.s32.totalorder 1, %s19
      %p244 = scmp.lt.s32.totalorder %s19, 3
      %p245 = pnand %p243, %p244
      %p246 = pneg %p245
      // Predicated region
      $region33: #{tpu_custom_call.1} parent=5 // pred_check
        _
      $region34: #{tpu_custom_call.1} parent=5 // pred_check_branch
        %248 = sbr.rel (%p245) target = $region36
      $region35: #{tpu_custom_call.1} parent=5 // pred_region
        %s249 = ssub.s32 %s19, 1
        %s250 = sand.u32 %s58, 1
        %s251 = scalar_lea.sflag [#allocation3], %s250
        %s252 = sand.u32 %s58, 1
        %s253 = smul.addr %s252, 768
        %s254 = scalar_lea.vmem [#allocation2], %s253
        // Predicated region
        $region37: #{tpu_custom_call.1} parent=35 // pred_check
          %p255 = pneg %p71
        $region38: #{tpu_custom_call.1} parent=35 // pred_check_branch
          %257 = sbr.rel (%p255) target = $region40
        $region39: #{tpu_custom_call.1} parent=35 // pred_region
          %258 = dma.done %s251, 12288
        $region40: #{tpu_custom_call.1} parent=35 // pred_fallthru
          _
        %s259 = sand.u32 %s24, 1
        %s260 = scalar_lea.sflag [#allocation6], %s259
        %s261 = sand.u32 %s84, 1
        %s262 = smul.addr %s261, 128
        %s263 = scalar_lea.vmem [#allocation5], %s262
        // Predicated region
        $region41: #{tpu_custom_call.1} parent=35 // pred_check
          %p264 = pneg %p97
        $region42: #{tpu_custom_call.1} parent=35 // pred_check_branch
          %266 = sbr.rel (%p264) target = $region44
        $region43: #{tpu_custom_call.1} parent=35 // pred_region
          %267 = dma.done %s260, 2048
        $region44: #{tpu_custom_call.1} parent=35 // pred_fallthru
          _
        %s268 = sand.u32 %s24, 1
        %s269 = scalar_lea.sflag [#allocation6], %s268
        %s270 = sand.u32 %s110, 1
        %s271 = smul.addr %s270, 256
        %s272 = scalar_lea.vmem [#allocation7], %s271
        // Predicated region
        $region45: #{tpu_custom_call.1} parent=35 // pred_check
          %p273 = pneg %p123
        $region46: #{tpu_custom_call.1} parent=35 // pred_check_branch
          %275 = sbr.rel (%p273) target = $region48
        $region47: #{tpu_custom_call.1} parent=35 // pred_region
          %276 = dma.done %s269, 4096
        $region48: #{tpu_custom_call.1} parent=35 // pred_fallthru
          _
        %s277 = smul.u32 8, %s24
        %p278 = scmp.lt.s32.totalorder %s277, 15
        %s279 = scalar_select %p278, %s277, 15
        %s280 = smul.addr %s279, 8
        %s281 = scalar_lea.vmem %s0, %s280
        %p282 = pneg %p45
        %p283 = pneg %p42
        %s284 = sand.u32 %s58, 1
        %s285 = scalar_lea.sflag [#allocation3], %s284
        %s286 = sand.u32 %s58, 1
        %s287 = smul.addr %s286, 768
        %s288 = scalar_lea.vmem [#allocation2], %s287
        %p289 = pneg %p71
        %p290 = pneg %p68
        %s291 = sand.u32 %s24, 1
        %s292 = scalar_lea.sflag [#allocation6], %s291
        %s293 = sand.u32 %s84, 1
        %s294 = smul.addr %s293, 128
        %s295 = scalar_lea.vmem [#allocation5], %s294
        %p296 = pneg %p97
        %p297 = pneg %p94
        %s298 = sand.u32 %s24, 1
        %s299 = scalar_lea.sflag [#allocation6], %s298
        %s300 = sand.u32 %s110, 1
        %s301 = smul.addr %s300, 256
        %s302 = scalar_lea.vmem [#allocation7], %s301
        %p303 = pneg %p123
        %p304 = pneg %p120
        %p305 = pneg %p149
        %p306 = pneg %p146
        %s307 = sand.u32 %s136, 1
        %s308 = scalar_lea.sflag [#allocation4], %s307
        %s309 = sand.u32 %s136, 1
        %s310 = smul.addr %s309, 16
        %s311 = scalar_lea.vmem [#allocation8], %s310
        %s312 = smul.u32 8, %s24
        %p313 = scmp.lt.s32.totalorder %s312, 15
        %s314 = scalar_select %p313, %s312, 15
        %s315 = smul.addr %s314, 8
        %s316 = scalar_lea.vmem %s0, %s315
        %s317 = smul.u32 8, %s24
        %s318 = smul.u32 8, %s24
        %s319 = smul.u32 8, %s24
        %s320 = smul.u32 8, %s24
        %v321 = vld [vmem:[%s316] sm:$0x3f]
        %v322 = vld [vmem:[%s316 + $0x8] sm:$0x3f]
        %v323 = vld [vmem:[%s316 + $0x10] sm:$0x3f]
        %v324 = vld [vmem:[%s316 + $0x18] sm:$0x3f]
        %v325 = vld [vmem:[%s316 + $0x20] sm:$0x3f]
        %v326 = vld [vmem:[%s316 + $0x28] sm:$0x3f]
        %v327 = vld [vmem:[%s316 + $0x30] sm:$0x3f]
        %v328 = vld [vmem:[%s316 + $0x38] sm:$0x3f]
        %v329 = vld [vmem:[%s254] sm:$0xf]
        %v330 = vld [vmem:[%s254 + $0x4] sm:$0xf]
        %v331 = vld [vmem:[%s254 + $0x8] sm:$0xf]
        %v332 = vld [vmem:[%s254 + $0xc] sm:$0xf]
        %v333 = vld [vmem:[%s254 + $0x10] sm:$0xf]
        %v334 = vld [vmem:[%s254 + $0x14] sm:$0xf]
        %v335 = vld [vmem:[%s254 + $0x18] sm:$0xf]
        %v336 = vld [vmem:[%s254 + $0x1c] sm:$0xf]
        %v337 = vld [vmem:[%s254 + $0x20] sm:$0xf]
        %v338 = vld [vmem:[%s254 + $0x24] sm:$0xf]
        %v339 = vld [vmem:[%s254 + $0x28] sm:$0xf]
        %v340 = vld [vmem:[%s254 + $0x2c] sm:$0xf]
        %v341 = vld [vmem:[%s254 + $0x30] sm:$0xf]
        %v342 = vld [vmem:[%s254 + $0x34] sm:$0xf]
        %v343 = vld [vmem:[%s254 + $0x38] sm:$0xf]
        %v344 = vld [vmem:[%s254 + $0x3c] sm:$0xf]
        %v345 = vld [vmem:[%s254 + $0x40] sm:$0xf]
        %v346 = vld [vmem:[%s254 + $0x44] sm:$0xf]
        %v347 = vld [vmem:[%s254 + $0x48] sm:$0xf]
        %v348 = vld [vmem:[%s254 + $0x4c] sm:$0xf]
        %v349 = vld [vmem:[%s254 + $0x50] sm:$0xf]
        %v350 = vld [vmem:[%s254 + $0x54] sm:$0xf]
        %v351 = vld [vmem:[%s254 + $0x58] sm:$0xf]
        %v352 = vld [vmem:[%s254 + $0x5c] sm:$0xf]
        %v353 = vld [vmem:[%s254 + $0x60] sm:$0xf]
        %v354 = vld [vmem:[%s254 + $0x64] sm:$0xf]
        %v355 = vld [vmem:[%s254 + $0x68] sm:$0xf]
        %v356 = vld [vmem:[%s254 + $0x6c] sm:$0xf]
        %v357 = vld [vmem:[%s254 + $0x70] sm:$0xf]
        %v358 = vld [vmem:[%s254 + $0x74] sm:$0xf]
        %v359 = vld [vmem:[%s254 + $0x78] sm:$0xf]
        %v360 = vld [vmem:[%s254 + $0x7c] sm:$0xf]
        %v361 = vld [vmem:[%s254 + $0x80] sm:$0xf]
        %v362 = vld [vmem:[%s254 + $0x84] sm:$0xf]
        %v363 = vld [vmem:[%s254 + $0x88] sm:$0xf]
        %v364 = vld [vmem:[%s254 + $0x8c] sm:$0xf]
        %v365 = vld [vmem:[%s254 + $0x90] sm:$0xf]
        %v366 = vld [vmem:[%s254 + $0x94] sm:$0xf]
        %v367 = vld [vmem:[%s254 + $0x98] sm:$0xf]
        %v368 = vld [vmem:[%s254 + $0x9c] sm:$0xf]
        %v369 = vld [vmem:[%s254 + $0xa0] sm:$0xf]
        %v370 = vld [vmem:[%s254 + $0xa4] sm:$0xf]
        %v371 = vld [vmem:[%s254 + $0xa8] sm:$0xf]
        %v372 = vld [vmem:[%s254 + $0xac] sm:$0xf]
        %v373 = vld [vmem:[%s254 + $0xb0] sm:$0xf]
        %v374 = vld [vmem:[%s254 + $0xb4] sm:$0xf]
        %v375 = vld [vmem:[%s254 + $0xb8] sm:$0xf]
        %v376 = vld [vmem:[%s254 + $0xbc] sm:$0xf]
        %v377 = vld [vmem:[%s254 + $0xc0] sm:$0xf]
        %v378 = vld [vmem:[%s254 + $0xc4] sm:$0xf]
        %v379 = vld [vmem:[%s254 + $0xc8] sm:$0xf]
        %v380 = vld [vmem:[%s254 + $0xcc] sm:$0xf]
        %v381 = vld [vmem:[%s254 + $0xd0] sm:$0xf]
        %v382 = vld [vmem:[%s254 + $0xd4] sm:$0xf]
        %v383 = vld [vmem:[%s254 + $0xd8] sm:$0xf]
        %v384 = vld [vmem:[%s254 + $0xdc] sm:$0xf]
        %v385 = vld [vmem:[%s254 + $0xe0] sm:$0xf]
        %v386 = vld [vmem:[%s254 + $0xe4] sm:$0xf]
        %v387 = vld [vmem:[%s254 + $0xe8] sm:$0xf]
        %v388 = vld [vmem:[%s254 + $0xec] sm:$0xf]
        %v389 = vld [vmem:[%s254 + $0xf0] sm:$0xf]
        %v390 = vld [vmem:[%s254 + $0xf4] sm:$0xf]
        %v391 = vld [vmem:[%s254 + $0xf8] sm:$0xf]
        %v392 = vld [vmem:[%s254 + $0xfc] sm:$0xf]
        %v393 = vld [vmem:[%s254 + $0x100] sm:$0xf]
        %v394 = vld [vmem:[%s254 + $0x104] sm:$0xf]
        %v395 = vld [vmem:[%s254 + $0x108] sm:$0xf]
        %v396 = vld [vmem:[%s254 + $0x10c] sm:$0xf]
        %v397 = vld [vmem:[%s254 + $0x110] sm:$0xf]
        %v398 = vld [vmem:[%s254 + $0x114] sm:$0xf]
        %v399 = vld [vmem:[%s254 + $0x118] sm:$0xf]
        %v400 = vld [vmem:[%s254 + $0x11c] sm:$0xf]
        %v401 = vld [vmem:[%s254 + $0x120] sm:$0xf]
        %v402 = vld [vmem:[%s254 + $0x124] sm:$0xf]
        %v403 = vld [vmem:[%s254 + $0x128] sm:$0xf]
        %v404 = vld [vmem:[%s254 + $0x12c] sm:$0xf]
        %v405 = vld [vmem:[%s254 + $0x130] sm:$0xf]
        %v406 = vld [vmem:[%s254 + $0x134] sm:$0xf]
        %v407 = vld [vmem:[%s254 + $0x138] sm:$0xf]
        %v408 = vld [vmem:[%s254 + $0x13c] sm:$0xf]
        %v409 = vld [vmem:[%s254 + $0x140] sm:$0xf]
        %v410 = vld [vmem:[%s254 + $0x144] sm:$0xf]
        %v411 = vld [vmem:[%s254 + $0x148] sm:$0xf]
        %v412 = vld [vmem:[%s254 + $0x14c] sm:$0xf]
        %v413 = vld [vmem:[%s254 + $0x150] sm:$0xf]
        %v414 = vld [vmem:[%s254 + $0x154] sm:$0xf]
        %v415 = vld [vmem:[%s254 + $0x158] sm:$0xf]
        %v416 = vld [vmem:[%s254 + $0x15c] sm:$0xf]
        %v417 = vld [vmem:[%s254 + $0x160] sm:$0xf]
        %v418 = vld [vmem:[%s254 + $0x164] sm:$0xf]
        %v419 = vld [vmem:[%s254 + $0x168] sm:$0xf]
        %v420 = vld [vmem:[%s254 + $0x16c] sm:$0xf]
        %v421 = vld [vmem:[%s254 + $0x170] sm:$0xf]
        %v422 = vld [vmem:[%s254 + $0x174] sm:$0xf]
        %v423 = vld [vmem:[%s254 + $0x178] sm:$0xf]
        %v424 = vld [vmem:[%s254 + $0x17c] sm:$0xf]
        %v425 = vld [vmem:[%s254 + $0x180] sm:$0xf]
        %v426 = vld [vmem:[%s254 + $0x184] sm:$0xf]
        %v427 = vld [vmem:[%s254 + $0x188] sm:$0xf]
        %v428 = vld [vmem:[%s254 + $0x18c] sm:$0xf]
        %v429 = vld [vmem:[%s254 + $0x190] sm:$0xf]
        %v430 = vld [vmem:[%s254 + $0x194] sm:$0xf]
        %v431 = vld [vmem:[%s254 + $0x198] sm:$0xf]
        %v432 = vld [vmem:[%s254 + $0x19c] sm:$0xf]
        %v433 = vld [vmem:[%s254 + $0x1a0] sm:$0xf]
        %v434 = vld [vmem:[%s254 + $0x1a4] sm:$0xf]
        %v435 = vld [vmem:[%s254 + $0x1a8] sm:$0xf]
        %v436 = vld [vmem:[%s254 + $0x1ac] sm:$0xf]
        %v437 = vld [vmem:[%s254 + $0x1b0] sm:$0xf]
        %v438 = vld [vmem:[%s254 + $0x1b4] sm:$0xf]
        %v439 = vld [vmem:[%s254 + $0x1b8] sm:$0xf]
        %v440 = vld [vmem:[%s254 + $0x1bc] sm:$0xf]
        %v441 = vld [vmem:[%s254 + $0x1c0] sm:$0xf]
        %v442 = vld [vmem:[%s254 + $0x1c4] sm:$0xf]
        %v443 = vld [vmem:[%s254 + $0x1c8] sm:$0xf]
        %v444 = vld [vmem:[%s254 + $0x1cc] sm:$0xf]
        %v445 = vld [vmem:[%s254 + $0x1d0] sm:$0xf]
        %v446 = vld [vmem:[%s254 + $0x1d4] sm:$0xf]
        %v447 = vld [vmem:[%s254 + $0x1d8] sm:$0xf]
        %v448 = vld [vmem:[%s254 + $0x1dc] sm:$0xf]
        %v449 = vld [vmem:[%s254 + $0x1e0] sm:$0xf]
        %v450 = vld [vmem:[%s254 + $0x1e4] sm:$0xf]
        %v451 = vld [vmem:[%s254 + $0x1e8] sm:$0xf]
        %v452 = vld [vmem:[%s254 + $0x1ec] sm:$0xf]
        %v453 = vld [vmem:[%s254 + $0x1f0] sm:$0xf]
        %v454 = vld [vmem:[%s254 + $0x1f4] sm:$0xf]
        %v455 = vld [vmem:[%s254 + $0x1f8] sm:$0xf]
        %v456 = vld [vmem:[%s254 + $0x1fc] sm:$0xf]
        %v457 = vld [vmem:[%s254 + $0x200] sm:$0xf]
        %v458 = vld [vmem:[%s254 + $0x204] sm:$0xf]
        %v459 = vld [vmem:[%s254 + $0x208] sm:$0xf]
        %v460 = vld [vmem:[%s254 + $0x20c] sm:$0xf]
        %v461 = vld [vmem:[%s254 + $0x210] sm:$0xf]
        %v462 = vld [vmem:[%s254 + $0x214] sm:$0xf]
        %v463 = vld [vmem:[%s254 + $0x218] sm:$0xf]
        %v464 = vld [vmem:[%s254 + $0x21c] sm:$0xf]
        %v465 = vld [vmem:[%s254 + $0x220] sm:$0xf]
        %v466 = vld [vmem:[%s254 + $0x224] sm:$0xf]
        %v467 = vld [vmem:[%s254 + $0x228] sm:$0xf]
        %v468 = vld [vmem:[%s254 + $0x22c] sm:$0xf]
        %v469 = vld [vmem:[%s254 + $0x230] sm:$0xf]
        %v470 = vld [vmem:[%s254 + $0x234] sm:$0xf]
        %v471 = vld [vmem:[%s254 + $0x238] sm:$0xf]
        %v472 = vld [vmem:[%s254 + $0x23c] sm:$0xf]
        %v473 = vld [vmem:[%s254 + $0x240] sm:$0xf]
        %v474 = vld [vmem:[%s254 + $0x244] sm:$0xf]
        %v475 = vld [vmem:[%s254 + $0x248] sm:$0xf]
        %v476 = vld [vmem:[%s254 + $0x24c] sm:$0xf]
        %v477 = vld [vmem:[%s254 + $0x250] sm:$0xf]
        %v478 = vld [vmem:[%s254 + $0x254] sm:$0xf]
        %v479 = vld [vmem:[%s254 + $0x258] sm:$0xf]
        %v480 = vld [vmem:[%s254 + $0x25c] sm:$0xf]
        %v481 = vld [vmem:[%s254 + $0x260] sm:$0xf]
        %v482 = vld [vmem:[%s254 + $0x264] sm:$0xf]
        %v483 = vld [vmem:[%s254 + $0x268] sm:$0xf]
        %v484 = vld [vmem:[%s254 + $0x26c] sm:$0xf]
        %v485 = vld [vmem:[%s254 + $0x270] sm:$0xf]
        %v486 = vld [vmem:[%s254 + $0x274] sm:$0xf]
        %v487 = vld [vmem:[%s254 + $0x278] sm:$0xf]
        %v488 = vld [vmem:[%s254 + $0x27c] sm:$0xf]
        %v489 = vld [vmem:[%s254 + $0x280] sm:$0xf]
        %v490 = vld [vmem:[%s254 + $0x284] sm:$0xf]
        %v491 = vld [vmem:[%s254 + $0x288] sm:$0xf]
        %v492 = vld [vmem:[%s254 + $0x28c] sm:$0xf]
        %v493 = vld [vmem:[%s254 + $0x290] sm:$0xf]
        %v494 = vld [vmem:[%s254 + $0x294] sm:$0xf]
        %v495 = vld [vmem:[%s254 + $0x298] sm:$0xf]
        %v496 = vld [vmem:[%s254 + $0x29c] sm:$0xf]
        %v497 = vld [vmem:[%s254 + $0x2a0] sm:$0xf]
        %v498 = vld [vmem:[%s254 + $0x2a4] sm:$0xf]
        %v499 = vld [vmem:[%s254 + $0x2a8] sm:$0xf]
        %v500 = vld [vmem:[%s254 + $0x2ac] sm:$0xf]
        %v501 = vld [vmem:[%s254 + $0x2b0] sm:$0xf]
        %v502 = vld [vmem:[%s254 + $0x2b4] sm:$0xf]
        %v503 = vld [vmem:[%s254 + $0x2b8] sm:$0xf]
        %v504 = vld [vmem:[%s254 + $0x2bc] sm:$0xf]
        %v505 = vld [vmem:[%s254 + $0x2c0] sm:$0xf]
        %v506 = vld [vmem:[%s254 + $0x2c4] sm:$0xf]
        %v507 = vld [vmem:[%s254 + $0x2c8] sm:$0xf]
        %v508 = vld [vmem:[%s254 + $0x2cc] sm:$0xf]
        %v509 = vld [vmem:[%s254 + $0x2d0] sm:$0xf]
        %v510 = vld [vmem:[%s254 + $0x2d4] sm:$0xf]
        %v511 = vld [vmem:[%s254 + $0x2d8] sm:$0xf]
        %v512 = vld [vmem:[%s254 + $0x2dc] sm:$0xf]
        %v513 = vld [vmem:[%s254 + $0x2e0] sm:$0xf]
        %v514 = vld [vmem:[%s254 + $0x2e4] sm:$0xf]
        %v515 = vld [vmem:[%s254 + $0x2e8] sm:$0xf]
        %v516 = vld [vmem:[%s254 + $0x2ec] sm:$0xf]
        %v517 = vld [vmem:[%s254 + $0x2f0] sm:$0xf]
        %v518 = vld [vmem:[%s254 + $0x2f4] sm:$0xf]
        %v519 = vld [vmem:[%s254 + $0x2f8] sm:$0xf]
        %v520 = vld [vmem:[%s254 + $0x2fc] sm:$0xf]
        %v521 = vunpack.c.l.bf16 %v329
        %v522 = vunpack.c.l.bf16 %v330
        %v523 = vunpack.c.l.bf16 %v331
        %v524 = vunpack.c.l.bf16 %v332
        %v525 = vunpack.c.l.bf16 %v333
        %v526 = vunpack.c.l.bf16 %v334
        %v527 = vunpack.c.l.bf16 %v335
        %v528 = vunpack.c.l.bf16 %v336
        %v529 = vunpack.c.l.bf16 %v337
        %v530 = vunpack.c.l.bf16 %v338
        %v531 = vunpack.c.l.bf16 %v339
        %v532 = vunpack.c.l.bf16 %v340
        %v533 = vunpack.c.l.bf16 %v341
        %v534 = vunpack.c.l.bf16 %v342
        %v535 = vunpack.c.l.bf16 %v343
        %v536 = vunpack.c.l.bf16 %v344
        %v537 = vunpack.c.l.bf16 %v345
        %v538 = vunpack.c.l.bf16 %v346
        %v539 = vunpack.c.l.bf16 %v347
        %v540 = vunpack.c.l.bf16 %v348
        %v541 = vunpack.c.l.bf16 %v349
        %v542 = vunpack.c.l.bf16 %v350
        %v543 = vunpack.c.l.bf16 %v351
        %v544 = vunpack.c.l.bf16 %v352
        %v545 = vunpack.c.l.bf16 %v353
        %v546 = vunpack.c.l.bf16 %v354
        %v547 = vunpack.c.l.bf16 %v355
        %v548 = vunpack.c.l.bf16 %v356
        %v549 = vunpack.c.l.bf16 %v357
        %v550 = vunpack.c.l.bf16 %v358
        %v551 = vunpack.c.l.bf16 %v359
        %v552 = vunpack.c.l.bf16 %v360
        %v553 = vunpack.c.l.bf16 %v361
        %v554 = vunpack.c.l.bf16 %v362
        %v555 = vunpack.c.l.bf16 %v363
        %v556 = vunpack.c.l.bf16 %v364
        %v557 = vunpack.c.l.bf16 %v365
        %v558 = vunpack.c.l.bf16 %v366
        %v559 = vunpack.c.l.bf16 %v367
        %v560 = vunpack.c.l.bf16 %v368
        %v561 = vunpack.c.l.bf16 %v369
        %v562 = vunpack.c.l.bf16 %v370
        %v563 = vunpack.c.l.bf16 %v371
        %v564 = vunpack.c.l.bf16 %v372
        %v565 = vunpack.c.l.bf16 %v373
        %v566 = vunpack.c.l.bf16 %v374
        %v567 = vunpack.c.l.bf16 %v375
        %v568 = vunpack.c.l.bf16 %v376
        %v569 = vunpack.c.l.bf16 %v377
        %v570 = vunpack.c.l.bf16 %v378
        %v571 = vunpack.c.l.bf16 %v379
        %v572 = vunpack.c.l.bf16 %v380
        %v573 = vunpack.c.l.bf16 %v381
        %v574 = vunpack.c.l.bf16 %v382
        %v575 = vunpack.c.l.bf16 %v383
        %v576 = vunpack.c.l.bf16 %v384
        %v577 = vunpack.c.l.bf16 %v385
        %v578 = vunpack.c.l.bf16 %v386
        %v579 = vunpack.c.l.bf16 %v387
        %v580 = vunpack.c.l.bf16 %v388
        %v581 = vunpack.c.l.bf16 %v389
        %v582 = vunpack.c.l.bf16 %v390
        %v583 = vunpack.c.l.bf16 %v391
        %v584 = vunpack.c.l.bf16 %v392
        %v585 = vunpack.c.l.bf16 %v393
        %v586 = vunpack.c.l.bf16 %v394
        %v587 = vunpack.c.l.bf16 %v395
        %v588 = vunpack.c.l.bf16 %v396
        %v589 = vunpack.c.l.bf16 %v397
        %v590 = vunpack.c.l.bf16 %v398
        %v591 = vunpack.c.l.bf16 %v399
        %v592 = vunpack.c.l.bf16 %v400
        %v593 = vunpack.c.l.bf16 %v401
        %v594 = vunpack.c.l.bf16 %v402
        %v595 = vunpack.c.l.bf16 %v403
        %v596 = vunpack.c.l.bf16 %v404
        %v597 = vunpack.c.l.bf16 %v405
        %v598 = vunpack.c.l.bf16 %v406
        %v599 = vunpack.c.l.bf16 %v407
        %v600 = vunpack.c.l.bf16 %v408
        %v601 = vunpack.c.l.bf16 %v409
        %v602 = vunpack.c.l.bf16 %v410
        %v603 = vunpack.c.l.bf16 %v411
        %v604 = vunpack.c.l.bf16 %v412
        %v605 = vunpack.c.l.bf16 %v413
        %v606 = vunpack.c.l.bf16 %v414
        %v607 = vunpack.c.l.bf16 %v415
        %v608 = vunpack.c.l.bf16 %v416
        %v609 = vunpack.c.l.bf16 %v417
        %v610 = vunpack.c.l.bf16 %v418
        %v611 = vunpack.c.l.bf16 %v419
        %v612 = vunpack.c.l.bf16 %v420
        %v613 = vunpack.c.l.bf16 %v421
        %v614 = vunpack.c.l.bf16 %v422
        %v615 = vunpack.c.l.bf16 %v423
        %v616 = vunpack.c.l.bf16 %v424
        %v617 = vunpack.c.l.bf16 %v425
        %v618 = vunpack.c.l.bf16 %v426
        %v619 = vunpack.c.l.bf16 %v427
        %v620 = vunpack.c.l.bf16 %v428
        %v621 = vunpack.c.l.bf16 %v429
        %v622 = vunpack.c.l.bf16 %v430
        %v623 = vunpack.c.l.bf16 %v431
        %v624 = vunpack.c.l.bf16 %v432
        %v625 = vunpack.c.l.bf16 %v433
        %v626 = vunpack.c.l.bf16 %v434
        %v627 = vunpack.c.l.bf16 %v435
        %v628 = vunpack.c.l.bf16 %v436
        %v629 = vunpack.c.l.bf16 %v437
        %v630 = vunpack.c.l.bf16 %v438
        %v631 = vunpack.c.l.bf16 %v439
        %v632 = vunpack.c.l.bf16 %v440
        %v633 = vunpack.c.l.bf16 %v441
        %v634 = vunpack.c.l.bf16 %v442
        %v635 = vunpack.c.l.bf16 %v443
        %v636 = vunpack.c.l.bf16 %v444
        %v637 = vunpack.c.l.bf16 %v445
        %v638 = vunpack.c.l.bf16 %v446
        %v639 = vunpack.c.l.bf16 %v447
        %v640 = vunpack.c.l.bf16 %v448
        %v641 = vunpack.c.l.bf16 %v449
        %v642 = vunpack.c.l.bf16 %v450
        %v643 = vunpack.c.l.bf16 %v451
        %v644 = vunpack.c.l.bf16 %v452
        %v645 = vunpack.c.l.bf16 %v453
        %v646 = vunpack.c.l.bf16 %v454
        %v647 = vunpack.c.l.bf16 %v455
        %v648 = vunpack.c.l.bf16 %v456
        %v649 = vunpack.c.l.bf16 %v457
        %v650 = vunpack.c.l.bf16 %v458
        %v651 = vunpack.c.l.bf16 %v459
        %v652 = vunpack.c.l.bf16 %v460
        %v653 = vunpack.c.l.bf16 %v461
        %v654 = vunpack.c.l.bf16 %v462
        %v655 = vunpack.c.l.bf16 %v463
        %v656 = vunpack.c.l.bf16 %v464
        %v657 = vunpack.c.l.bf16 %v465
        %v658 = vunpack.c.l.bf16 %v466
        %v659 = vunpack.c.l.bf16 %v467
        %v660 = vunpack.c.l.bf16 %v468
        %v661 = vunpack.c.l.bf16 %v469
        %v662 = vunpack.c.l.bf16 %v470
        %v663 = vunpack.c.l.bf16 %v471
        %v664 = vunpack.c.l.bf16 %v472
        %v665 = vunpack.c.l.bf16 %v473
        %v666 = vunpack.c.l.bf16 %v474
        %v667 = vunpack.c.l.bf16 %v475
        %v668 = vunpack.c.l.bf16 %v476
        %v669 = vunpack.c.l.bf16 %v477
        %v670 = vunpack.c.l.bf16 %v478
        %v671 = vunpack.c.l.bf16 %v479
        %v672 = vunpack.c.l.bf16 %v480
        %v673 = vunpack.c.l.bf16 %v481
        %v674 = vunpack.c.l.bf16 %v482
        %v675 = vunpack.c.l.bf16 %v483
        %v676 = vunpack.c.l.bf16 %v484
        %v677 = vunpack.c.l.bf16 %v485
        %v678 = vunpack.c.l.bf16 %v486
        %v679 = vunpack.c.l.bf16 %v487
        %v680 = vunpack.c.l.bf16 %v488
        %v681 = vunpack.c.l.bf16 %v489
        %v682 = vunpack.c.l.bf16 %v490
        %v683 = vunpack.c.l.bf16 %v491
        %v684 = vunpack.c.l.bf16 %v492
        %v685 = vunpack.c.l.bf16 %v493
        %v686 = vunpack.c.l.bf16 %v494
        %v687 = vunpack.c.l.bf16 %v495
        %v688 = vunpack.c.l.bf16 %v496
        %v689 = vunpack.c.l.bf16 %v497
        %v690 = vunpack.c.l.bf16 %v498
        %v691 = vunpack.c.l.bf16 %v499
        %v692 = vunpack.c.l.bf16 %v500
        %v693 = vunpack.c.l.bf16 %v501
        %v694 = vunpack.c.l.bf16 %v502
        %v695 = vunpack.c.l.bf16 %v503
        %v696 = vunpack.c.l.bf16 %v504
        %v697 = vunpack.c.l.bf16 %v505
        %v698 = vunpack.c.l.bf16 %v506
        %v699 = vunpack.c.l.bf16 %v507
        %v700 = vunpack.c.l.bf16 %v508
        %v701 = vunpack.c.l.bf16 %v509
        %v702 = vunpack.c.l.bf16 %v510
        %v703 = vunpack.c.l.bf16 %v511
        %v704 = vunpack.c.l.bf16 %v512
        %v705 = vunpack.c.l.bf16 %v513
        %v706 = vunpack.c.l.bf16 %v514
        %v707 = vunpack.c.l.bf16 %v515
        %v708 = vunpack.c.l.bf16 %v516
        %v709 = vunpack.c.l.bf16 %v517
        %v710 = vunpack.c.l.bf16 %v518
        %v711 = vunpack.c.l.bf16 %v519
        %v712 = vunpack.c.l.bf16 %v520
        %v713 = vld [vmem:[%s263] sm:$0xff]
        %v714 = vld [vmem:[%s263 + $0x8] sm:$0xff]
        %v715 = vld [vmem:[%s263 + $0x10] sm:$0xff]
        %v716 = vld [vmem:[%s263 + $0x18] sm:$0xff]
        %v717 = vld [vmem:[%s263 + $0x20] sm:$0xff]
        %v718 = vld [vmem:[%s263 + $0x28] sm:$0xff]
        %v719 = vld [vmem:[%s263 + $0x30] sm:$0xff]
        %v720 = vld [vmem:[%s263 + $0x38] sm:$0xff]
        %v721 = vld [vmem:[%s263 + $0x40] sm:$0xff]
        %v722 = vld [vmem:[%s263 + $0x48] sm:$0xff]
        %v723 = vld [vmem:[%s263 + $0x50] sm:$0xff]
        %v724 = vld [vmem:[%s263 + $0x58] sm:$0xff]
        %v725 = vld [vmem:[%s263 + $0x60] sm:$0xff]
        %v726 = vld [vmem:[%s263 + $0x68] sm:$0xff]
        %v727 = vld [vmem:[%s263 + $0x70] sm:$0xff]
        %v728 = vld [vmem:[%s263 + $0x78] sm:$0xff]
        %v729 = vld [vmem:[%s272] sm:$0xff]
        %v730 = vld [vmem:[%s272 + $0x8] sm:$0xff]
        %v731 = vld [vmem:[%s272 + $0x10] sm:$0xff]
        %v732 = vld [vmem:[%s272 + $0x18] sm:$0xff]
        %v733 = vld [vmem:[%s272 + $0x20] sm:$0xff]
        %v734 = vld [vmem:[%s272 + $0x28] sm:$0xff]
        %v735 = vld [vmem:[%s272 + $0x30] sm:$0xff]
        %v736 = vld [vmem:[%s272 + $0x38] sm:$0xff]
        %v737 = vld [vmem:[%s272 + $0x40] sm:$0xff]
        %v738 = vld [vmem:[%s272 + $0x48] sm:$0xff]
        %v739 = vld [vmem:[%s272 + $0x50] sm:$0xff]
        %v740 = vld [vmem:[%s272 + $0x58] sm:$0xff]
        %v741 = vld [vmem:[%s272 + $0x60] sm:$0xff]
        %v742 = vld [vmem:[%s272 + $0x68] sm:$0xff]
        %v743 = vld [vmem:[%s272 + $0x70] sm:$0xff]
        %v744 = vld [vmem:[%s272 + $0x78] sm:$0xff]
        %v745 = vld [vmem:[%s272 + $0x80] sm:$0xff]
        %v746 = vld [vmem:[%s272 + $0x88] sm:$0xff]
        %v747 = vld [vmem:[%s272 + $0x90] sm:$0xff]
        %v748 = vld [vmem:[%s272 + $0x98] sm:$0xff]
        %v749 = vld [vmem:[%s272 + $0xa0] sm:$0xff]
        %v750 = vld [vmem:[%s272 + $0xa8] sm:$0xff]
        %v751 = vld [vmem:[%s272 + $0xb0] sm:$0xff]
        %v752 = vld [vmem:[%s272 + $0xb8] sm:$0xff]
        %v753 = vld [vmem:[%s272 + $0xc0] sm:$0xff]
        %v754 = vld [vmem:[%s272 + $0xc8] sm:$0xff]
        %v755 = vld [vmem:[%s272 + $0xd0] sm:$0xff]
        %v756 = vld [vmem:[%s272 + $0xd8] sm:$0xff]
        %v757 = vld [vmem:[%s272 + $0xe0] sm:$0xff]
        %v758 = vld [vmem:[%s272 + $0xe8] sm:$0xff]
        %v759 = vld [vmem:[%s272 + $0xf0] sm:$0xff]
        %v760 = vld [vmem:[%s272 + $0xf8] sm:$0xff]
        %vm761 = vcmask 130048
        %v763 = vsel %vm761, %v321, 0
        %765 = vmatprep.subr.mxu0 0.0
        %766 = vmatpush1.msra.mxu0 0.0
        %767 = vmatprep.subr.mxu0 0.0
        %768 = vmatpush1.msra.mxu0 0.0
        %769 = vmatprep.subr.mxu0 0.0
        %770 = vmatpush1.msra.mxu0 0.0
        %771 = vmatprep.subr.mxu0 0.0
        %772 = vmatpush1.msra.mxu0 0.0
        %773 = vmatprep.subr.mxu0 0.0
        %774 = vmatpush1.msra.mxu0 0.0
        %775 = vmatprep.subr.mxu0 0.0
        %776 = vmatpush1.msra.mxu0 0.0
        %777 = vmatprep.subr.mxu0 0.0
        %778 = vmatpush1.msra.mxu0 0.0
        %779 = vmatprep.subr.mxu0 0.0
        %780 = vmatpush1.msra.mxu0 0.0
        %781 = vmatprep.subr.mxu0 0.0
        %782 = vmatpush1.msra.mxu0 0.0
        %783 = vmatprep.subr.mxu0 0.0
        %784 = vmatpush1.msra.mxu0 0.0
        %785 = vmatprep.subr.mxu0 0.0
        %786 = vmatpush1.msra.mxu0 0.0
        %787 = vmatprep.subr.mxu0 0.0
        %788 = vmatpush1.msra.mxu0 0.0
        %789 = vmatprep.subr.mxu0 0.0
        %790 = vmatpush1.msra.mxu0 0.0
        %791 = vmatprep.subr.mxu0 0.0
        %792 = vmatpush1.msra.mxu0 0.0
        %793 = vmatprep.subr.mxu0 0.0
        %794 = vmatpush1.msra.mxu0 %v714
        %795 = vmatprep.subr.mxu0 0.0
        %796 = vmatpush1.msra.mxu0 %v713
        %797 = vmatprep.subr.mxu0 0.0
        %798 = vmatpush2.msra.mxu0 0.0
        %799 = vmatprep.subr.mxu0 0.0
        %800 = vmatpush2.msra.mxu0 0.0
        %801 = vmatprep.subr.mxu0 0.0
        %802 = vmatpush2.msra.mxu0 0.0
        %803 = vmatprep.subr.mxu0 0.0
        %804 = vmatpush2.msra.mxu0 0.0
        %805 = vmatprep.subr.mxu0 0.0
        %806 = vmatpush2.msra.mxu0 0.0
        %807 = vmatprep.subr.mxu0 0.0
        %808 = vmatpush2.msra.mxu0 0.0
        %809 = vmatprep.subr.mxu0 0.0
        %810 = vmatpush2.msra.mxu0 0.0
        %811 = vmatprep.subr.mxu0 0.0
        %812 = vmatpush2.msra.mxu0 0.0
        %813 = vmatprep.subr.mxu0 0.0
        %814 = vmatpush2.msra.mxu0 0.0
        %815 = vmatprep.subr.mxu0 0.0
        %816 = vmatpush2.msra.mxu0 0.0
        %817 = vmatprep.subr.mxu0 0.0
        %818 = vmatpush2.msra.mxu0 0.0
        %819 = vmatprep.subr.mxu0 0.0
        %820 = vmatpush2.msra.mxu0 0.0
        %821 = vmatprep.subr.mxu0 0.0
        %822 = vmatpush2.msra.mxu0 0.0
        %823 = vmatprep.subr.mxu0 0.0
        %824 = vmatpush2.msra.mxu0 0.0
        %825 = vmatprep.subr.mxu0 0.0
        %826 = vmatpush2.msra.mxu0 0.0
        %827 = vmatprep.subr.mxu0 0.0
        %828 = vmatpush2.msra.mxu0 0.0
        %829 = vmatprep.mubr.f32.mxu0 0.0
        %830 = vmatmul.mubr.f32.gmra.mxu0 %v763
        %v831 = vpop.f32.mrf.mxu0
        %v832 = vadd.f32 0.0, %v831
        %v833 = vpop.f32.mrf.mxu0
        %834 = vdwg.mxu0
        %v836 = vsel %vm761, %v322, 0
        %838 = vmatprep.subr.mxu0 0.0
        %839 = vmatpush1.msra.mxu0 0.0
        %840 = vmatprep.subr.mxu0 0.0
        %841 = vmatpush1.msra.mxu0 0.0
        %842 = vmatprep.subr.mxu0 0.0
        %843 = vmatpush1.msra.mxu0 0.0
        %844 = vmatprep.subr.mxu0 0.0
        %845 = vmatpush1.msra.mxu0 0.0
        %846 = vmatprep.subr.mxu0 0.0
        %847 = vmatpush1.msra.mxu0 0.0
        %848 = vmatprep.subr.mxu0 0.0
        %849 = vmatpush1.msra.mxu0 0.0
        %850 = vmatprep.subr.mxu0 0.0
        %851 = vmatpush1.msra.mxu0 0.0
        %852 = vmatprep.subr.mxu0 0.0
        %853 = vmatpush1.msra.mxu0 0.0
        %854 = vmatprep.subr.mxu0 0.0
        %855 = vmatpush1.msra.mxu0 0.0
        %856 = vmatprep.subr.mxu0 0.0
        %857 = vmatpush1.msra.mxu0 0.0
        %858 = vmatprep.subr.mxu0 0.0
        %859 = vmatpush1.msra.mxu0 0.0
        %860 = vmatprep.subr.mxu0 0.0
        %861 = vmatpush1.msra.mxu0 0.0
        %862 = vmatprep.subr.mxu0 0.0
        %863 = vmatpush1.msra.mxu0 0.0
        %864 = vmatprep.subr.mxu0 0.0
        %865 = vmatpush1.msra.mxu0 0.0
        %866 = vmatprep.subr.mxu0 0.0
        %867 = vmatpush1.msra.mxu0 %v716
        %868 = vmatprep.subr.mxu0 0.0
        %869 = vmatpush1.msra.mxu0 %v715
        %870 = vmatprep.subr.mxu0 0.0
        %871 = vmatpush2.msra.mxu0 0.0
        %872 = vmatprep.subr.mxu0 0.0
        %873 = vmatpush2.msra.mxu0 0.0
        %874 = vmatprep.subr.mxu0 0.0
        %875 = vmatpush2.msra.mxu0 0.0
        %876 = vmatprep.subr.mxu0 0.0
        %877 = vmatpush2.msra.mxu0 0.0
        %878 = vmatprep.subr.mxu0 0.0
        %879 = vmatpush2.msra.mxu0 0.0
        %880 = vmatprep.subr.mxu0 0.0
        %881 = vmatpush2.msra.mxu0 0.0
        %882 = vmatprep.subr.mxu0 0.0
        %883 = vmatpush2.msra.mxu0 0.0
        %884 = vmatprep.subr.mxu0 0.0
        %885 = vmatpush2.msra.mxu0 0.0
        %886 = vmatprep.subr.mxu0 0.0
        %887 = vmatpush2.msra.mxu0 0.0
        %888 = vmatprep.subr.mxu0 0.0
        %889 = vmatpush2.msra.mxu0 0.0
        %890 = vmatprep.subr.mxu0 0.0
        %891 = vmatpush2.msra.mxu0 0.0
        %892 = vmatprep.subr.mxu0 0.0
        %893 = vmatpush2.msra.mxu0 0.0
        %894 = vmatprep.subr.mxu0 0.0
        %895 = vmatpush2.msra.mxu0 0.0
        %896 = vmatprep.subr.mxu0 0.0
        %897 = vmatpush2.msra.mxu0 0.0
        %898 = vmatprep.subr.mxu0 0.0
        %899 = vmatpush2.msra.mxu0 0.0
        %900 = vmatprep.subr.mxu0 0.0
        %901 = vmatpush2.msra.mxu0 0.0
        %902 = vmatprep.mubr.f32.mxu0 0.0
        %903 = vmatmul.mubr.f32.gmra.mxu0 %v836
        %v904 = vpop.f32.mrf.mxu0
        %v905 = vadd.f32 0.0, %v904
        %v906 = vpop.f32.mrf.mxu0
        %907 = vdwg.mxu0
        %v909 = vsel %vm761, %v323, 0
        %911 = vmatprep.subr.mxu0 0.0
        %912 = vmatpush1.msra.mxu0 0.0
        %913 = vmatprep.subr.mxu0 0.0
        %914 = vmatpush1.msra.mxu0 0.0
        %915 = vmatprep.subr.mxu0 0.0
        %916 = vmatpush1.msra.mxu0 0.0
        %917 = vmatprep.subr.mxu0 0.0
        %918 = vmatpush1.msra.mxu0 0.0
        %919 = vmatprep.subr.mxu0 0.0
        %920 = vmatpush1.msra.mxu0 0.0
        %921 = vmatprep.subr.mxu0 0.0
        %922 = vmatpush1.msra.mxu0 0.0
        %923 = vmatprep.subr.mxu0 0.0
        %924 = vmatpush1.msra.mxu0 0.0
        %925 = vmatprep.subr.mxu0 0.0
        %926 = vmatpush1.msra.mxu0 0.0
        %927 = vmatprep.subr.mxu0 0.0
        %928 = vmatpush1.msra.mxu0 0.0
        %929 = vmatprep.subr.mxu0 0.0
        %930 = vmatpush1.msra.mxu0 0.0
        %931 = vmatprep.subr.mxu0 0.0
        %932 = vmatpush1.msra.mxu0 0.0
        %933 = vmatprep.subr.mxu0 0.0
        %934 = vmatpush1.msra.mxu0 0.0
        %935 = vmatprep.subr.mxu0 0.0
        %936 = vmatpush1.msra.mxu0 0.0
        %937 = vmatprep.subr.mxu0 0.0
        %938 = vmatpush1.msra.mxu0 0.0
        %939 = vmatprep.subr.mxu0 0.0
        %940 = vmatpush1.msra.mxu0 %v718
        %941 = vmatprep.subr.mxu0 0.0
        %942 = vmatpush1.msra.mxu0 %v717
        %943 = vmatprep.subr.mxu0 0.0
        %944 = vmatpush2.msra.mxu0 0.0
        %945 = vmatprep.subr.mxu0 0.0
        %946 = vmatpush2.msra.mxu0 0.0
        %947 = vmatprep.subr.mxu0 0.0
        %948 = vmatpush2.msra.mxu0 0.0
        %949 = vmatprep.subr.mxu0 0.0
        %950 = vmatpush2.msra.mxu0 0.0
        %951 = vmatprep.subr.mxu0 0.0
        %952 = vmatpush2.msra.mxu0 0.0
        %953 = vmatprep.subr.mxu0 0.0
        %954 = vmatpush2.msra.mxu0 0.0
        %955 = vmatprep.subr.mxu0 0.0
        %956 = vmatpush2.msra.mxu0 0.0
        %957 = vmatprep.subr.mxu0 0.0
        %958 = vmatpush2.msra.mxu0 0.0
        %959 = vmatprep.subr.mxu0 0.0
        %960 = vmatpush2.msra.mxu0 0.0
        %961 = vmatprep.subr.mxu0 0.0
        %962 = vmatpush2.msra.mxu0 0.0
        %963 = vmatprep.subr.mxu0 0.0
        %964 = vmatpush2.msra.mxu0 0.0
        %965 = vmatprep.subr.mxu0 0.0
        %966 = vmatpush2.msra.mxu0 0.0
        %967 = vmatprep.subr.mxu0 0.0
        %968 = vmatpush2.msra.mxu0 0.0
        %969 = vmatprep.subr.mxu0 0.0
        %970 = vmatpush2.msra.mxu0 0.0
        %971 = vmatprep.subr.mxu0 0.0
        %972 = vmatpush2.msra.mxu0 0.0
        %973 = vmatprep.subr.mxu0 0.0
        %974 = vmatpush2.msra.mxu0 0.0
        %975 = vmatprep.mubr.f32.mxu0 0.0
        %976 = vmatmul.mubr.f32.gmra.mxu0 %v909
        %v977 = vpop.f32.mrf.mxu0
        %v978 = vadd.f32 0.0, %v977
        %v979 = vpop.f32.mrf.mxu0
        %980 = vdwg.mxu0
        %v982 = vsel %vm761, %v324, 0
        %984 = vmatprep.subr.mxu0 0.0
        %985 = vmatpush1.msra.mxu0 0.0
        %986 = vmatprep.subr.mxu0 0.0
        %987 = vmatpush1.msra.mxu0 0.0
        %988 = vmatprep.subr.mxu0 0.0
        %989 = vmatpush1.msra.mxu0 0.0
        %990 = vmatprep.subr.mxu0 0.0
        %991 = vmatpush1.msra.mxu0 0.0
        %992 = vmatprep.subr.mxu0 0.0
        %993 = vmatpush1.msra.mxu0 0.0
        %994 = vmatprep.subr.mxu0 0.0
        %995 = vmatpush1.msra.mxu0 0.0
        %996 = vmatprep.subr.mxu0 0.0
        %997 = vmatpush1.msra.mxu0 0.0
        %998 = vmatprep.subr.mxu0 0.0
        %999 = vmatpush1.msra.mxu0 0.0
        %1000 = vmatprep.subr.mxu0 0.0
        %1001 = vmatpush1.msra.mxu0 0.0
        %1002 = vmatprep.subr.mxu0 0.0
        %1003 = vmatpush1.msra.mxu0 0.0
        %1004 = vmatprep.subr.mxu0 0.0
        %1005 = vmatpush1.msra.mxu0 0.0
        %1006 = vmatprep.subr.mxu0 0.0
        %1007 = vmatpush1.msra.mxu0 0.0
        %1008 = vmatprep.subr.mxu0 0.0
        %1009 = vmatpush1.msra.mxu0 0.0
        %1010 = vmatprep.subr.mxu0 0.0
        %1011 = vmatpush1.msra.mxu0 0.0
        %1012 = vmatprep.subr.mxu0 0.0
        %1013 = vmatpush1.msra.mxu0 %v720
        %1014 = vmatprep.subr.mxu0 0.0
        %1015 = vmatpush1.msra.mxu0 %v719
        %1016 = vmatprep.subr.mxu0 0.0
        %1017 = vmatpush2.msra.mxu0 0.0
        %1018 = vmatprep.subr.mxu0 0.0
        %1019 = vmatpush2.msra.mxu0 0.0
        %1020 = vmatprep.subr.mxu0 0.0
        %1021 = vmatpush2.msra.mxu0 0.0
        %1022 = vmatprep.subr.mxu0 0.0
        %1023 = vmatpush2.msra.mxu0 0.0
        %1024 = vmatprep.subr.mxu0 0.0
        %1025 = vmatpush2.msra.mxu0 0.0
        %1026 = vmatprep.subr.mxu0 0.0
        %1027 = vmatpush2.msra.mxu0 0.0
        %1028 = vmatprep.subr.mxu0 0.0
        %1029 = vmatpush2.msra.mxu0 0.0
        %1030 = vmatprep.subr.mxu0 0.0
        %1031 = vmatpush2.msra.mxu0 0.0
        %1032 = vmatprep.subr.mxu0 0.0
        %1033 = vmatpush2.msra.mxu0 0.0
        %1034 = vmatprep.subr.mxu0 0.0
        %1035 = vmatpush2.msra.mxu0 0.0
        %1036 = vmatprep.subr.mxu0 0.0
        %1037 = vmatpush2.msra.mxu0 0.0
        %1038 = vmatprep.subr.mxu0 0.0
        %1039 = vmatpush2.msra.mxu0 0.0
        %1040 = vmatprep.subr.mxu0 0.0
        %1041 = vmatpush2.msra.mxu0 0.0
        %1042 = vmatprep.subr.mxu0 0.0
        %1043 = vmatpush2.msra.mxu0 0.0
        %1044 = vmatprep.subr.mxu0 0.0
        %1045 = vmatpush2.msra.mxu0 0.0
        %1046 = vmatprep.subr.mxu0 0.0
        %1047 = vmatpush2.msra.mxu0 0.0
        %1048 = vmatprep.mubr.f32.mxu0 0.0
        %1049 = vmatmul.mubr.f32.gmra.mxu0 %v982
        %v1050 = vpop.f32.mrf.mxu0
        %v1051 = vadd.f32 0.0, %v1050
        %v1052 = vpop.f32.mrf.mxu0
        %1053 = vdwg.mxu0
        %v1055 = vsel %vm761, %v325, 0
        %1057 = vmatprep.subr.mxu0 0.0
        %1058 = vmatpush1.msra.mxu0 0.0
        %1059 = vmatprep.subr.mxu0 0.0
        %1060 = vmatpush1.msra.mxu0 0.0
        %1061 = vmatprep.subr.mxu0 0.0
        %1062 = vmatpush1.msra.mxu0 0.0
        %1063 = vmatprep.subr.mxu0 0.0
        %1064 = vmatpush1.msra.mxu0 0.0
        %1065 = vmatprep.subr.mxu0 0.0
        %1066 = vmatpush1.msra.mxu0 0.0
        %1067 = vmatprep.subr.mxu0 0.0
        %1068 = vmatpush1.msra.mxu0 0.0
        %1069 = vmatprep.subr.mxu0 0.0
        %1070 = vmatpush1.msra.mxu0 0.0
        %1071 = vmatprep.subr.mxu0 0.0
        %1072 = vmatpush1.msra.mxu0 0.0
        %1073 = vmatprep.subr.mxu0 0.0
        %1074 = vmatpush1.msra.mxu0 0.0
        %1075 = vmatprep.subr.mxu0 0.0
        %1076 = vmatpush1.msra.mxu0 0.0
        %1077 = vmatprep.subr.mxu0 0.0
        %1078 = vmatpush1.msra.mxu0 0.0
        %1079 = vmatprep.subr.mxu0 0.0
        %1080 = vmatpush1.msra.mxu0 0.0
        %1081 = vmatprep.subr.mxu0 0.0
        %1082 = vmatpush1.msra.mxu0 0.0
        %1083 = vmatprep.subr.mxu0 0.0
        %1084 = vmatpush1.msra.mxu0 0.0
        %1085 = vmatprep.subr.mxu0 0.0
        %1086 = vmatpush1.msra.mxu0 %v722
        %1087 = vmatprep.subr.mxu0 0.0
        %1088 = vmatpush1.msra.mxu0 %v721
        %1089 = vmatprep.subr.mxu0 0.0
        %1090 = vmatpush2.msra.mxu0 0.0
        %1091 = vmatprep.subr.mxu0 0.0
        %1092 = vmatpush2.msra.mxu0 0.0
        %1093 = vmatprep.subr.mxu0 0.0
        %1094 = vmatpush2.msra.mxu0 0.0
        %1095 = vmatprep.subr.mxu0 0.0
        %1096 = vmatpush2.msra.mxu0 0.0
        %1097 = vmatprep.subr.mxu0 0.0
        %1098 = vmatpush2.msra.mxu0 0.0
        %1099 = vmatprep.subr.mxu0 0.0
        %1100 = vmatpush2.msra.mxu0 0.0
        %1101 = vmatprep.subr.mxu0 0.0
        %1102 = vmatpush2.msra.mxu0 0.0
        %1103 = vmatprep.subr.mxu0 0.0
        %1104 = vmatpush2.msra.mxu0 0.0
        %1105 = vmatprep.subr.mxu0 0.0
        %1106 = vmatpush2.msra.mxu0 0.0
        %1107 = vmatprep.subr.mxu0 0.0
        %1108 = vmatpush2.msra.mxu0 0.0
        %1109 = vmatprep.subr.mxu0 0.0
        %1110 = vmatpush2.msra.mxu0 0.0
        %1111 = vmatprep.subr.mxu0 0.0
        %1112 = vmatpush2.msra.mxu0 0.0
        %1113 = vmatprep.subr.mxu0 0.0
        %1114 = vmatpush2.msra.mxu0 0.0
        %1115 = vmatprep.subr.mxu0 0.0
        %1116 = vmatpush2.msra.mxu0 0.0
        %1117 = vmatprep.subr.mxu0 0.0
        %1118 = vmatpush2.msra.mxu0 0.0
        %1119 = vmatprep.subr.mxu0 0.0
        %1120 = vmatpush2.msra.mxu0 0.0
        %1121 = vmatprep.mubr.f32.mxu0 0.0
        %1122 = vmatmul.mubr.f32.gmra.mxu0 %v1055
        %v1123 = vpop.f32.mrf.mxu0
        %v1124 = vadd.f32 0.0, %v1123
        %v1125 = vpop.f32.mrf.mxu0
        %1126 = vdwg.mxu0
        %v1128 = vsel %vm761, %v326, 0
        %1130 = vmatprep.subr.mxu0 0.0
        %1131 = vmatpush1.msra.mxu0 0.0
        %1132 = vmatprep.subr.mxu0 0.0
        %1133 = vmatpush1.msra.mxu0 0.0
        %1134 = vmatprep.subr.mxu0 0.0
        %1135 = vmatpush1.msra.mxu0 0.0
        %1136 = vmatprep.subr.mxu0 0.0
        %1137 = vmatpush1.msra.mxu0 0.0
        %1138 = vmatprep.subr.mxu0 0.0
        %1139 = vmatpush1.msra.mxu0 0.0
        %1140 = vmatprep.subr.mxu0 0.0
        %1141 = vmatpush1.msra.mxu0 0.0
        %1142 = vmatprep.subr.mxu0 0.0
        %1143 = vmatpush1.msra.mxu0 0.0
        %1144 = vmatprep.subr.mxu0 0.0
        %1145 = vmatpush1.msra.mxu0 0.0
        %1146 = vmatprep.subr.mxu0 0.0
        %1147 = vmatpush1.msra.mxu0 0.0
        %1148 = vmatprep.subr.mxu0 0.0
        %1149 = vmatpush1.msra.mxu0 0.0
        %1150 = vmatprep.subr.mxu0 0.0
        %1151 = vmatpush1.msra.mxu0 0.0
        %1152 = vmatprep.subr.mxu0 0.0
        %1153 = vmatpush1.msra.mxu0 0.0
        %1154 = vmatprep.subr.mxu0 0.0
        %1155 = vmatpush1.msra.mxu0 0.0
        %1156 = vmatprep.subr.mxu0 0.0
        %1157 = vmatpush1.msra.mxu0 0.0
        %1158 = vmatprep.subr.mxu0 0.0
        %1159 = vmatpush1.msra.mxu0 %v724
        %1160 = vmatprep.subr.mxu0 0.0
        %1161 = vmatpush1.msra.mxu0 %v723
        %1162 = vmatprep.subr.mxu0 0.0
        %1163 = vmatpush2.msra.mxu0 0.0
        %1164 = vmatprep.subr.mxu0 0.0
        %1165 = vmatpush2.msra.mxu0 0.0
        %1166 = vmatprep.subr.mxu0 0.0
        %1167 = vmatpush2.msra.mxu0 0.0
        %1168 = vmatprep.subr.mxu0 0.0
        %1169 = vmatpush2.msra.mxu0 0.0
        %1170 = vmatprep.subr.mxu0 0.0
        %1171 = vmatpush2.msra.mxu0 0.0
        %1172 = vmatprep.subr.mxu0 0.0
        %1173 = vmatpush2.msra.mxu0 0.0
        %1174 = vmatprep.subr.mxu0 0.0
        %1175 = vmatpush2.msra.mxu0 0.0
        %1176 = vmatprep.subr.mxu0 0.0
        %1177 = vmatpush2.msra.mxu0 0.0
        %1178 = vmatprep.subr.mxu0 0.0
        %1179 = vmatpush2.msra.mxu0 0.0
        %1180 = vmatprep.subr.mxu0 0.0
        %1181 = vmatpush2.msra.mxu0 0.0
        %1182 = vmatprep.subr.mxu0 0.0
        %1183 = vmatpush2.msra.mxu0 0.0
        %1184 = vmatprep.subr.mxu0 0.0
        %1185 = vmatpush2.msra.mxu0 0.0
        %1186 = vmatprep.subr.mxu0 0.0
        %1187 = vmatpush2.msra.mxu0 0.0
        %1188 = vmatprep.subr.mxu0 0.0
        %1189 = vmatpush2.msra.mxu0 0.0
        %1190 = vmatprep.subr.mxu0 0.0
        %1191 = vmatpush2.msra.mxu0 0.0
        %1192 = vmatprep.subr.mxu0 0.0
        %1193 = vmatpush2.msra.mxu0 0.0
        %1194 = vmatprep.mubr.f32.mxu0 0.0
        %1195 = vmatmul.mubr.f32.gmra.mxu0 %v1128
        %v1196 = vpop.f32.mrf.mxu0
        %v1197 = vadd.f32 0.0, %v1196
        %v1198 = vpop.f32.mrf.mxu0
        %1199 = vdwg.mxu0
        %v1201 = vsel %vm761, %v327, 0
        %1203 = vmatprep.subr.mxu0 0.0
        %1204 = vmatpush1.msra.mxu0 0.0
        %1205 = vmatprep.subr.mxu0 0.0
        %1206 = vmatpush1.msra.mxu0 0.0
        %1207 = vmatprep.subr.mxu0 0.0
        %1208 = vmatpush1.msra.mxu0 0.0
        %1209 = vmatprep.subr.mxu0 0.0
        %1210 = vmatpush1.msra.mxu0 0.0
        %1211 = vmatprep.subr.mxu0 0.0
        %1212 = vmatpush1.msra.mxu0 0.0
        %1213 = vmatprep.subr.mxu0 0.0
        %1214 = vmatpush1.msra.mxu0 0.0
        %1215 = vmatprep.subr.mxu0 0.0
        %1216 = vmatpush1.msra.mxu0 0.0
        %1217 = vmatprep.subr.mxu0 0.0
        %1218 = vmatpush1.msra.mxu0 0.0
        %1219 = vmatprep.subr.mxu0 0.0
        %1220 = vmatpush1.msra.mxu0 0.0
        %1221 = vmatprep.subr.mxu0 0.0
        %1222 = vmatpush1.msra.mxu0 0.0
        %1223 = vmatprep.subr.mxu0 0.0
        %1224 = vmatpush1.msra.mxu0 0.0
        %1225 = vmatprep.subr.mxu0 0.0
        %1226 = vmatpush1.msra.mxu0 0.0
        %1227 = vmatprep.subr.mxu0 0.0
        %1228 = vmatpush1.msra.mxu0 0.0
        %1229 = vmatprep.subr.mxu0 0.0
        %1230 = vmatpush1.msra.mxu0 0.0
        %1231 = vmatprep.subr.mxu0 0.0
        %1232 = vmatpush1.msra.mxu0 %v726
        %1233 = vmatprep.subr.mxu0 0.0
        %1234 = vmatpush1.msra.mxu0 %v725
        %1235 = vmatprep.subr.mxu0 0.0
        %1236 = vmatpush2.msra.mxu0 0.0
        %1237 = vmatprep.subr.mxu0 0.0
        %1238 = vmatpush2.msra.mxu0 0.0
        %1239 = vmatprep.subr.mxu0 0.0
        %1240 = vmatpush2.msra.mxu0 0.0
        %1241 = vmatprep.subr.mxu0 0.0
        %1242 = vmatpush2.msra.mxu0 0.0
        %1243 = vmatprep.subr.mxu0 0.0
        %1244 = vmatpush2.msra.mxu0 0.0
        %1245 = vmatprep.subr.mxu0 0.0
        %1246 = vmatpush2.msra.mxu0 0.0
        %1247 = vmatprep.subr.mxu0 0.0
        %1248 = vmatpush2.msra.mxu0 0.0
        %1249 = vmatprep.subr.mxu0 0.0
        %1250 = vmatpush2.msra.mxu0 0.0
        %1251 = vmatprep.subr.mxu0 0.0
        %1252 = vmatpush2.msra.mxu0 0.0
        %1253 = vmatprep.subr.mxu0 0.0
        %1254 = vmatpush2.msra.mxu0 0.0
        %1255 = vmatprep.subr.mxu0 0.0
        %1256 = vmatpush2.msra.mxu0 0.0
        %1257 = vmatprep.subr.mxu0 0.0
        %1258 = vmatpush2.msra.mxu0 0.0
        %1259 = vmatprep.subr.mxu0 0.0
        %1260 = vmatpush2.msra.mxu0 0.0
        %1261 = vmatprep.subr.mxu0 0.0
        %1262 = vmatpush2.msra.mxu0 0.0
        %1263 = vmatprep.subr.mxu0 0.0
        %1264 = vmatpush2.msra.mxu0 0.0
        %1265 = vmatprep.subr.mxu0 0.0
        %1266 = vmatpush2.msra.mxu0 0.0
        %1267 = vmatprep.mubr.f32.mxu0 0.0
        %1268 = vmatmul.mubr.f32.gmra.mxu0 %v1201
        %v1269 = vpop.f32.mrf.mxu0
        %v1270 = vadd.f32 0.0, %v1269
        %v1271 = vpop.f32.mrf.mxu0
        %1272 = vdwg.mxu0
        %v1274 = vsel %vm761, %v328, 0
        %1276 = vmatprep.subr.mxu0 0.0
        %1277 = vmatpush1.msra.mxu0 0.0
        %1278 = vmatprep.subr.mxu0 0.0
        %1279 = vmatpush1.msra.mxu0 0.0
        %1280 = vmatprep.subr.mxu0 0.0
        %1281 = vmatpush1.msra.mxu0 0.0
        %1282 = vmatprep.subr.mxu0 0.0
        %1283 = vmatpush1.msra.mxu0 0.0
        %1284 = vmatprep.subr.mxu0 0.0
        %1285 = vmatpush1.msra.mxu0 0.0
        %1286 = vmatprep.subr.mxu0 0.0
        %1287 = vmatpush1.msra.mxu0 0.0
        %1288 = vmatprep.subr.mxu0 0.0
        %1289 = vmatpush1.msra.mxu0 0.0
        %1290 = vmatprep.subr.mxu0 0.0
        %1291 = vmatpush1.msra.mxu0 0.0
        %1292 = vmatprep.subr.mxu0 0.0
        %1293 = vmatpush1.msra.mxu0 0.0
        %1294 = vmatprep.subr.mxu0 0.0
        %1295 = vmatpush1.msra.mxu0 0.0
        %1296 = vmatprep.subr.mxu0 0.0
        %1297 = vmatpush1.msra.mxu0 0.0
        %1298 = vmatprep.subr.mxu0 0.0
        %1299 = vmatpush1.msra.mxu0 0.0
        %1300 = vmatprep.subr.mxu0 0.0
        %1301 = vmatpush1.msra.mxu0 0.0
        %1302 = vmatprep.subr.mxu0 0.0
        %1303 = vmatpush1.msra.mxu0 0.0
        %1304 = vmatprep.subr.mxu0 0.0
        %1305 = vmatpush1.msra.mxu0 %v728
        %1306 = vmatprep.subr.mxu0 0.0
        %1307 = vmatpush1.msra.mxu0 %v727
        %1308 = vmatprep.subr.mxu0 0.0
        %1309 = vmatpush2.msra.mxu0 0.0
        %1310 = vmatprep.subr.mxu0 0.0
        %1311 = vmatpush2.msra.mxu0 0.0
        %1312 = vmatprep.subr.mxu0 0.0
        %1313 = vmatpush2.msra.mxu0 0.0
        %1314 = vmatprep.subr.mxu0 0.0
        %1315 = vmatpush2.msra.mxu0 0.0
        %1316 = vmatprep.subr.mxu0 0.0
        %1317 = vmatpush2.msra.mxu0 0.0
        %1318 = vmatprep.subr.mxu0 0.0
        %1319 = vmatpush2.msra.mxu0 0.0
        %1320 = vmatprep.subr.mxu0 0.0
        %1321 = vmatpush2.msra.mxu0 0.0
        %1322 = vmatprep.subr.mxu0 0.0
        %1323 = vmatpush2.msra.mxu0 0.0
        %1324 = vmatprep.subr.mxu0 0.0
        %1325 = vmatpush2.msra.mxu0 0.0
        %1326 = vmatprep.subr.mxu0 0.0
        %1327 = vmatpush2.msra.mxu0 0.0
        %1328 = vmatprep.subr.mxu0 0.0
        %1329 = vmatpush2.msra.mxu0 0.0
        %1330 = vmatprep.subr.mxu0 0.0
        %1331 = vmatpush2.msra.mxu0 0.0
        %1332 = vmatprep.subr.mxu0 0.0
        %1333 = vmatpush2.msra.mxu0 0.0
        %1334 = vmatprep.subr.mxu0 0.0
        %1335 = vmatpush2.msra.mxu0 0.0
        %1336 = vmatprep.subr.mxu0 0.0
        %1337 = vmatpush2.msra.mxu0 0.0
        %1338 = vmatprep.subr.mxu0 0.0
        %1339 = vmatpush2.msra.mxu0 0.0
        %1340 = vmatprep.mubr.f32.mxu0 0.0
        %1341 = vmatmul.mubr.f32.gmra.mxu0 %v1274
        %v1342 = vpop.f32.mrf.mxu0
        %v1343 = vadd.f32 0.0, %v1342
        %v1344 = vpop.f32.mrf.mxu0
        %1345 = vdwg.mxu0
        %v1346 = vlaneseq
        %v1347 = vshrl.u32 %v1346, 7
        %v1348 = vsub.s32 0, %v1347
        %v1349 = vrot.slane %v832, %v1348
        %1351 = vbcast.lane.b32.xlu0 %v1349, 256
        %v1352 = vpop.permute.xlu0 %1351
        %s1354 = sor.u32 256, 8
        %1355 = vbcast.lane.b32.xlu0 %v1349, %s1354
        %v1356 = vpop.permute.xlu0 %1355
        %s1358 = sor.u32 256, 16
        %1359 = vbcast.lane.b32.xlu0 %v1349, %s1358
        %v1360 = vpop.permute.xlu0 %1359
        %s1362 = sor.u32 256, 24
        %1363 = vbcast.lane.b32.xlu0 %v1349, %s1362
        %v1364 = vpop.permute.xlu0 %1363
        %v1365 = vlaneseq
        %v1366 = vshrl.u32 %v1365, 7
        %v1367 = vsub.s32 1, %v1366
        %v1368 = vrot.slane %v832, %v1367
        %1370 = vbcast.lane.b32.xlu0 %v1368, 256
        %v1371 = vpop.permute.xlu0 %1370
        %s1373 = sor.u32 256, 8
        %1374 = vbcast.lane.b32.xlu0 %v1368, %s1373
        %v1375 = vpop.permute.xlu0 %1374
        %s1377 = sor.u32 256, 16
        %1378 = vbcast.lane.b32.xlu0 %v1368, %s1377
        %v1379 = vpop.permute.xlu0 %1378
        %s1381 = sor.u32 256, 24
        %1382 = vbcast.lane.b32.xlu0 %v1368, %s1381
        %v1383 = vpop.permute.xlu0 %1382
        %v1384 = vlaneseq
        %v1385 = vshrl.u32 %v1384, 7
        %v1386 = vsub.s32 2, %v1385
        %v1387 = vrot.slane %v832, %v1386
        %1389 = vbcast.lane.b32.xlu0 %v1387, 256
        %v1390 = vpop.permute.xlu0 %1389
        %s1392 = sor.u32 256, 8
        %1393 = vbcast.lane.b32.xlu0 %v1387, %s1392
        %v1394 = vpop.permute.xlu0 %1393
        %s1396 = sor.u32 256, 16
        %1397 = vbcast.lane.b32.xlu0 %v1387, %s1396
        %v1398 = vpop.permute.xlu0 %1397
        %s1400 = sor.u32 256, 24
        %1401 = vbcast.lane.b32.xlu0 %v1387, %s1400
        %v1402 = vpop.permute.xlu0 %1401
        %v1403 = vlaneseq
        %v1404 = vshrl.u32 %v1403, 7
        %v1405 = vsub.s32 3, %v1404
        %v1406 = vrot.slane %v832, %v1405
        %1408 = vbcast.lane.b32.xlu0 %v1406, 256
        %v1409 = vpop.permute.xlu0 %1408
        %s1411 = sor.u32 256, 8
        %1412 = vbcast.lane.b32.xlu0 %v1406, %s1411
        %v1413 = vpop.permute.xlu0 %1412
        %s1415 = sor.u32 256, 16
        %1416 = vbcast.lane.b32.xlu0 %v1406, %s1415
        %v1417 = vpop.permute.xlu0 %1416
        %s1419 = sor.u32 256, 24
        %1420 = vbcast.lane.b32.xlu0 %v1406, %s1419
        %v1421 = vpop.permute.xlu0 %1420
        %v1422 = vlaneseq
        %v1423 = vshrl.u32 %v1422, 7
        %v1424 = vsub.s32 4, %v1423
        %v1425 = vrot.slane %v832, %v1424
        %1427 = vbcast.lane.b32.xlu0 %v1425, 256
        %v1428 = vpop.permute.xlu0 %1427
        %s1430 = sor.u32 256, 8
        %1431 = vbcast.lane.b32.xlu0 %v1425, %s1430
        %v1432 = vpop.permute.xlu0 %1431
        %s1434 = sor.u32 256, 16
        %1435 = vbcast.lane.b32.xlu0 %v1425, %s1434
        %v1436 = vpop.permute.xlu0 %1435
        %s1438 = sor.u32 256, 24
        %1439 = vbcast.lane.b32.xlu0 %v1425, %s1438
        %v1440 = vpop.permute.xlu0 %1439
        %v1441 = vlaneseq
        %v1442 = vshrl.u32 %v1441, 7
        %v1443 = vsub.s32 5, %v1442
        %v1444 = vrot.slane %v832, %v1443
        %1446 = vbcast.lane.b32.xlu0 %v1444, 256
        %v1447 = vpop.permute.xlu0 %1446
        %s1449 = sor.u32 256, 8
        %1450 = vbcast.lane.b32.xlu0 %v1444, %s1449
        %v1451 = vpop.permute.xlu0 %1450
        %s1453 = sor.u32 256, 16
        %1454 = vbcast.lane.b32.xlu0 %v1444, %s1453
        %v1455 = vpop.permute.xlu0 %1454
        %s1457 = sor.u32 256, 24
        %1458 = vbcast.lane.b32.xlu0 %v1444, %s1457
        %v1459 = vpop.permute.xlu0 %1458
        %v1460 = vlaneseq
        %v1461 = vshrl.u32 %v1460, 7
        %v1462 = vsub.s32 0, %v1461
        %v1463 = vrot.slane %v905, %v1462
        %1465 = vbcast.lane.b32.xlu0 %v1463, 256
        %v1466 = vpop.permute.xlu0 %1465
        %s1468 = sor.u32 256, 8
        %1469 = vbcast.lane.b32.xlu0 %v1463, %s1468
        %v1470 = vpop.permute.xlu0 %1469
        %s1472 = sor.u32 256, 16
        %1473 = vbcast.lane.b32.xlu0 %v1463, %s1472
        %v1474 = vpop.permute.xlu0 %1473
        %s1476 = sor.u32 256, 24
        %1477 = vbcast.lane.b32.xlu0 %v1463, %s1476
        %v1478 = vpop.permute.xlu0 %1477
        %v1479 = vlaneseq
        %v1480 = vshrl.u32 %v1479, 7
        %v1481 = vsub.s32 1, %v1480
        %v1482 = vrot.slane %v905, %v1481
        %1484 = vbcast.lane.b32.xlu0 %v1482, 256
        %v1485 = vpop.permute.xlu0 %1484
        %s1487 = sor.u32 256, 8
        %1488 = vbcast.lane.b32.xlu0 %v1482, %s1487
        %v1489 = vpop.permute.xlu0 %1488
        %s1491 = sor.u32 256, 16
        %1492 = vbcast.lane.b32.xlu0 %v1482, %s1491
        %v1493 = vpop.permute.xlu0 %1492
        %s1495 = sor.u32 256, 24
        %1496 = vbcast.lane.b32.xlu0 %v1482, %s1495
        %v1497 = vpop.permute.xlu0 %1496
        %v1498 = vlaneseq
        %v1499 = vshrl.u32 %v1498, 7
        %v1500 = vsub.s32 2, %v1499
        %v1501 = vrot.slane %v905, %v1500
        %1503 = vbcast.lane.b32.xlu0 %v1501, 256
        %v1504 = vpop.permute.xlu0 %1503
        %s1506 = sor.u32 256, 8
        %1507 = vbcast.lane.b32.xlu0 %v1501, %s1506
        %v1508 = vpop.permute.xlu0 %1507
        %s1510 = sor.u32 256, 16
        %1511 = vbcast.lane.b32.xlu0 %v1501, %s1510
        %v1512 = vpop.permute.xlu0 %1511
        %s1514 = sor.u32 256, 24
        %1515 = vbcast.lane.b32.xlu0 %v1501, %s1514
        %v1516 = vpop.permute.xlu0 %1515
        %v1517 = vlaneseq
        %v1518 = vshrl.u32 %v1517, 7
        %v1519 = vsub.s32 3, %v1518
        %v1520 = vrot.slane %v905, %v1519
        %1522 = vbcast.lane.b32.xlu0 %v1520, 256
        %v1523 = vpop.permute.xlu0 %1522
        %s1525 = sor.u32 256, 8
        %1526 = vbcast.lane.b32.xlu0 %v1520, %s1525
        %v1527 = vpop.permute.xlu0 %1526
        %s1529 = sor.u32 256, 16
        %1530 = vbcast.lane.b32.xlu0 %v1520, %s1529
        %v1531 = vpop.permute.xlu0 %1530
        %s1533 = sor.u32 256, 24
        %1534 = vbcast.lane.b32.xlu0 %v1520, %s1533
        %v1535 = vpop.permute.xlu0 %1534
        %v1536 = vlaneseq
        %v1537 = vshrl.u32 %v1536, 7
        %v1538 = vsub.s32 4, %v1537
        %v1539 = vrot.slane %v905, %v1538
        %1541 = vbcast.lane.b32.xlu0 %v1539, 256
        %v1542 = vpop.permute.xlu0 %1541
        %s1544 = sor.u32 256, 8
        %1545 = vbcast.lane.b32.xlu0 %v1539, %s1544
        %v1546 = vpop.permute.xlu0 %1545
        %s1548 = sor.u32 256, 16
        %1549 = vbcast.lane.b32.xlu0 %v1539, %s1548
        %v1550 = vpop.permute.xlu0 %1549
        %s1552 = sor.u32 256, 24
        %1553 = vbcast.lane.b32.xlu0 %v1539, %s1552
        %v1554 = vpop.permute.xlu0 %1553
        %v1555 = vlaneseq
        %v1556 = vshrl.u32 %v1555, 7
        %v1557 = vsub.s32 5, %v1556
        %v1558 = vrot.slane %v905, %v1557
        %1560 = vbcast.lane.b32.xlu0 %v1558, 256
        %v1561 = vpop.permute.xlu0 %1560
        %s1563 = sor.u32 256, 8
        %1564 = vbcast.lane.b32.xlu0 %v1558, %s1563
        %v1565 = vpop.permute.xlu0 %1564
        %s1567 = sor.u32 256, 16
        %1568 = vbcast.lane.b32.xlu0 %v1558, %s1567
        %v1569 = vpop.permute.xlu0 %1568
        %s1571 = sor.u32 256, 24
        %1572 = vbcast.lane.b32.xlu0 %v1558, %s1571
        %v1573 = vpop.permute.xlu0 %1572
        %v1574 = vlaneseq
        %v1575 = vshrl.u32 %v1574, 7
        %v1576 = vsub.s32 0, %v1575
        %v1577 = vrot.slane %v978, %v1576
        %1579 = vbcast.lane.b32.xlu0 %v1577, 256
        %v1580 = vpop.permute.xlu0 %1579
        %s1582 = sor.u32 256, 8
        %1583 = vbcast.lane.b32.xlu0 %v1577, %s1582
        %v1584 = vpop.permute.xlu0 %1583
        %s1586 = sor.u32 256, 16
        %1587 = vbcast.lane.b32.xlu0 %v1577, %s1586
        %v1588 = vpop.permute.xlu0 %1587
        %s1590 = sor.u32 256, 24
        %1591 = vbcast.lane.b32.xlu0 %v1577, %s1590
        %v1592 = vpop.permute.xlu0 %1591
        %v1593 = vlaneseq
        %v1594 = vshrl.u32 %v1593, 7
        %v1595 = vsub.s32 1, %v1594
        %v1596 = vrot.slane %v978, %v1595
        %1598 = vbcast.lane.b32.xlu0 %v1596, 256
        %v1599 = vpop.permute.xlu0 %1598
        %s1601 = sor.u32 256, 8
        %1602 = vbcast.lane.b32.xlu0 %v1596, %s1601
        %v1603 = vpop.permute.xlu0 %1602
        %s1605 = sor.u32 256, 16
        %1606 = vbcast.lane.b32.xlu0 %v1596, %s1605
        %v1607 = vpop.permute.xlu0 %1606
        %s1609 = sor.u32 256, 24
        %1610 = vbcast.lane.b32.xlu0 %v1596, %s1609
        %v1611 = vpop.permute.xlu0 %1610
        %v1612 = vlaneseq
        %v1613 = vshrl.u32 %v1612, 7
        %v1614 = vsub.s32 2, %v1613
        %v1615 = vrot.slane %v978, %v1614
        %1617 = vbcast.lane.b32.xlu0 %v1615, 256
        %v1618 = vpop.permute.xlu0 %1617
        %s1620 = sor.u32 256, 8
        %1621 = vbcast.lane.b32.xlu0 %v1615, %s1620
        %v1622 = vpop.permute.xlu0 %1621
        %s1624 = sor.u32 256, 16
        %1625 = vbcast.lane.b32.xlu0 %v1615, %s1624
        %v1626 = vpop.permute.xlu0 %1625
        %s1628 = sor.u32 256, 24
        %1629 = vbcast.lane.b32.xlu0 %v1615, %s1628
        %v1630 = vpop.permute.xlu0 %1629
        %v1631 = vlaneseq
        %v1632 = vshrl.u32 %v1631, 7
        %v1633 = vsub.s32 3, %v1632
        %v1634 = vrot.slane %v978, %v1633
        %1636 = vbcast.lane.b32.xlu0 %v1634, 256
        %v1637 = vpop.permute.xlu0 %1636
        %s1639 = sor.u32 256, 8
        %1640 = vbcast.lane.b32.xlu0 %v1634, %s1639
        %v1641 = vpop.permute.xlu0 %1640
        %s1643 = sor.u32 256, 16
        %1644 = vbcast.lane.b32.xlu0 %v1634, %s1643
        %v1645 = vpop.permute.xlu0 %1644
        %s1647 = sor.u32 256, 24
        %1648 = vbcast.lane.b32.xlu0 %v1634, %s1647
        %v1649 = vpop.permute.xlu0 %1648
        %v1650 = vlaneseq
        %v1651 = vshrl.u32 %v1650, 7
        %v1652 = vsub.s32 4, %v1651
        %v1653 = vrot.slane %v978, %v1652
        %1655 = vbcast.lane.b32.xlu0 %v1653, 256
        %v1656 = vpop.permute.xlu0 %1655
        %s1658 = sor.u32 256, 8
        %1659 = vbcast.lane.b32.xlu0 %v1653, %s1658
        %v1660 = vpop.permute.xlu0 %1659
        %s1662 = sor.u32 256, 16
        %1663 = vbcast.lane.b32.xlu0 %v1653, %s1662
        %v1664 = vpop.permute.xlu0 %1663
        %s1666 = sor.u32 256, 24
        %1667 = vbcast.lane.b32.xlu0 %v1653, %s1666
        %v1668 = vpop.permute.xlu0 %1667
        %v1669 = vlaneseq
        %v1670 = vshrl.u32 %v1669, 7
        %v1671 = vsub.s32 5, %v1670
        %v1672 = vrot.slane %v978, %v1671
        %1674 = vbcast.lane.b32.xlu0 %v1672, 256
        %v1675 = vpop.permute.xlu0 %1674
        %s1677 = sor.u32 256, 8
        %1678 = vbcast.lane.b32.xlu0 %v1672, %s1677
        %v1679 = vpop.permute.xlu0 %1678
        %s1681 = sor.u32 256, 16
        %1682 = vbcast.lane.b32.xlu0 %v1672, %s1681
        %v1683 = vpop.permute.xlu0 %1682
        %s1685 = sor.u32 256, 24
        %1686 = vbcast.lane.b32.xlu0 %v1672, %s1685
        %v1687 = vpop.permute.xlu0 %1686
        %v1688 = vlaneseq
        %v1689 = vshrl.u32 %v1688, 7
        %v1690 = vsub.s32 0, %v1689
        %v1691 = vrot.slane %v1051, %v1690
        %1693 = vbcast.lane.b32.xlu0 %v1691, 256
        %v1694 = vpop.permute.xlu0 %1693
        %s1696 = sor.u32 256, 8
        %1697 = vbcast.lane.b32.xlu0 %v1691, %s1696
        %v1698 = vpop.permute.xlu0 %1697
        %s1700 = sor.u32 256, 16
        %1701 = vbcast.lane.b32.xlu0 %v1691, %s1700
        %v1702 = vpop.permute.xlu0 %1701
        %s1704 = sor.u32 256, 24
        %1705 = vbcast.lane.b32.xlu0 %v1691, %s1704
        %v1706 = vpop.permute.xlu0 %1705
        %v1707 = vlaneseq
        %v1708 = vshrl.u32 %v1707, 7
        %v1709 = vsub.s32 1, %v1708
        %v1710 = vrot.slane %v1051, %v1709
        %1712 = vbcast.lane.b32.xlu0 %v1710, 256
        %v1713 = vpop.permute.xlu0 %1712
        %s1715 = sor.u32 256, 8
        %1716 = vbcast.lane.b32.xlu0 %v1710, %s1715
        %v1717 = vpop.permute.xlu0 %1716
        %s1719 = sor.u32 256, 16
        %1720 = vbcast.lane.b32.xlu0 %v1710, %s1719
        %v1721 = vpop.permute.xlu0 %1720
        %s1723 = sor.u32 256, 24
        %1724 = vbcast.lane.b32.xlu0 %v1710, %s1723
        %v1725 = vpop.permute.xlu0 %1724
        %v1726 = vlaneseq
        %v1727 = vshrl.u32 %v1726, 7
        %v1728 = vsub.s32 2, %v1727
        %v1729 = vrot.slane %v1051, %v1728
        %1731 = vbcast.lane.b32.xlu0 %v1729, 256
        %v1732 = vpop.permute.xlu0 %1731
        %s1734 = sor.u32 256, 8
        %1735 = vbcast.lane.b32.xlu0 %v1729, %s1734
        %v1736 = vpop.permute.xlu0 %1735
        %s1738 = sor.u32 256, 16
        %1739 = vbcast.lane.b32.xlu0 %v1729, %s1738
        %v1740 = vpop.permute.xlu0 %1739
        %s1742 = sor.u32 256, 24
        %1743 = vbcast.lane.b32.xlu0 %v1729, %s1742
        %v1744 = vpop.permute.xlu0 %1743
        %v1745 = vlaneseq
        %v1746 = vshrl.u32 %v1745, 7
        %v1747 = vsub.s32 3, %v1746
        %v1748 = vrot.slane %v1051, %v1747
        %1750 = vbcast.lane.b32.xlu0 %v1748, 256
        %v1751 = vpop.permute.xlu0 %1750
        %s1753 = sor.u32 256, 8
        %1754 = vbcast.lane.b32.xlu0 %v1748, %s1753
        %v1755 = vpop.permute.xlu0 %1754
        %s1757 = sor.u32 256, 16
        %1758 = vbcast.lane.b32.xlu0 %v1748, %s1757
        %v1759 = vpop.permute.xlu0 %1758
        %s1761 = sor.u32 256, 24
        %1762 = vbcast.lane.b32.xlu0 %v1748, %s1761
        %v1763 = vpop.permute.xlu0 %1762
        %v1764 = vlaneseq
        %v1765 = vshrl.u32 %v1764, 7
        %v1766 = vsub.s32 4, %v1765
        %v1767 = vrot.slane %v1051, %v1766
        %1769 = vbcast.lane.b32.xlu0 %v1767, 256
        %v1770 = vpop.permute.xlu0 %1769
        %s1772 = sor.u32 256, 8
        %1773 = vbcast.lane.b32.xlu0 %v1767, %s1772
        %v1774 = vpop.permute.xlu0 %1773
        %s1776 = sor.u32 256, 16
        %1777 = vbcast.lane.b32.xlu0 %v1767, %s1776
        %v1778 = vpop.permute.xlu0 %1777
        %s1780 = sor.u32 256, 24
        %1781 = vbcast.lane.b32.xlu0 %v1767, %s1780
        %v1782 = vpop.permute.xlu0 %1781
        %v1783 = vlaneseq
        %v1784 = vshrl.u32 %v1783, 7
        %v1785 = vsub.s32 5, %v1784
        %v1786 = vrot.slane %v1051, %v1785
        %1788 = vbcast.lane.b32.xlu0 %v1786, 256
        %v1789 = vpop.permute.xlu0 %1788
        %s1791 = sor.u32 256, 8
        %1792 = vbcast.lane.b32.xlu0 %v1786, %s1791
        %v1793 = vpop.permute.xlu0 %1792
        %s1795 = sor.u32 256, 16
        %1796 = vbcast.lane.b32.xlu0 %v1786, %s1795
        %v1797 = vpop.permute.xlu0 %1796
        %s1799 = sor.u32 256, 24
        %1800 = vbcast.lane.b32.xlu0 %v1786, %s1799
        %v1801 = vpop.permute.xlu0 %1800
        %v1802 = vlaneseq
        %v1803 = vshrl.u32 %v1802, 7
        %v1804 = vsub.s32 0, %v1803
        %v1805 = vrot.slane %v1124, %v1804
        %1807 = vbcast.lane.b32.xlu0 %v1805, 256
        %v1808 = vpop.permute.xlu0 %1807
        %s1810 = sor.u32 256, 8
        %1811 = vbcast.lane.b32.xlu0 %v1805, %s1810
        %v1812 = vpop.permute.xlu0 %1811
        %s1814 = sor.u32 256, 16
        %1815 = vbcast.lane.b32.xlu0 %v1805, %s1814
        %v1816 = vpop.permute.xlu0 %1815
        %s1818 = sor.u32 256, 24
        %1819 = vbcast.lane.b32.xlu0 %v1805, %s1818
        %v1820 = vpop.permute.xlu0 %1819
        %v1821 = vlaneseq
        %v1822 = vshrl.u32 %v1821, 7
        %v1823 = vsub.s32 1, %v1822
        %v1824 = vrot.slane %v1124, %v1823
        %1826 = vbcast.lane.b32.xlu0 %v1824, 256
        %v1827 = vpop.permute.xlu0 %1826
        %s1829 = sor.u32 256, 8
        %1830 = vbcast.lane.b32.xlu0 %v1824, %s1829
        %v1831 = vpop.permute.xlu0 %1830
        %s1833 = sor.u32 256, 16
        %1834 = vbcast.lane.b32.xlu0 %v1824, %s1833
        %v1835 = vpop.permute.xlu0 %1834
        %s1837 = sor.u32 256, 24
        %1838 = vbcast.lane.b32.xlu0 %v1824, %s1837
        %v1839 = vpop.permute.xlu0 %1838
        %v1840 = vlaneseq
        %v1841 = vshrl.u32 %v1840, 7
        %v1842 = vsub.s32 2, %v1841
        %v1843 = vrot.slane %v1124, %v1842
        %1845 = vbcast.lane.b32.xlu0 %v1843, 256
        %v1846 = vpop.permute.xlu0 %1845
        %s1848 = sor.u32 256, 8
        %1849 = vbcast.lane.b32.xlu0 %v1843, %s1848
        %v1850 = vpop.permute.xlu0 %1849
        %s1852 = sor.u32 256, 16
        %1853 = vbcast.lane.b32.xlu0 %v1843, %s1852
        %v1854 = vpop.permute.xlu0 %1853
        %s1856 = sor.u32 256, 24
        %1857 = vbcast.lane.b32.xlu0 %v1843, %s1856
        %v1858 = vpop.permute.xlu0 %1857
        %v1859 = vlaneseq
        %v1860 = vshrl.u32 %v1859, 7
        %v1861 = vsub.s32 3, %v1860
        %v1862 = vrot.slane %v1124, %v1861
        %1864 = vbcast.lane.b32.xlu0 %v1862, 256
        %v1865 = vpop.permute.xlu0 %1864
        %s1867 = sor.u32 256, 8
        %1868 = vbcast.lane.b32.xlu0 %v1862, %s1867
        %v1869 = vpop.permute.xlu0 %1868
        %s1871 = sor.u32 256, 16
        %1872 = vbcast.lane.b32.xlu0 %v1862, %s1871
        %v1873 = vpop.permute.xlu0 %1872
        %s1875 = sor.u32 256, 24
        %1876 = vbcast.lane.b32.xlu0 %v1862, %s1875
        %v1877 = vpop.permute.xlu0 %1876
        %v1878 = vlaneseq
        %v1879 = vshrl.u32 %v1878, 7
        %v1880 = vsub.s32 4, %v1879
        %v1881 = vrot.slane %v1124, %v1880
        %1883 = vbcast.lane.b32.xlu0 %v1881, 256
        %v1884 = vpop.permute.xlu0 %1883
        %s1886 = sor.u32 256, 8
        %1887 = vbcast.lane.b32.xlu0 %v1881, %s1886
        %v1888 = vpop.permute.xlu0 %1887
        %s1890 = sor.u32 256, 16
        %1891 = vbcast.lane.b32.xlu0 %v1881, %s1890
        %v1892 = vpop.permute.xlu0 %1891
        %s1894 = sor.u32 256, 24
        %1895 = vbcast.lane.b32.xlu0 %v1881, %s1894
        %v1896 = vpop.permute.xlu0 %1895
        %v1897 = vlaneseq
        %v1898 = vshrl.u32 %v1897, 7
        %v1899 = vsub.s32 5, %v1898
        %v1900 = vrot.slane %v1124, %v1899
        %1902 = vbcast.lane.b32.xlu0 %v1900, 256
        %v1903 = vpop.permute.xlu0 %1902
        %s1905 = sor.u32 256, 8
        %1906 = vbcast.lane.b32.xlu0 %v1900, %s1905
        %v1907 = vpop.permute.xlu0 %1906
        %s1909 = sor.u32 256, 16
        %1910 = vbcast.lane.b32.xlu0 %v1900, %s1909
        %v1911 = vpop.permute.xlu0 %1910
        %s1913 = sor.u32 256, 24
        %1914 = vbcast.lane.b32.xlu0 %v1900, %s1913
        %v1915 = vpop.permute.xlu0 %1914
        %v1916 = vlaneseq
        %v1917 = vshrl.u32 %v1916, 7
        %v1918 = vsub.s32 0, %v1917
        %v1919 = vrot.slane %v1197, %v1918
        %1921 = vbcast.lane.b32.xlu0 %v1919, 256
        %v1922 = vpop.permute.xlu0 %1921
        %s1924 = sor.u32 256, 8
        %1925 = vbcast.lane.b32.xlu0 %v1919, %s1924
        %v1926 = vpop.permute.xlu0 %1925
        %s1928 = sor.u32 256, 16
        %1929 = vbcast.lane.b32.xlu0 %v1919, %s1928
        %v1930 = vpop.permute.xlu0 %1929
        %s1932 = sor.u32 256, 24
        %1933 = vbcast.lane.b32.xlu0 %v1919, %s1932
        %v1934 = vpop.permute.xlu0 %1933
        %v1935 = vlaneseq
        %v1936 = vshrl.u32 %v1935, 7
        %v1937 = vsub.s32 1, %v1936
        %v1938 = vrot.slane %v1197, %v1937
        %1940 = vbcast.lane.b32.xlu0 %v1938, 256
        %v1941 = vpop.permute.xlu0 %1940
        %s1943 = sor.u32 256, 8
        %1944 = vbcast.lane.b32.xlu0 %v1938, %s1943
        %v1945 = vpop.permute.xlu0 %1944
        %s1947 = sor.u32 256, 16
        %1948 = vbcast.lane.b32.xlu0 %v1938, %s1947
        %v1949 = vpop.permute.xlu0 %1948
        %s1951 = sor.u32 256, 24
        %1952 = vbcast.lane.b32.xlu0 %v1938, %s1951
        %v1953 = vpop.permute.xlu0 %1952
        %v1954 = vlaneseq
        %v1955 = vshrl.u32 %v1954, 7
        %v1956 = vsub.s32 2, %v1955
        %v1957 = vrot.slane %v1197, %v1956
        %1959 = vbcast.lane.b32.xlu0 %v1957, 256
        %v1960 = vpop.permute.xlu0 %1959
        %s1962 = sor.u32 256, 8
        %1963 = vbcast.lane.b32.xlu0 %v1957, %s1962
        %v1964 = vpop.permute.xlu0 %1963
        %s1966 = sor.u32 256, 16
        %1967 = vbcast.lane.b32.xlu0 %v1957, %s1966
        %v1968 = vpop.permute.xlu0 %1967
        %s1970 = sor.u32 256, 24
        %1971 = vbcast.lane.b32.xlu0 %v1957, %s1970
        %v1972 = vpop.permute.xlu0 %1971
        %v1973 = vlaneseq
        %v1974 = vshrl.u32 %v1973, 7
        %v1975 = vsub.s32 3, %v1974
        %v1976 = vrot.slane %v1197, %v1975
        %1978 = vbcast.lane.b32.xlu0 %v1976, 256
        %v1979 = vpop.permute.xlu0 %1978
        %s1981 = sor.u32 256, 8
        %1982 = vbcast.lane.b32.xlu0 %v1976, %s1981
        %v1983 = vpop.permute.xlu0 %1982
        %s1985 = sor.u32 256, 16
        %1986 = vbcast.lane.b32.xlu0 %v1976, %s1985
        %v1987 = vpop.permute.xlu0 %1986
        %s1989 = sor.u32 256, 24
        %1990 = vbcast.lane.b32.xlu0 %v1976, %s1989
        %v1991 = vpop.permute.xlu0 %1990
        %v1992 = vlaneseq
        %v1993 = vshrl.u32 %v1992, 7
        %v1994 = vsub.s32 4, %v1993
        %v1995 = vrot.slane %v1197, %v1994
        %1997 = vbcast.lane.b32.xlu0 %v1995, 256
        %v1998 = vpop.permute.xlu0 %1997
        %s2000 = sor.u32 256, 8
        %2001 = vbcast.lane.b32.xlu0 %v1995, %s2000
        %v2002 = vpop.permute.xlu0 %2001
        %s2004 = sor.u32 256, 16
        %2005 = vbcast.lane.b32.xlu0 %v1995, %s2004
        %v2006 = vpop.permute.xlu0 %2005
        %s2008 = sor.u32 256, 24
        %2009 = vbcast.lane.b32.xlu0 %v1995, %s2008
        %v2010 = vpop.permute.xlu0 %2009
        %v2011 = vlaneseq
        %v2012 = vshrl.u32 %v2011, 7
        %v2013 = vsub.s32 5, %v2012
        %v2014 = vrot.slane %v1197, %v2013
        %2016 = vbcast.lane.b32.xlu0 %v2014, 256
        %v2017 = vpop.permute.xlu0 %2016
        %s2019 = sor.u32 256, 8
        %2020 = vbcast.lane.b32.xlu0 %v2014, %s2019
        %v2021 = vpop.permute.xlu0 %2020
        %s2023 = sor.u32 256, 16
        %2024 = vbcast.lane.b32.xlu0 %v2014, %s2023
        %v2025 = vpop.permute.xlu0 %2024
        %s2027 = sor.u32 256, 24
        %2028 = vbcast.lane.b32.xlu0 %v2014, %s2027
        %v2029 = vpop.permute.xlu0 %2028
        %v2030 = vlaneseq
        %v2031 = vshrl.u32 %v2030, 7
        %v2032 = vsub.s32 0, %v2031
        %v2033 = vrot.slane %v1270, %v2032
        %2035 = vbcast.lane.b32.xlu0 %v2033, 256
        %v2036 = vpop.permute.xlu0 %2035
        %s2038 = sor.u32 256, 8
        %2039 = vbcast.lane.b32.xlu0 %v2033, %s2038
        %v2040 = vpop.permute.xlu0 %2039
        %s2042 = sor.u32 256, 16
        %2043 = vbcast.lane.b32.xlu0 %v2033, %s2042
        %v2044 = vpop.permute.xlu0 %2043
        %s2046 = sor.u32 256, 24
        %2047 = vbcast.lane.b32.xlu0 %v2033, %s2046
        %v2048 = vpop.permute.xlu0 %2047
        %v2049 = vlaneseq
        %v2050 = vshrl.u32 %v2049, 7
        %v2051 = vsub.s32 1, %v2050
        %v2052 = vrot.slane %v1270, %v2051
        %2054 = vbcast.lane.b32.xlu0 %v2052, 256
        %v2055 = vpop.permute.xlu0 %2054
        %s2057 = sor.u32 256, 8
        %2058 = vbcast.lane.b32.xlu0 %v2052, %s2057
        %v2059 = vpop.permute.xlu0 %2058
        %s2061 = sor.u32 256, 16
        %2062 = vbcast.lane.b32.xlu0 %v2052, %s2061
        %v2063 = vpop.permute.xlu0 %2062
        %s2065 = sor.u32 256, 24
        %2066 = vbcast.lane.b32.xlu0 %v2052, %s2065
        %v2067 = vpop.permute.xlu0 %2066
        %v2068 = vlaneseq
        %v2069 = vshrl.u32 %v2068, 7
        %v2070 = vsub.s32 2, %v2069
        %v2071 = vrot.slane %v1270, %v2070
        %2073 = vbcast.lane.b32.xlu0 %v2071, 256
        %v2074 = vpop.permute.xlu0 %2073
        %s2076 = sor.u32 256, 8
        %2077 = vbcast.lane.b32.xlu0 %v2071, %s2076
        %v2078 = vpop.permute.xlu0 %2077
        %s2080 = sor.u32 256, 16
        %2081 = vbcast.lane.b32.xlu0 %v2071, %s2080
        %v2082 = vpop.permute.xlu0 %2081
        %s2084 = sor.u32 256, 24
        %2085 = vbcast.lane.b32.xlu0 %v2071, %s2084
        %v2086 = vpop.permute.xlu0 %2085
        %v2087 = vlaneseq
        %v2088 = vshrl.u32 %v2087, 7
        %v2089 = vsub.s32 3, %v2088
        %v2090 = vrot.slane %v1270, %v2089
        %2092 = vbcast.lane.b32.xlu0 %v2090, 256
        %v2093 = vpop.permute.xlu0 %2092
        %s2095 = sor.u32 256, 8
        %2096 = vbcast.lane.b32.xlu0 %v2090, %s2095
        %v2097 = vpop.permute.xlu0 %2096
        %s2099 = sor.u32 256, 16
        %2100 = vbcast.lane.b32.xlu0 %v2090, %s2099
        %v2101 = vpop.permute.xlu0 %2100
        %s2103 = sor.u32 256, 24
        %2104 = vbcast.lane.b32.xlu0 %v2090, %s2103
        %v2105 = vpop.permute.xlu0 %2104
        %v2106 = vlaneseq
        %v2107 = vshrl.u32 %v2106, 7
        %v2108 = vsub.s32 4, %v2107
        %v2109 = vrot.slane %v1270, %v2108
        %2111 = vbcast.lane.b32.xlu0 %v2109, 256
        %v2112 = vpop.permute.xlu0 %2111
        %s2114 = sor.u32 256, 8
        %2115 = vbcast.lane.b32.xlu0 %v2109, %s2114
        %v2116 = vpop.permute.xlu0 %2115
        %s2118 = sor.u32 256, 16
        %2119 = vbcast.lane.b32.xlu0 %v2109, %s2118
        %v2120 = vpop.permute.xlu0 %2119
        %s2122 = sor.u32 256, 24
        %2123 = vbcast.lane.b32.xlu0 %v2109, %s2122
        %v2124 = vpop.permute.xlu0 %2123
        %v2125 = vlaneseq
        %v2126 = vshrl.u32 %v2125, 7
        %v2127 = vsub.s32 5, %v2126
        %v2128 = vrot.slane %v1270, %v2127
        %2130 = vbcast.lane.b32.xlu0 %v2128, 256
        %v2131 = vpop.permute.xlu0 %2130
        %s2133 = sor.u32 256, 8
        %2134 = vbcast.lane.b32.xlu0 %v2128, %s2133
        %v2135 = vpop.permute.xlu0 %2134
        %s2137 = sor.u32 256, 16
        %2138 = vbcast.lane.b32.xlu0 %v2128, %s2137
        %v2139 = vpop.permute.xlu0 %2138
        %s2141 = sor.u32 256, 24
        %2142 = vbcast.lane.b32.xlu0 %v2128, %s2141
        %v2143 = vpop.permute.xlu0 %2142
        %v2144 = vlaneseq
        %v2145 = vshrl.u32 %v2144, 7
        %v2146 = vsub.s32 0, %v2145
        %v2147 = vrot.slane %v1343, %v2146
        %2149 = vbcast.lane.b32.xlu0 %v2147, 256
        %v2150 = vpop.permute.xlu0 %2149
        %s2152 = sor.u32 256, 8
        %2153 = vbcast.lane.b32.xlu0 %v2147, %s2152
        %v2154 = vpop.permute.xlu0 %2153
        %s2156 = sor.u32 256, 16
        %2157 = vbcast.lane.b32.xlu0 %v2147, %s2156
        %v2158 = vpop.permute.xlu0 %2157
        %s2160 = sor.u32 256, 24
        %2161 = vbcast.lane.b32.xlu0 %v2147, %s2160
        %v2162 = vpop.permute.xlu0 %2161
        %v2163 = vlaneseq
        %v2164 = vshrl.u32 %v2163, 7
        %v2165 = vsub.s32 1, %v2164
        %v2166 = vrot.slane %v1343, %v2165
        %2168 = vbcast.lane.b32.xlu0 %v2166, 256
        %v2169 = vpop.permute.xlu0 %2168
        %s2171 = sor.u32 256, 8
        %2172 = vbcast.lane.b32.xlu0 %v2166, %s2171
        %v2173 = vpop.permute.xlu0 %2172
        %s2175 = sor.u32 256, 16
        %2176 = vbcast.lane.b32.xlu0 %v2166, %s2175
        %v2177 = vpop.permute.xlu0 %2176
        %s2179 = sor.u32 256, 24
        %2180 = vbcast.lane.b32.xlu0 %v2166, %s2179
        %v2181 = vpop.permute.xlu0 %2180
        %v2182 = vlaneseq
        %v2183 = vshrl.u32 %v2182, 7
        %v2184 = vsub.s32 2, %v2183
        %v2185 = vrot.slane %v1343, %v2184
        %2187 = vbcast.lane.b32.xlu0 %v2185, 256
        %v2188 = vpop.permute.xlu0 %2187
        %s2190 = sor.u32 256, 8
        %2191 = vbcast.lane.b32.xlu0 %v2185, %s2190
        %v2192 = vpop.permute.xlu0 %2191
        %s2194 = sor.u32 256, 16
        %2195 = vbcast.lane.b32.xlu0 %v2185, %s2194
        %v2196 = vpop.permute.xlu0 %2195
        %s2198 = sor.u32 256, 24
        %2199 = vbcast.lane.b32.xlu0 %v2185, %s2198
        %v2200 = vpop.permute.xlu0 %2199
        %v2201 = vlaneseq
        %v2202 = vshrl.u32 %v2201, 7
        %v2203 = vsub.s32 3, %v2202
        %v2204 = vrot.slane %v1343, %v2203
        %2206 = vbcast.lane.b32.xlu0 %v2204, 256
        %v2207 = vpop.permute.xlu0 %2206
        %s2209 = sor.u32 256, 8
        %2210 = vbcast.lane.b32.xlu0 %v2204, %s2209
        %v2211 = vpop.permute.xlu0 %2210
        %s2213 = sor.u32 256, 16
        %2214 = vbcast.lane.b32.xlu0 %v2204, %s2213
        %v2215 = vpop.permute.xlu0 %2214
        %s2217 = sor.u32 256, 24
        %2218 = vbcast.lane.b32.xlu0 %v2204, %s2217
        %v2219 = vpop.permute.xlu0 %2218
        %v2220 = vlaneseq
        %v2221 = vshrl.u32 %v2220, 7
        %v2222 = vsub.s32 4, %v2221
        %v2223 = vrot.slane %v1343, %v2222
        %2225 = vbcast.lane.b32.xlu0 %v2223, 256
        %v2226 = vpop.permute.xlu0 %2225
        %s2228 = sor.u32 256, 8
        %2229 = vbcast.lane.b32.xlu0 %v2223, %s2228
        %v2230 = vpop.permute.xlu0 %2229
        %s2232 = sor.u32 256, 16
        %2233 = vbcast.lane.b32.xlu0 %v2223, %s2232
        %v2234 = vpop.permute.xlu0 %2233
        %s2236 = sor.u32 256, 24
        %2237 = vbcast.lane.b32.xlu0 %v2223, %s2236
        %v2238 = vpop.permute.xlu0 %2237
        %v2239 = vlaneseq
        %v2240 = vshrl.u32 %v2239, 7
        %v2241 = vsub.s32 5, %v2240
        %v2242 = vrot.slane %v1343, %v2241
        %2244 = vbcast.lane.b32.xlu0 %v2242, 256
        %v2245 = vpop.permute.xlu0 %2244
        %s2247 = sor.u32 256, 8
        %2248 = vbcast.lane.b32.xlu0 %v2242, %s2247
        %v2249 = vpop.permute.xlu0 %2248
        %s2251 = sor.u32 256, 16
        %2252 = vbcast.lane.b32.xlu0 %v2242, %s2251
        %v2253 = vpop.permute.xlu0 %2252
        %s2255 = sor.u32 256, 24
        %2256 = vbcast.lane.b32.xlu0 %v2242, %s2255
        %v2257 = vpop.permute.xlu0 %2256
        %v2258 = vmul.f32 %v521, %v1352
        %v2259 = vmul.f32 %v522, %v1356
        %v2260 = vmul.f32 %v523, %v1360
        %v2261 = vmul.f32 %v524, %v1364
        %v2262 = vmul.f32 %v525, %v1371
        %v2263 = vmul.f32 %v526, %v1375
        %v2264 = vmul.f32 %v527, %v1379
        %v2265 = vmul.f32 %v528, %v1383
        %v2266 = vmul.f32 %v529, %v1390
        %v2267 = vmul.f32 %v530, %v1394
        %v2268 = vmul.f32 %v531, %v1398
        %v2269 = vmul.f32 %v532, %v1402
        %v2270 = vmul.f32 %v533, %v1409
        %v2271 = vmul.f32 %v534, %v1413
        %v2272 = vmul.f32 %v535, %v1417
        %v2273 = vmul.f32 %v536, %v1421
        %v2274 = vmul.f32 %v537, %v1428
        %v2275 = vmul.f32 %v538, %v1432
        %v2276 = vmul.f32 %v539, %v1436
        %v2277 = vmul.f32 %v540, %v1440
        %v2278 = vmul.f32 %v541, %v1447
        %v2279 = vmul.f32 %v542, %v1451
        %v2280 = vmul.f32 %v543, %v1455
        %v2281 = vmul.f32 %v544, %v1459
        %v2282 = vmul.f32 %v545, %v1466
        %v2283 = vmul.f32 %v546, %v1470
        %v2284 = vmul.f32 %v547, %v1474
        %v2285 = vmul.f32 %v548, %v1478
        %v2286 = vmul.f32 %v549, %v1485
        %v2287 = vmul.f32 %v550, %v1489
        %v2288 = vmul.f32 %v551, %v1493
        %v2289 = vmul.f32 %v552, %v1497
        %v2290 = vmul.f32 %v553, %v1504
        %v2291 = vmul.f32 %v554, %v1508
        %v2292 = vmul.f32 %v555, %v1512
        %v2293 = vmul.f32 %v556, %v1516
        %v2294 = vmul.f32 %v557, %v1523
        %v2295 = vmul.f32 %v558, %v1527
        %v2296 = vmul.f32 %v559, %v1531
        %v2297 = vmul.f32 %v560, %v1535
        %v2298 = vmul.f32 %v561, %v1542
        %v2299 = vmul.f32 %v562, %v1546
        %v2300 = vmul.f32 %v563, %v1550
        %v2301 = vmul.f32 %v564, %v1554
        %v2302 = vmul.f32 %v565, %v1561
        %v2303 = vmul.f32 %v566, %v1565
        %v2304 = vmul.f32 %v567, %v1569
        %v2305 = vmul.f32 %v568, %v1573
        %v2306 = vmul.f32 %v569, %v1580
        %v2307 = vmul.f32 %v570, %v1584
        %v2308 = vmul.f32 %v571, %v1588
        %v2309 = vmul.f32 %v572, %v1592
        %v2310 = vmul.f32 %v573, %v1599
        %v2311 = vmul.f32 %v574, %v1603
        %v2312 = vmul.f32 %v575, %v1607
        %v2313 = vmul.f32 %v576, %v1611
        %v2314 = vmul.f32 %v577, %v1618
        %v2315 = vmul.f32 %v578, %v1622
        %v2316 = vmul.f32 %v579, %v1626
        %v2317 = vmul.f32 %v580, %v1630
        %v2318 = vmul.f32 %v581, %v1637
        %v2319 = vmul.f32 %v582, %v1641
        %v2320 = vmul.f32 %v583, %v1645
        %v2321 = vmul.f32 %v584, %v1649
        %v2322 = vmul.f32 %v585, %v1656
        %v2323 = vmul.f32 %v586, %v1660
        %v2324 = vmul.f32 %v587, %v1664
        %v2325 = vmul.f32 %v588, %v1668
        %v2326 = vmul.f32 %v589, %v1675
        %v2327 = vmul.f32 %v590, %v1679
        %v2328 = vmul.f32 %v591, %v1683
        %v2329 = vmul.f32 %v592, %v1687
        %v2330 = vmul.f32 %v593, %v1694
        %v2331 = vmul.f32 %v594, %v1698
        %v2332 = vmul.f32 %v595, %v1702
        %v2333 = vmul.f32 %v596, %v1706
        %v2334 = vmul.f32 %v597, %v1713
        %v2335 = vmul.f32 %v598, %v1717
        %v2336 = vmul.f32 %v599, %v1721
        %v2337 = vmul.f32 %v600, %v1725
        %v2338 = vmul.f32 %v601, %v1732
        %v2339 = vmul.f32 %v602, %v1736
        %v2340 = vmul.f32 %v603, %v1740
        %v2341 = vmul.f32 %v604, %v1744
        %v2342 = vmul.f32 %v605, %v1751
        %v2343 = vmul.f32 %v606, %v1755
        %v2344 = vmul.f32 %v607, %v1759
        %v2345 = vmul.f32 %v608, %v1763
        %v2346 = vmul.f32 %v609, %v1770
        %v2347 = vmul.f32 %v610, %v1774
        %v2348 = vmul.f32 %v611, %v1778
        %v2349 = vmul.f32 %v612, %v1782
        %v2350 = vmul.f32 %v613, %v1789
        %v2351 = vmul.f32 %v614, %v1793
        %v2352 = vmul.f32 %v615, %v1797
        %v2353 = vmul.f32 %v616, %v1801
        %v2354 = vmul.f32 %v617, %v1808
        %v2355 = vmul.f32 %v618, %v1812
        %v2356 = vmul.f32 %v619, %v1816
        %v2357 = vmul.f32 %v620, %v1820
        %v2358 = vmul.f32 %v621, %v1827
        %v2359 = vmul.f32 %v622, %v1831
        %v2360 = vmul.f32 %v623, %v1835
        %v2361 = vmul.f32 %v624, %v1839
        %v2362 = vmul.f32 %v625, %v1846
        %v2363 = vmul.f32 %v626, %v1850
        %v2364 = vmul.f32 %v627, %v1854
        %v2365 = vmul.f32 %v628, %v1858
        %v2366 = vmul.f32 %v629, %v1865
        %v2367 = vmul.f32 %v630, %v1869
        %v2368 = vmul.f32 %v631, %v1873
        %v2369 = vmul.f32 %v632, %v1877
        %v2370 = vmul.f32 %v633, %v1884
        %v2371 = vmul.f32 %v634, %v1888
        %v2372 = vmul.f32 %v635, %v1892
        %v2373 = vmul.f32 %v636, %v1896
        %v2374 = vmul.f32 %v637, %v1903
        %v2375 = vmul.f32 %v638, %v1907
        %v2376 = vmul.f32 %v639, %v1911
        %v2377 = vmul.f32 %v640, %v1915
        %v2378 = vmul.f32 %v641, %v1922
        %v2379 = vmul.f32 %v642, %v1926
        %v2380 = vmul.f32 %v643, %v1930
        %v2381 = vmul.f32 %v644, %v1934
        %v2382 = vmul.f32 %v645, %v1941
        %v2383 = vmul.f32 %v646, %v1945
        %v2384 = vmul.f32 %v647, %v1949
        %v2385 = vmul.f32 %v648, %v1953
        %v2386 = vmul.f32 %v649, %v1960
        %v2387 = vmul.f32 %v650, %v1964
        %v2388 = vmul.f32 %v651, %v1968
        %v2389 = vmul.f32 %v652, %v1972
        %v2390 = vmul.f32 %v653, %v1979
        %v2391 = vmul.f32 %v654, %v1983
        %v2392 = vmul.f32 %v655, %v1987
        %v2393 = vmul.f32 %v656, %v1991
        %v2394 = vmul.f32 %v657, %v1998
        %v2395 = vmul.f32 %v658, %v2002
        %v2396 = vmul.f32 %v659, %v2006
        %v2397 = vmul.f32 %v660, %v2010
        %v2398 = vmul.f32 %v661, %v2017
        %v2399 = vmul.f32 %v662, %v2021
        %v2400 = vmul.f32 %v663, %v2025
        %v2401 = vmul.f32 %v664, %v2029
        %v2402 = vmul.f32 %v665, %v2036
        %v2403 = vmul.f32 %v666, %v2040
        %v2404 = vmul.f32 %v667, %v2044
        %v2405 = vmul.f32 %v668, %v2048
        %v2406 = vmul.f32 %v669, %v2055
        %v2407 = vmul.f32 %v670, %v2059
        %v2408 = vmul.f32 %v671, %v2063
        %v2409 = vmul.f32 %v672, %v2067
        %v2410 = vmul.f32 %v673, %v2074
        %v2411 = vmul.f32 %v674, %v2078
        %v2412 = vmul.f32 %v675, %v2082
        %v2413 = vmul.f32 %v676, %v2086
        %v2414 = vmul.f32 %v677, %v2093
        %v2415 = vmul.f32 %v678, %v2097
        %v2416 = vmul.f32 %v679, %v2101
        %v2417 = vmul.f32 %v680, %v2105
        %v2418 = vmul.f32 %v681, %v2112
        %v2419 = vmul.f32 %v682, %v2116
        %v2420 = vmul.f32 %v683, %v2120
        %v2421 = vmul.f32 %v684, %v2124
        %v2422 = vmul.f32 %v685, %v2131
        %v2423 = vmul.f32 %v686, %v2135
        %v2424 = vmul.f32 %v687, %v2139
        %v2425 = vmul.f32 %v688, %v2143
        %v2426 = vmul.f32 %v689, %v2150
        %v2427 = vmul.f32 %v690, %v2154
        %v2428 = vmul.f32 %v691, %v2158
        %v2429 = vmul.f32 %v692, %v2162
        %v2430 = vmul.f32 %v693, %v2169
        %v2431 = vmul.f32 %v694, %v2173
        %v2432 = vmul.f32 %v695, %v2177
        %v2433 = vmul.f32 %v696, %v2181
        %v2434 = vmul.f32 %v697, %v2188
        %v2435 = vmul.f32 %v698, %v2192
        %v2436 = vmul.f32 %v699, %v2196
        %v2437 = vmul.f32 %v700, %v2200
        %v2438 = vmul.f32 %v701, %v2207
        %v2439 = vmul.f32 %v702, %v2211
        %v2440 = vmul.f32 %v703, %v2215
        %v2441 = vmul.f32 %v704, %v2219
        %v2442 = vmul.f32 %v705, %v2226
        %v2443 = vmul.f32 %v706, %v2230
        %v2444 = vmul.f32 %v707, %v2234
        %v2445 = vmul.f32 %v708, %v2238
        %v2446 = vmul.f32 %v709, %v2245
        %v2447 = vmul.f32 %v710, %v2249
        %v2448 = vmul.f32 %v711, %v2253
        %v2449 = vmul.f32 %v712, %v2257
        %vm2450 = vcmask 457728
        %v2451 = vsel %vm2450, %v2258, 0.0
        %v2452 = vsel %vm2450, %v2259, 0.0
        %v2453 = vadd.f32 %v2451, %v2452
        %v2454 = vsel %vm2450, %v2260, 0.0
        %v2455 = vadd.f32 %v2453, %v2454
        %v2456 = vsel %vm2450, %v2261, 0.0
        %v2457 = vadd.f32 %v2455, %v2456
        %v2458 = vrot.slane %v2457, 4
        %v2459 = vadd.f32 %v2457, %v2458
        %v2460 = vrot.slane %v2459, 2
        %v2461 = vadd.f32 %v2459, %v2460
        %v2462 = vrot.slane %v2461, 1
        %v2463 = vadd.f32 %v2461, %v2462
        %v2464 = vsel %vm2450, %v2262, 0.0
        %v2465 = vsel %vm2450, %v2263, 0.0
        %v2466 = vadd.f32 %v2464, %v2465
        %v2467 = vsel %vm2450, %v2264, 0.0
        %v2468 = vadd.f32 %v2466, %v2467
        %v2469 = vsel %vm2450, %v2265, 0.0
        %v2470 = vadd.f32 %v2468, %v2469
        %v2471 = vrot.slane %v2470, 4
        %v2472 = vadd.f32 %v2470, %v2471
        %v2473 = vrot.slane %v2472, 2
        %v2474 = vadd.f32 %v2472, %v2473
        %v2475 = vrot.slane %v2474, 1
        %v2476 = vadd.f32 %v2474, %v2475
        %v2477 = vsel %vm2450, %v2266, 0.0
        %v2478 = vsel %vm2450, %v2267, 0.0
        %v2479 = vadd.f32 %v2477, %v2478
        %v2480 = vsel %vm2450, %v2268, 0.0
        %v2481 = vadd.f32 %v2479, %v2480
        %v2482 = vsel %vm2450, %v2269, 0.0
        %v2483 = vadd.f32 %v2481, %v2482
        %v2484 = vrot.slane %v2483, 4
        %v2485 = vadd.f32 %v2483, %v2484
        %v2486 = vrot.slane %v2485, 2
        %v2487 = vadd.f32 %v2485, %v2486
        %v2488 = vrot.slane %v2487, 1
        %v2489 = vadd.f32 %v2487, %v2488
        %v2490 = vsel %vm2450, %v2270, 0.0
        %v2491 = vsel %vm2450, %v2271, 0.0
        %v2492 = vadd.f32 %v2490, %v2491
        %v2493 = vsel %vm2450, %v2272, 0.0
        %v2494 = vadd.f32 %v2492, %v2493
        %v2495 = vsel %vm2450, %v2273, 0.0
        %v2496 = vadd.f32 %v2494, %v2495
        %v2497 = vrot.slane %v2496, 4
        %v2498 = vadd.f32 %v2496, %v2497
        %v2499 = vrot.slane %v2498, 2
        %v2500 = vadd.f32 %v2498, %v2499
        %v2501 = vrot.slane %v2500, 1
        %v2502 = vadd.f32 %v2500, %v2501
        %v2503 = vsel %vm2450, %v2274, 0.0
        %v2504 = vsel %vm2450, %v2275, 0.0
        %v2505 = vadd.f32 %v2503, %v2504
        %v2506 = vsel %vm2450, %v2276, 0.0
        %v2507 = vadd.f32 %v2505, %v2506
        %v2508 = vsel %vm2450, %v2277, 0.0
        %v2509 = vadd.f32 %v2507, %v2508
        %v2510 = vrot.slane %v2509, 4
        %v2511 = vadd.f32 %v2509, %v2510
        %v2512 = vrot.slane %v2511, 2
        %v2513 = vadd.f32 %v2511, %v2512
        %v2514 = vrot.slane %v2513, 1
        %v2515 = vadd.f32 %v2513, %v2514
        %v2516 = vsel %vm2450, %v2278, 0.0
        %v2517 = vsel %vm2450, %v2279, 0.0
        %v2518 = vadd.f32 %v2516, %v2517
        %v2519 = vsel %vm2450, %v2280, 0.0
        %v2520 = vadd.f32 %v2518, %v2519
        %v2521 = vsel %vm2450, %v2281, 0.0
        %v2522 = vadd.f32 %v2520, %v2521
        %v2523 = vrot.slane %v2522, 4
        %v2524 = vadd.f32 %v2522, %v2523
        %v2525 = vrot.slane %v2524, 2
        %v2526 = vadd.f32 %v2524, %v2525
        %v2527 = vrot.slane %v2526, 1
        %v2528 = vadd.f32 %v2526, %v2527
        %v2529 = vsel %vm2450, %v2282, 0.0
        %v2530 = vsel %vm2450, %v2283, 0.0
        %v2531 = vadd.f32 %v2529, %v2530
        %v2532 = vsel %vm2450, %v2284, 0.0
        %v2533 = vadd.f32 %v2531, %v2532
        %v2534 = vsel %vm2450, %v2285, 0.0
        %v2535 = vadd.f32 %v2533, %v2534
        %v2536 = vrot.slane %v2535, 4
        %v2537 = vadd.f32 %v2535, %v2536
        %v2538 = vrot.slane %v2537, 2
        %v2539 = vadd.f32 %v2537, %v2538
        %v2540 = vrot.slane %v2539, 1
        %v2541 = vadd.f32 %v2539, %v2540
        %v2542 = vsel %vm2450, %v2286, 0.0
        %v2543 = vsel %vm2450, %v2287, 0.0
        %v2544 = vadd.f32 %v2542, %v2543
        %v2545 = vsel %vm2450, %v2288, 0.0
        %v2546 = vadd.f32 %v2544, %v2545
        %v2547 = vsel %vm2450, %v2289, 0.0
        %v2548 = vadd.f32 %v2546, %v2547
        %v2549 = vrot.slane %v2548, 4
        %v2550 = vadd.f32 %v2548, %v2549
        %v2551 = vrot.slane %v2550, 2
        %v2552 = vadd.f32 %v2550, %v2551
        %v2553 = vrot.slane %v2552, 1
        %v2554 = vadd.f32 %v2552, %v2553
        %v2555 = vsel %vm2450, %v2290, 0.0
        %v2556 = vsel %vm2450, %v2291, 0.0
        %v2557 = vadd.f32 %v2555, %v2556
        %v2558 = vsel %vm2450, %v2292, 0.0
        %v2559 = vadd.f32 %v2557, %v2558
        %v2560 = vsel %vm2450, %v2293, 0.0
        %v2561 = vadd.f32 %v2559, %v2560
        %v2562 = vrot.slane %v2561, 4
        %v2563 = vadd.f32 %v2561, %v2562
        %v2564 = vrot.slane %v2563, 2
        %v2565 = vadd.f32 %v2563, %v2564
        %v2566 = vrot.slane %v2565, 1
        %v2567 = vadd.f32 %v2565, %v2566
        %v2568 = vsel %vm2450, %v2294, 0.0
        %v2569 = vsel %vm2450, %v2295, 0.0
        %v2570 = vadd.f32 %v2568, %v2569
        %v2571 = vsel %vm2450, %v2296, 0.0
        %v2572 = vadd.f32 %v2570, %v2571
        %v2573 = vsel %vm2450, %v2297, 0.0
        %v2574 = vadd.f32 %v2572, %v2573
        %v2575 = vrot.slane %v2574, 4
        %v2576 = vadd.f32 %v2574, %v2575
        %v2577 = vrot.slane %v2576, 2
        %v2578 = vadd.f32 %v2576, %v2577
        %v2579 = vrot.slane %v2578, 1
        %v2580 = vadd.f32 %v2578, %v2579
        %v2581 = vsel %vm2450, %v2298, 0.0
        %v2582 = vsel %vm2450, %v2299, 0.0
        %v2583 = vadd.f32 %v2581, %v2582
        %v2584 = vsel %vm2450, %v2300, 0.0
        %v2585 = vadd.f32 %v2583, %v2584
        %v2586 = vsel %vm2450, %v2301, 0.0
        %v2587 = vadd.f32 %v2585, %v2586
        %v2588 = vrot.slane %v2587, 4
        %v2589 = vadd.f32 %v2587, %v2588
        %v2590 = vrot.slane %v2589, 2
        %v2591 = vadd.f32 %v2589, %v2590
        %v2592 = vrot.slane %v2591, 1
        %v2593 = vadd.f32 %v2591, %v2592
        %v2594 = vsel %vm2450, %v2302, 0.0
        %v2595 = vsel %vm2450, %v2303, 0.0
        %v2596 = vadd.f32 %v2594, %v2595
        %v2597 = vsel %vm2450, %v2304, 0.0
        %v2598 = vadd.f32 %v2596, %v2597
        %v2599 = vsel %vm2450, %v2305, 0.0
        %v2600 = vadd.f32 %v2598, %v2599
        %v2601 = vrot.slane %v2600, 4
        %v2602 = vadd.f32 %v2600, %v2601
        %v2603 = vrot.slane %v2602, 2
        %v2604 = vadd.f32 %v2602, %v2603
        %v2605 = vrot.slane %v2604, 1
        %v2606 = vadd.f32 %v2604, %v2605
        %v2607 = vsel %vm2450, %v2306, 0.0
        %v2608 = vsel %vm2450, %v2307, 0.0
        %v2609 = vadd.f32 %v2607, %v2608
        %v2610 = vsel %vm2450, %v2308, 0.0
        %v2611 = vadd.f32 %v2609, %v2610
        %v2612 = vsel %vm2450, %v2309, 0.0
        %v2613 = vadd.f32 %v2611, %v2612
        %v2614 = vrot.slane %v2613, 4
        %v2615 = vadd.f32 %v2613, %v2614
        %v2616 = vrot.slane %v2615, 2
        %v2617 = vadd.f32 %v2615, %v2616
        %v2618 = vrot.slane %v2617, 1
        %v2619 = vadd.f32 %v2617, %v2618
        %v2620 = vsel %vm2450, %v2310, 0.0
        %v2621 = vsel %vm2450, %v2311, 0.0
        %v2622 = vadd.f32 %v2620, %v2621
        %v2623 = vsel %vm2450, %v2312, 0.0
        %v2624 = vadd.f32 %v2622, %v2623
        %v2625 = vsel %vm2450, %v2313, 0.0
        %v2626 = vadd.f32 %v2624, %v2625
        %v2627 = vrot.slane %v2626, 4
        %v2628 = vadd.f32 %v2626, %v2627
        %v2629 = vrot.slane %v2628, 2
        %v2630 = vadd.f32 %v2628, %v2629
        %v2631 = vrot.slane %v2630, 1
        %v2632 = vadd.f32 %v2630, %v2631
        %v2633 = vsel %vm2450, %v2314, 0.0
        %v2634 = vsel %vm2450, %v2315, 0.0
        %v2635 = vadd.f32 %v2633, %v2634
        %v2636 = vsel %vm2450, %v2316, 0.0
        %v2637 = vadd.f32 %v2635, %v2636
        %v2638 = vsel %vm2450, %v2317, 0.0
        %v2639 = vadd.f32 %v2637, %v2638
        %v2640 = vrot.slane %v2639, 4
        %v2641 = vadd.f32 %v2639, %v2640
        %v2642 = vrot.slane %v2641, 2
        %v2643 = vadd.f32 %v2641, %v2642
        %v2644 = vrot.slane %v2643, 1
        %v2645 = vadd.f32 %v2643, %v2644
        %v2646 = vsel %vm2450, %v2318, 0.0
        %v2647 = vsel %vm2450, %v2319, 0.0
        %v2648 = vadd.f32 %v2646, %v2647
        %v2649 = vsel %vm2450, %v2320, 0.0
        %v2650 = vadd.f32 %v2648, %v2649
        %v2651 = vsel %vm2450, %v2321, 0.0
        %v2652 = vadd.f32 %v2650, %v2651
        %v2653 = vrot.slane %v2652, 4
        %v2654 = vadd.f32 %v2652, %v2653
        %v2655 = vrot.slane %v2654, 2
        %v2656 = vadd.f32 %v2654, %v2655
        %v2657 = vrot.slane %v2656, 1
        %v2658 = vadd.f32 %v2656, %v2657
        %v2659 = vsel %vm2450, %v2322, 0.0
        %v2660 = vsel %vm2450, %v2323, 0.0
        %v2661 = vadd.f32 %v2659, %v2660
        %v2662 = vsel %vm2450, %v2324, 0.0
        %v2663 = vadd.f32 %v2661, %v2662
        %v2664 = vsel %vm2450, %v2325, 0.0
        %v2665 = vadd.f32 %v2663, %v2664
        %v2666 = vrot.slane %v2665, 4
        %v2667 = vadd.f32 %v2665, %v2666
        %v2668 = vrot.slane %v2667, 2
        %v2669 = vadd.f32 %v2667, %v2668
        %v2670 = vrot.slane %v2669, 1
        %v2671 = vadd.f32 %v2669, %v2670
        %v2672 = vsel %vm2450, %v2326, 0.0
        %v2673 = vsel %vm2450, %v2327, 0.0
        %v2674 = vadd.f32 %v2672, %v2673
        %v2675 = vsel %vm2450, %v2328, 0.0
        %v2676 = vadd.f32 %v2674, %v2675
        %v2677 = vsel %vm2450, %v2329, 0.0
        %v2678 = vadd.f32 %v2676, %v2677
        %v2679 = vrot.slane %v2678, 4
        %v2680 = vadd.f32 %v2678, %v2679
        %v2681 = vrot.slane %v2680, 2
        %v2682 = vadd.f32 %v2680, %v2681
        %v2683 = vrot.slane %v2682, 1
        %v2684 = vadd.f32 %v2682, %v2683
        %v2685 = vsel %vm2450, %v2330, 0.0
        %v2686 = vsel %vm2450, %v2331, 0.0
        %v2687 = vadd.f32 %v2685, %v2686
        %v2688 = vsel %vm2450, %v2332, 0.0
        %v2689 = vadd.f32 %v2687, %v2688
        %v2690 = vsel %vm2450, %v2333, 0.0
        %v2691 = vadd.f32 %v2689, %v2690
        %v2692 = vrot.slane %v2691, 4
        %v2693 = vadd.f32 %v2691, %v2692
        %v2694 = vrot.slane %v2693, 2
        %v2695 = vadd.f32 %v2693, %v2694
        %v2696 = vrot.slane %v2695, 1
        %v2697 = vadd.f32 %v2695, %v2696
        %v2698 = vsel %vm2450, %v2334, 0.0
        %v2699 = vsel %vm2450, %v2335, 0.0
        %v2700 = vadd.f32 %v2698, %v2699
        %v2701 = vsel %vm2450, %v2336, 0.0
        %v2702 = vadd.f32 %v2700, %v2701
        %v2703 = vsel %vm2450, %v2337, 0.0
        %v2704 = vadd.f32 %v2702, %v2703
        %v2705 = vrot.slane %v2704, 4
        %v2706 = vadd.f32 %v2704, %v2705
        %v2707 = vrot.slane %v2706, 2
        %v2708 = vadd.f32 %v2706, %v2707
        %v2709 = vrot.slane %v2708, 1
        %v2710 = vadd.f32 %v2708, %v2709
        %v2711 = vsel %vm2450, %v2338, 0.0
        %v2712 = vsel %vm2450, %v2339, 0.0
        %v2713 = vadd.f32 %v2711, %v2712
        %v2714 = vsel %vm2450, %v2340, 0.0
        %v2715 = vadd.f32 %v2713, %v2714
        %v2716 = vsel %vm2450, %v2341, 0.0
        %v2717 = vadd.f32 %v2715, %v2716
        %v2718 = vrot.slane %v2717, 4
        %v2719 = vadd.f32 %v2717, %v2718
        %v2720 = vrot.slane %v2719, 2
        %v2721 = vadd.f32 %v2719, %v2720
        %v2722 = vrot.slane %v2721, 1
        %v2723 = vadd.f32 %v2721, %v2722
        %v2724 = vsel %vm2450, %v2342, 0.0
        %v2725 = vsel %vm2450, %v2343, 0.0
        %v2726 = vadd.f32 %v2724, %v2725
        %v2727 = vsel %vm2450, %v2344, 0.0
        %v2728 = vadd.f32 %v2726, %v2727
        %v2729 = vsel %vm2450, %v2345, 0.0
        %v2730 = vadd.f32 %v2728, %v2729
        %v2731 = vrot.slane %v2730, 4
        %v2732 = vadd.f32 %v2730, %v2731
        %v2733 = vrot.slane %v2732, 2
        %v2734 = vadd.f32 %v2732, %v2733
        %v2735 = vrot.slane %v2734, 1
        %v2736 = vadd.f32 %v2734, %v2735
        %v2737 = vsel %vm2450, %v2346, 0.0
        %v2738 = vsel %vm2450, %v2347, 0.0
        %v2739 = vadd.f32 %v2737, %v2738
        %v2740 = vsel %vm2450, %v2348, 0.0
        %v2741 = vadd.f32 %v2739, %v2740
        %v2742 = vsel %vm2450, %v2349, 0.0
        %v2743 = vadd.f32 %v2741, %v2742
        %v2744 = vrot.slane %v2743, 4
        %v2745 = vadd.f32 %v2743, %v2744
        %v2746 = vrot.slane %v2745, 2
        %v2747 = vadd.f32 %v2745, %v2746
        %v2748 = vrot.slane %v2747, 1
        %v2749 = vadd.f32 %v2747, %v2748
        %v2750 = vsel %vm2450, %v2350, 0.0
        %v2751 = vsel %vm2450, %v2351, 0.0
        %v2752 = vadd.f32 %v2750, %v2751
        %v2753 = vsel %vm2450, %v2352, 0.0
        %v2754 = vadd.f32 %v2752, %v2753
        %v2755 = vsel %vm2450, %v2353, 0.0
        %v2756 = vadd.f32 %v2754, %v2755
        %v2757 = vrot.slane %v2756, 4
        %v2758 = vadd.f32 %v2756, %v2757
        %v2759 = vrot.slane %v2758, 2
        %v2760 = vadd.f32 %v2758, %v2759
        %v2761 = vrot.slane %v2760, 1
        %v2762 = vadd.f32 %v2760, %v2761
        %v2763 = vsel %vm2450, %v2354, 0.0
        %v2764 = vsel %vm2450, %v2355, 0.0
        %v2765 = vadd.f32 %v2763, %v2764
        %v2766 = vsel %vm2450, %v2356, 0.0
        %v2767 = vadd.f32 %v2765, %v2766
        %v2768 = vsel %vm2450, %v2357, 0.0
        %v2769 = vadd.f32 %v2767, %v2768
        %v2770 = vrot.slane %v2769, 4
        %v2771 = vadd.f32 %v2769, %v2770
        %v2772 = vrot.slane %v2771, 2
        %v2773 = vadd.f32 %v2771, %v2772
        %v2774 = vrot.slane %v2773, 1
        %v2775 = vadd.f32 %v2773, %v2774
        %v2776 = vsel %vm2450, %v2358, 0.0
        %v2777 = vsel %vm2450, %v2359, 0.0
        %v2778 = vadd.f32 %v2776, %v2777
        %v2779 = vsel %vm2450, %v2360, 0.0
        %v2780 = vadd.f32 %v2778, %v2779
        %v2781 = vsel %vm2450, %v2361, 0.0
        %v2782 = vadd.f32 %v2780, %v2781
        %v2783 = vrot.slane %v2782, 4
        %v2784 = vadd.f32 %v2782, %v2783
        %v2785 = vrot.slane %v2784, 2
        %v2786 = vadd.f32 %v2784, %v2785
        %v2787 = vrot.slane %v2786, 1
        %v2788 = vadd.f32 %v2786, %v2787
        %v2789 = vsel %vm2450, %v2362, 0.0
        %v2790 = vsel %vm2450, %v2363, 0.0
        %v2791 = vadd.f32 %v2789, %v2790
        %v2792 = vsel %vm2450, %v2364, 0.0
        %v2793 = vadd.f32 %v2791, %v2792
        %v2794 = vsel %vm2450, %v2365, 0.0
        %v2795 = vadd.f32 %v2793, %v2794
        %v2796 = vrot.slane %v2795, 4
        %v2797 = vadd.f32 %v2795, %v2796
        %v2798 = vrot.slane %v2797, 2
        %v2799 = vadd.f32 %v2797, %v2798
        %v2800 = vrot.slane %v2799, 1
        %v2801 = vadd.f32 %v2799, %v2800
        %v2802 = vsel %vm2450, %v2366, 0.0
        %v2803 = vsel %vm2450, %v2367, 0.0
        %v2804 = vadd.f32 %v2802, %v2803
        %v2805 = vsel %vm2450, %v2368, 0.0
        %v2806 = vadd.f32 %v2804, %v2805
        %v2807 = vsel %vm2450, %v2369, 0.0
        %v2808 = vadd.f32 %v2806, %v2807
        %v2809 = vrot.slane %v2808, 4
        %v2810 = vadd.f32 %v2808, %v2809
        %v2811 = vrot.slane %v2810, 2
        %v2812 = vadd.f32 %v2810, %v2811
        %v2813 = vrot.slane %v2812, 1
        %v2814 = vadd.f32 %v2812, %v2813
        %v2815 = vsel %vm2450, %v2370, 0.0
        %v2816 = vsel %vm2450, %v2371, 0.0
        %v2817 = vadd.f32 %v2815, %v2816
        %v2818 = vsel %vm2450, %v2372, 0.0
        %v2819 = vadd.f32 %v2817, %v2818
        %v2820 = vsel %vm2450, %v2373, 0.0
        %v2821 = vadd.f32 %v2819, %v2820
        %v2822 = vrot.slane %v2821, 4
        %v2823 = vadd.f32 %v2821, %v2822
        %v2824 = vrot.slane %v2823, 2
        %v2825 = vadd.f32 %v2823, %v2824
        %v2826 = vrot.slane %v2825, 1
        %v2827 = vadd.f32 %v2825, %v2826
        %v2828 = vsel %vm2450, %v2374, 0.0
        %v2829 = vsel %vm2450, %v2375, 0.0
        %v2830 = vadd.f32 %v2828, %v2829
        %v2831 = vsel %vm2450, %v2376, 0.0
        %v2832 = vadd.f32 %v2830, %v2831
        %v2833 = vsel %vm2450, %v2377, 0.0
        %v2834 = vadd.f32 %v2832, %v2833
        %v2835 = vrot.slane %v2834, 4
        %v2836 = vadd.f32 %v2834, %v2835
        %v2837 = vrot.slane %v2836, 2
        %v2838 = vadd.f32 %v2836, %v2837
        %v2839 = vrot.slane %v2838, 1
        %v2840 = vadd.f32 %v2838, %v2839
        %v2841 = vsel %vm2450, %v2378, 0.0
        %v2842 = vsel %vm2450, %v2379, 0.0
        %v2843 = vadd.f32 %v2841, %v2842
        %v2844 = vsel %vm2450, %v2380, 0.0
        %v2845 = vadd.f32 %v2843, %v2844
        %v2846 = vsel %vm2450, %v2381, 0.0
        %v2847 = vadd.f32 %v2845, %v2846
        %v2848 = vrot.slane %v2847, 4
        %v2849 = vadd.f32 %v2847, %v2848
        %v2850 = vrot.slane %v2849, 2
        %v2851 = vadd.f32 %v2849, %v2850
        %v2852 = vrot.slane %v2851, 1
        %v2853 = vadd.f32 %v2851, %v2852
        %v2854 = vsel %vm2450, %v2382, 0.0
        %v2855 = vsel %vm2450, %v2383, 0.0
        %v2856 = vadd.f32 %v2854, %v2855
        %v2857 = vsel %vm2450, %v2384, 0.0
        %v2858 = vadd.f32 %v2856, %v2857
        %v2859 = vsel %vm2450, %v2385, 0.0
        %v2860 = vadd.f32 %v2858, %v2859
        %v2861 = vrot.slane %v2860, 4
        %v2862 = vadd.f32 %v2860, %v2861
        %v2863 = vrot.slane %v2862, 2
        %v2864 = vadd.f32 %v2862, %v2863
        %v2865 = vrot.slane %v2864, 1
        %v2866 = vadd.f32 %v2864, %v2865
        %v2867 = vsel %vm2450, %v2386, 0.0
        %v2868 = vsel %vm2450, %v2387, 0.0
        %v2869 = vadd.f32 %v2867, %v2868
        %v2870 = vsel %vm2450, %v2388, 0.0
        %v2871 = vadd.f32 %v2869, %v2870
        %v2872 = vsel %vm2450, %v2389, 0.0
        %v2873 = vadd.f32 %v2871, %v2872
        %v2874 = vrot.slane %v2873, 4
        %v2875 = vadd.f32 %v2873, %v2874
        %v2876 = vrot.slane %v2875, 2
        %v2877 = vadd.f32 %v2875, %v2876
        %v2878 = vrot.slane %v2877, 1
        %v2879 = vadd.f32 %v2877, %v2878
        %v2880 = vsel %vm2450, %v2390, 0.0
        %v2881 = vsel %vm2450, %v2391, 0.0
        %v2882 = vadd.f32 %v2880, %v2881
        %v2883 = vsel %vm2450, %v2392, 0.0
        %v2884 = vadd.f32 %v2882, %v2883
        %v2885 = vsel %vm2450, %v2393, 0.0
        %v2886 = vadd.f32 %v2884, %v2885
        %v2887 = vrot.slane %v2886, 4
        %v2888 = vadd.f32 %v2886, %v2887
        %v2889 = vrot.slane %v2888, 2
        %v2890 = vadd.f32 %v2888, %v2889
        %v2891 = vrot.slane %v2890, 1
        %v2892 = vadd.f32 %v2890, %v2891
        %v2893 = vsel %vm2450, %v2394, 0.0
        %v2894 = vsel %vm2450, %v2395, 0.0
        %v2895 = vadd.f32 %v2893, %v2894
        %v2896 = vsel %vm2450, %v2396, 0.0
        %v2897 = vadd.f32 %v2895, %v2896
        %v2898 = vsel %vm2450, %v2397, 0.0
        %v2899 = vadd.f32 %v2897, %v2898
        %v2900 = vrot.slane %v2899, 4
        %v2901 = vadd.f32 %v2899, %v2900
        %v2902 = vrot.slane %v2901, 2
        %v2903 = vadd.f32 %v2901, %v2902
        %v2904 = vrot.slane %v2903, 1
        %v2905 = vadd.f32 %v2903, %v2904
        %v2906 = vsel %vm2450, %v2398, 0.0
        %v2907 = vsel %vm2450, %v2399, 0.0
        %v2908 = vadd.f32 %v2906, %v2907
        %v2909 = vsel %vm2450, %v2400, 0.0
        %v2910 = vadd.f32 %v2908, %v2909
        %v2911 = vsel %vm2450, %v2401, 0.0
        %v2912 = vadd.f32 %v2910, %v2911
        %v2913 = vrot.slane %v2912, 4
        %v2914 = vadd.f32 %v2912, %v2913
        %v2915 = vrot.slane %v2914, 2
        %v2916 = vadd.f32 %v2914, %v2915
        %v2917 = vrot.slane %v2916, 1
        %v2918 = vadd.f32 %v2916, %v2917
        %v2919 = vsel %vm2450, %v2402, 0.0
        %v2920 = vsel %vm2450, %v2403, 0.0
        %v2921 = vadd.f32 %v2919, %v2920
        %v2922 = vsel %vm2450, %v2404, 0.0
        %v2923 = vadd.f32 %v2921, %v2922
        %v2924 = vsel %vm2450, %v2405, 0.0
        %v2925 = vadd.f32 %v2923, %v2924
        %v2926 = vrot.slane %v2925, 4
        %v2927 = vadd.f32 %v2925, %v2926
        %v2928 = vrot.slane %v2927, 2
        %v2929 = vadd.f32 %v2927, %v2928
        %v2930 = vrot.slane %v2929, 1
        %v2931 = vadd.f32 %v2929, %v2930
        %v2932 = vsel %vm2450, %v2406, 0.0
        %v2933 = vsel %vm2450, %v2407, 0.0
        %v2934 = vadd.f32 %v2932, %v2933
        %v2935 = vsel %vm2450, %v2408, 0.0
        %v2936 = vadd.f32 %v2934, %v2935
        %v2937 = vsel %vm2450, %v2409, 0.0
        %v2938 = vadd.f32 %v2936, %v2937
        %v2939 = vrot.slane %v2938, 4
        %v2940 = vadd.f32 %v2938, %v2939
        %v2941 = vrot.slane %v2940, 2
        %v2942 = vadd.f32 %v2940, %v2941
        %v2943 = vrot.slane %v2942, 1
        %v2944 = vadd.f32 %v2942, %v2943
        %v2945 = vsel %vm2450, %v2410, 0.0
        %v2946 = vsel %vm2450, %v2411, 0.0
        %v2947 = vadd.f32 %v2945, %v2946
        %v2948 = vsel %vm2450, %v2412, 0.0
        %v2949 = vadd.f32 %v2947, %v2948
        %v2950 = vsel %vm2450, %v2413, 0.0
        %v2951 = vadd.f32 %v2949, %v2950
        %v2952 = vrot.slane %v2951, 4
        %v2953 = vadd.f32 %v2951, %v2952
        %v2954 = vrot.slane %v2953, 2
        %v2955 = vadd.f32 %v2953, %v2954
        %v2956 = vrot.slane %v2955, 1
        %v2957 = vadd.f32 %v2955, %v2956
        %v2958 = vsel %vm2450, %v2414, 0.0
        %v2959 = vsel %vm2450, %v2415, 0.0
        %v2960 = vadd.f32 %v2958, %v2959
        %v2961 = vsel %vm2450, %v2416, 0.0
        %v2962 = vadd.f32 %v2960, %v2961
        %v2963 = vsel %vm2450, %v2417, 0.0
        %v2964 = vadd.f32 %v2962, %v2963
        %v2965 = vrot.slane %v2964, 4
        %v2966 = vadd.f32 %v2964, %v2965
        %v2967 = vrot.slane %v2966, 2
        %v2968 = vadd.f32 %v2966, %v2967
        %v2969 = vrot.slane %v2968, 1
        %v2970 = vadd.f32 %v2968, %v2969
        %v2971 = vsel %vm2450, %v2418, 0.0
        %v2972 = vsel %vm2450, %v2419, 0.0
        %v2973 = vadd.f32 %v2971, %v2972
        %v2974 = vsel %vm2450, %v2420, 0.0
        %v2975 = vadd.f32 %v2973, %v2974
        %v2976 = vsel %vm2450, %v2421, 0.0
        %v2977 = vadd.f32 %v2975, %v2976
        %v2978 = vrot.slane %v2977, 4
        %v2979 = vadd.f32 %v2977, %v2978
        %v2980 = vrot.slane %v2979, 2
        %v2981 = vadd.f32 %v2979, %v2980
        %v2982 = vrot.slane %v2981, 1
        %v2983 = vadd.f32 %v2981, %v2982
        %v2984 = vsel %vm2450, %v2422, 0.0
        %v2985 = vsel %vm2450, %v2423, 0.0
        %v2986 = vadd.f32 %v2984, %v2985
        %v2987 = vsel %vm2450, %v2424, 0.0
        %v2988 = vadd.f32 %v2986, %v2987
        %v2989 = vsel %vm2450, %v2425, 0.0
        %v2990 = vadd.f32 %v2988, %v2989
        %v2991 = vrot.slane %v2990, 4
        %v2992 = vadd.f32 %v2990, %v2991
        %v2993 = vrot.slane %v2992, 2
        %v2994 = vadd.f32 %v2992, %v2993
        %v2995 = vrot.slane %v2994, 1
        %v2996 = vadd.f32 %v2994, %v2995
        %v2997 = vsel %vm2450, %v2426, 0.0
        %v2998 = vsel %vm2450, %v2427, 0.0
        %v2999 = vadd.f32 %v2997, %v2998
        %v3000 = vsel %vm2450, %v2428, 0.0
        %v3001 = vadd.f32 %v2999, %v3000
        %v3002 = vsel %vm2450, %v2429, 0.0
        %v3003 = vadd.f32 %v3001, %v3002
        %v3004 = vrot.slane %v3003, 4
        %v3005 = vadd.f32 %v3003, %v3004
        %v3006 = vrot.slane %v3005, 2
        %v3007 = vadd.f32 %v3005, %v3006
        %v3008 = vrot.slane %v3007, 1
        %v3009 = vadd.f32 %v3007, %v3008
        %v3010 = vsel %vm2450, %v2430, 0.0
        %v3011 = vsel %vm2450, %v2431, 0.0
        %v3012 = vadd.f32 %v3010, %v3011
        %v3013 = vsel %vm2450, %v2432, 0.0
        %v3014 = vadd.f32 %v3012, %v3013
        %v3015 = vsel %vm2450, %v2433, 0.0
        %v3016 = vadd.f32 %v3014, %v3015
        %v3017 = vrot.slane %v3016, 4
        %v3018 = vadd.f32 %v3016, %v3017
        %v3019 = vrot.slane %v3018, 2
        %v3020 = vadd.f32 %v3018, %v3019
        %v3021 = vrot.slane %v3020, 1
        %v3022 = vadd.f32 %v3020, %v3021
        %v3023 = vsel %vm2450, %v2434, 0.0
        %v3024 = vsel %vm2450, %v2435, 0.0
        %v3025 = vadd.f32 %v3023, %v3024
        %v3026 = vsel %vm2450, %v2436, 0.0
        %v3027 = vadd.f32 %v3025, %v3026
        %v3028 = vsel %vm2450, %v2437, 0.0
        %v3029 = vadd.f32 %v3027, %v3028
        %v3030 = vrot.slane %v3029, 4
        %v3031 = vadd.f32 %v3029, %v3030
        %v3032 = vrot.slane %v3031, 2
        %v3033 = vadd.f32 %v3031, %v3032
        %v3034 = vrot.slane %v3033, 1
        %v3035 = vadd.f32 %v3033, %v3034
        %v3036 = vsel %vm2450, %v2438, 0.0
        %v3037 = vsel %vm2450, %v2439, 0.0
        %v3038 = vadd.f32 %v3036, %v3037
        %v3039 = vsel %vm2450, %v2440, 0.0
        %v3040 = vadd.f32 %v3038, %v3039
        %v3041 = vsel %vm2450, %v2441, 0.0
        %v3042 = vadd.f32 %v3040, %v3041
        %v3043 = vrot.slane %v3042, 4
        %v3044 = vadd.f32 %v3042, %v3043
        %v3045 = vrot.slane %v3044, 2
        %v3046 = vadd.f32 %v3044, %v3045
        %v3047 = vrot.slane %v3046, 1
        %v3048 = vadd.f32 %v3046, %v3047
        %v3049 = vsel %vm2450, %v2442, 0.0
        %v3050 = vsel %vm2450, %v2443, 0.0
        %v3051 = vadd.f32 %v3049, %v3050
        %v3052 = vsel %vm2450, %v2444, 0.0
        %v3053 = vadd.f32 %v3051, %v3052
        %v3054 = vsel %vm2450, %v2445, 0.0
        %v3055 = vadd.f32 %v3053, %v3054
        %v3056 = vrot.slane %v3055, 4
        %v3057 = vadd.f32 %v3055, %v3056
        %v3058 = vrot.slane %v3057, 2
        %v3059 = vadd.f32 %v3057, %v3058
        %v3060 = vrot.slane %v3059, 1
        %v3061 = vadd.f32 %v3059, %v3060
        %v3062 = vsel %vm2450, %v2446, 0.0
        %v3063 = vsel %vm2450, %v2447, 0.0
        %v3064 = vadd.f32 %v3062, %v3063
        %v3065 = vsel %vm2450, %v2448, 0.0
        %v3066 = vadd.f32 %v3064, %v3065
        %v3067 = vsel %vm2450, %v2449, 0.0
        %v3068 = vadd.f32 %v3066, %v3067
        %v3069 = vrot.slane %v3068, 4
        %v3070 = vadd.f32 %v3068, %v3069
        %v3071 = vrot.slane %v3070, 2
        %v3072 = vadd.f32 %v3070, %v3071
        %v3073 = vrot.slane %v3072, 1
        %v3074 = vadd.f32 %v3072, %v3073
        %v3075 = vmul.f32 %v521, %v2463
        %v3076 = vmul.f32 %v522, %v2463
        %v3077 = vmul.f32 %v523, %v2463
        %v3078 = vmul.f32 %v524, %v2463
        %v3079 = vmul.f32 %v525, %v2476
        %v3080 = vmul.f32 %v526, %v2476
        %v3081 = vmul.f32 %v527, %v2476
        %v3082 = vmul.f32 %v528, %v2476
        %v3083 = vmul.f32 %v529, %v2489
        %v3084 = vmul.f32 %v530, %v2489
        %v3085 = vmul.f32 %v531, %v2489
        %v3086 = vmul.f32 %v532, %v2489
        %v3087 = vmul.f32 %v533, %v2502
        %v3088 = vmul.f32 %v534, %v2502
        %v3089 = vmul.f32 %v535, %v2502
        %v3090 = vmul.f32 %v536, %v2502
        %v3091 = vmul.f32 %v537, %v2515
        %v3092 = vmul.f32 %v538, %v2515
        %v3093 = vmul.f32 %v539, %v2515
        %v3094 = vmul.f32 %v540, %v2515
        %v3095 = vmul.f32 %v541, %v2528
        %v3096 = vmul.f32 %v542, %v2528
        %v3097 = vmul.f32 %v543, %v2528
        %v3098 = vmul.f32 %v544, %v2528
        %v3099 = vmul.f32 %v545, %v2541
        %v3100 = vmul.f32 %v546, %v2541
        %v3101 = vmul.f32 %v547, %v2541
        %v3102 = vmul.f32 %v548, %v2541
        %v3103 = vmul.f32 %v549, %v2554
        %v3104 = vmul.f32 %v550, %v2554
        %v3105 = vmul.f32 %v551, %v2554
        %v3106 = vmul.f32 %v552, %v2554
        %v3107 = vmul.f32 %v553, %v2567
        %v3108 = vmul.f32 %v554, %v2567
        %v3109 = vmul.f32 %v555, %v2567
        %v3110 = vmul.f32 %v556, %v2567
        %v3111 = vmul.f32 %v557, %v2580
        %v3112 = vmul.f32 %v558, %v2580
        %v3113 = vmul.f32 %v559, %v2580
        %v3114 = vmul.f32 %v560, %v2580
        %v3115 = vmul.f32 %v561, %v2593
        %v3116 = vmul.f32 %v562, %v2593
        %v3117 = vmul.f32 %v563, %v2593
        %v3118 = vmul.f32 %v564, %v2593
        %v3119 = vmul.f32 %v565, %v2606
        %v3120 = vmul.f32 %v566, %v2606
        %v3121 = vmul.f32 %v567, %v2606
        %v3122 = vmul.f32 %v568, %v2606
        %v3123 = vmul.f32 %v569, %v2619
        %v3124 = vmul.f32 %v570, %v2619
        %v3125 = vmul.f32 %v571, %v2619
        %v3126 = vmul.f32 %v572, %v2619
        %v3127 = vmul.f32 %v573, %v2632
        %v3128 = vmul.f32 %v574, %v2632
        %v3129 = vmul.f32 %v575, %v2632
        %v3130 = vmul.f32 %v576, %v2632
        %v3131 = vmul.f32 %v577, %v2645
        %v3132 = vmul.f32 %v578, %v2645
        %v3133 = vmul.f32 %v579, %v2645
        %v3134 = vmul.f32 %v580, %v2645
        %v3135 = vmul.f32 %v581, %v2658
        %v3136 = vmul.f32 %v582, %v2658
        %v3137 = vmul.f32 %v583, %v2658
        %v3138 = vmul.f32 %v584, %v2658
        %v3139 = vmul.f32 %v585, %v2671
        %v3140 = vmul.f32 %v586, %v2671
        %v3141 = vmul.f32 %v587, %v2671
        %v3142 = vmul.f32 %v588, %v2671
        %v3143 = vmul.f32 %v589, %v2684
        %v3144 = vmul.f32 %v590, %v2684
        %v3145 = vmul.f32 %v591, %v2684
        %v3146 = vmul.f32 %v592, %v2684
        %v3147 = vmul.f32 %v593, %v2697
        %v3148 = vmul.f32 %v594, %v2697
        %v3149 = vmul.f32 %v595, %v2697
        %v3150 = vmul.f32 %v596, %v2697
        %v3151 = vmul.f32 %v597, %v2710
        %v3152 = vmul.f32 %v598, %v2710
        %v3153 = vmul.f32 %v599, %v2710
        %v3154 = vmul.f32 %v600, %v2710
        %v3155 = vmul.f32 %v601, %v2723
        %v3156 = vmul.f32 %v602, %v2723
        %v3157 = vmul.f32 %v603, %v2723
        %v3158 = vmul.f32 %v604, %v2723
        %v3159 = vmul.f32 %v605, %v2736
        %v3160 = vmul.f32 %v606, %v2736
        %v3161 = vmul.f32 %v607, %v2736
        %v3162 = vmul.f32 %v608, %v2736
        %v3163 = vmul.f32 %v609, %v2749
        %v3164 = vmul.f32 %v610, %v2749
        %v3165 = vmul.f32 %v611, %v2749
        %v3166 = vmul.f32 %v612, %v2749
        %v3167 = vmul.f32 %v613, %v2762
        %v3168 = vmul.f32 %v614, %v2762
        %v3169 = vmul.f32 %v615, %v2762
        %v3170 = vmul.f32 %v616, %v2762
        %v3171 = vmul.f32 %v617, %v2775
        %v3172 = vmul.f32 %v618, %v2775
        %v3173 = vmul.f32 %v619, %v2775
        %v3174 = vmul.f32 %v620, %v2775
        %v3175 = vmul.f32 %v621, %v2788
        %v3176 = vmul.f32 %v622, %v2788
        %v3177 = vmul.f32 %v623, %v2788
        %v3178 = vmul.f32 %v624, %v2788
        %v3179 = vmul.f32 %v625, %v2801
        %v3180 = vmul.f32 %v626, %v2801
        %v3181 = vmul.f32 %v627, %v2801
        %v3182 = vmul.f32 %v628, %v2801
        %v3183 = vmul.f32 %v629, %v2814
        %v3184 = vmul.f32 %v630, %v2814
        %v3185 = vmul.f32 %v631, %v2814
        %v3186 = vmul.f32 %v632, %v2814
        %v3187 = vmul.f32 %v633, %v2827
        %v3188 = vmul.f32 %v634, %v2827
        %v3189 = vmul.f32 %v635, %v2827
        %v3190 = vmul.f32 %v636, %v2827
        %v3191 = vmul.f32 %v637, %v2840
        %v3192 = vmul.f32 %v638, %v2840
        %v3193 = vmul.f32 %v639, %v2840
        %v3194 = vmul.f32 %v640, %v2840
        %v3195 = vmul.f32 %v641, %v2853
        %v3196 = vmul.f32 %v642, %v2853
        %v3197 = vmul.f32 %v643, %v2853
        %v3198 = vmul.f32 %v644, %v2853
        %v3199 = vmul.f32 %v645, %v2866
        %v3200 = vmul.f32 %v646, %v2866
        %v3201 = vmul.f32 %v647, %v2866
        %v3202 = vmul.f32 %v648, %v2866
        %v3203 = vmul.f32 %v649, %v2879
        %v3204 = vmul.f32 %v650, %v2879
        %v3205 = vmul.f32 %v651, %v2879
        %v3206 = vmul.f32 %v652, %v2879
        %v3207 = vmul.f32 %v653, %v2892
        %v3208 = vmul.f32 %v654, %v2892
        %v3209 = vmul.f32 %v655, %v2892
        %v3210 = vmul.f32 %v656, %v2892
        %v3211 = vmul.f32 %v657, %v2905
        %v3212 = vmul.f32 %v658, %v2905
        %v3213 = vmul.f32 %v659, %v2905
        %v3214 = vmul.f32 %v660, %v2905
        %v3215 = vmul.f32 %v661, %v2918
        %v3216 = vmul.f32 %v662, %v2918
        %v3217 = vmul.f32 %v663, %v2918
        %v3218 = vmul.f32 %v664, %v2918
        %v3219 = vmul.f32 %v665, %v2931
        %v3220 = vmul.f32 %v666, %v2931
        %v3221 = vmul.f32 %v667, %v2931
        %v3222 = vmul.f32 %v668, %v2931
        %v3223 = vmul.f32 %v669, %v2944
        %v3224 = vmul.f32 %v670, %v2944
        %v3225 = vmul.f32 %v671, %v2944
        %v3226 = vmul.f32 %v672, %v2944
        %v3227 = vmul.f32 %v673, %v2957
        %v3228 = vmul.f32 %v674, %v2957
        %v3229 = vmul.f32 %v675, %v2957
        %v3230 = vmul.f32 %v676, %v2957
        %v3231 = vmul.f32 %v677, %v2970
        %v3232 = vmul.f32 %v678, %v2970
        %v3233 = vmul.f32 %v679, %v2970
        %v3234 = vmul.f32 %v680, %v2970
        %v3235 = vmul.f32 %v681, %v2983
        %v3236 = vmul.f32 %v682, %v2983
        %v3237 = vmul.f32 %v683, %v2983
        %v3238 = vmul.f32 %v684, %v2983
        %v3239 = vmul.f32 %v685, %v2996
        %v3240 = vmul.f32 %v686, %v2996
        %v3241 = vmul.f32 %v687, %v2996
        %v3242 = vmul.f32 %v688, %v2996
        %v3243 = vmul.f32 %v689, %v3009
        %v3244 = vmul.f32 %v690, %v3009
        %v3245 = vmul.f32 %v691, %v3009
        %v3246 = vmul.f32 %v692, %v3009
        %v3247 = vmul.f32 %v693, %v3022
        %v3248 = vmul.f32 %v694, %v3022
        %v3249 = vmul.f32 %v695, %v3022
        %v3250 = vmul.f32 %v696, %v3022
        %v3251 = vmul.f32 %v697, %v3035
        %v3252 = vmul.f32 %v698, %v3035
        %v3253 = vmul.f32 %v699, %v3035
        %v3254 = vmul.f32 %v700, %v3035
        %v3255 = vmul.f32 %v701, %v3048
        %v3256 = vmul.f32 %v702, %v3048
        %v3257 = vmul.f32 %v703, %v3048
        %v3258 = vmul.f32 %v704, %v3048
        %v3259 = vmul.f32 %v705, %v3061
        %v3260 = vmul.f32 %v706, %v3061
        %v3261 = vmul.f32 %v707, %v3061
        %v3262 = vmul.f32 %v708, %v3061
        %v3263 = vmul.f32 %v709, %v3074
        %v3264 = vmul.f32 %v710, %v3074
        %v3265 = vmul.f32 %v711, %v3074
        %v3266 = vmul.f32 %v712, %v3074
        %v3267 = vsel %vm2450, %v3075, 0.0
        %3268 = vadd.xlane.f32.xlu0 %v3267
        %v3269 = vpop.xlane.xlu0 %3268
        %v3270 = vsel %vm2450, %v3076, 0.0
        %3271 = vadd.xlane.f32.xlu0 %v3270
        %v3272 = vpop.xlane.xlu0 %3271
        %v3273 = vsel %vm2450, %v3077, 0.0
        %3274 = vadd.xlane.f32.xlu0 %v3273
        %v3275 = vpop.xlane.xlu0 %3274
        %v3276 = vsel %vm2450, %v3078, 0.0
        %3277 = vadd.xlane.f32.xlu0 %v3276
        %v3278 = vpop.xlane.xlu0 %3277
        %v3279 = vsel %vm2450, %v3079, 0.0
        %3280 = vadd.xlane.f32.xlu0 %v3279
        %v3281 = vpop.xlane.xlu0 %3280
        %v3282 = vsel %vm2450, %v3080, 0.0
        %3283 = vadd.xlane.f32.xlu0 %v3282
        %v3284 = vpop.xlane.xlu0 %3283
        %v3285 = vsel %vm2450, %v3081, 0.0
        %3286 = vadd.xlane.f32.xlu0 %v3285
        %v3287 = vpop.xlane.xlu0 %3286
        %v3288 = vsel %vm2450, %v3082, 0.0
        %3289 = vadd.xlane.f32.xlu0 %v3288
        %v3290 = vpop.xlane.xlu0 %3289
        %v3291 = vsel %vm2450, %v3083, 0.0
        %3292 = vadd.xlane.f32.xlu0 %v3291
        %v3293 = vpop.xlane.xlu0 %3292
        %v3294 = vsel %vm2450, %v3084, 0.0
        %3295 = vadd.xlane.f32.xlu0 %v3294
        %v3296 = vpop.xlane.xlu0 %3295
        %v3297 = vsel %vm2450, %v3085, 0.0
        %3298 = vadd.xlane.f32.xlu0 %v3297
        %v3299 = vpop.xlane.xlu0 %3298
        %v3300 = vsel %vm2450, %v3086, 0.0
        %3301 = vadd.xlane.f32.xlu0 %v3300
        %v3302 = vpop.xlane.xlu0 %3301
        %v3303 = vsel %vm2450, %v3087, 0.0
        %3304 = vadd.xlane.f32.xlu0 %v3303
        %v3305 = vpop.xlane.xlu0 %3304
        %v3306 = vsel %vm2450, %v3088, 0.0
        %3307 = vadd.xlane.f32.xlu0 %v3306
        %v3308 = vpop.xlane.xlu0 %3307
        %v3309 = vsel %vm2450, %v3089, 0.0
        %3310 = vadd.xlane.f32.xlu0 %v3309
        %v3311 = vpop.xlane.xlu0 %3310
        %v3312 = vsel %vm2450, %v3090, 0.0
        %3313 = vadd.xlane.f32.xlu0 %v3312
        %v3314 = vpop.xlane.xlu0 %3313
        %v3315 = vsel %vm2450, %v3091, 0.0
        %3316 = vadd.xlane.f32.xlu0 %v3315
        %v3317 = vpop.xlane.xlu0 %3316
        %v3318 = vsel %vm2450, %v3092, 0.0
        %3319 = vadd.xlane.f32.xlu0 %v3318
        %v3320 = vpop.xlane.xlu0 %3319
        %v3321 = vsel %vm2450, %v3093, 0.0
        %3322 = vadd.xlane.f32.xlu0 %v3321
        %v3323 = vpop.xlane.xlu0 %3322
        %v3324 = vsel %vm2450, %v3094, 0.0
        %3325 = vadd.xlane.f32.xlu0 %v3324
        %v3326 = vpop.xlane.xlu0 %3325
        %v3327 = vsel %vm2450, %v3095, 0.0
        %3328 = vadd.xlane.f32.xlu0 %v3327
        %v3329 = vpop.xlane.xlu0 %3328
        %v3330 = vsel %vm2450, %v3096, 0.0
        %3331 = vadd.xlane.f32.xlu0 %v3330
        %v3332 = vpop.xlane.xlu0 %3331
        %v3333 = vsel %vm2450, %v3097, 0.0
        %3334 = vadd.xlane.f32.xlu0 %v3333
        %v3335 = vpop.xlane.xlu0 %3334
        %v3336 = vsel %vm2450, %v3098, 0.0
        %3337 = vadd.xlane.f32.xlu0 %v3336
        %v3338 = vpop.xlane.xlu0 %3337
        %v3339 = vsel %vm2450, %v3099, 0.0
        %3340 = vadd.xlane.f32.xlu0 %v3339
        %v3341 = vpop.xlane.xlu0 %3340
        %v3342 = vsel %vm2450, %v3100, 0.0
        %3343 = vadd.xlane.f32.xlu0 %v3342
        %v3344 = vpop.xlane.xlu0 %3343
        %v3345 = vsel %vm2450, %v3101, 0.0
        %3346 = vadd.xlane.f32.xlu0 %v3345
        %v3347 = vpop.xlane.xlu0 %3346
        %v3348 = vsel %vm2450, %v3102, 0.0
        %3349 = vadd.xlane.f32.xlu0 %v3348
        %v3350 = vpop.xlane.xlu0 %3349
        %v3351 = vsel %vm2450, %v3103, 0.0
        %3352 = vadd.xlane.f32.xlu0 %v3351
        %v3353 = vpop.xlane.xlu0 %3352
        %v3354 = vsel %vm2450, %v3104, 0.0
        %3355 = vadd.xlane.f32.xlu0 %v3354
        %v3356 = vpop.xlane.xlu0 %3355
        %v3357 = vsel %vm2450, %v3105, 0.0
        %3358 = vadd.xlane.f32.xlu0 %v3357
        %v3359 = vpop.xlane.xlu0 %3358
        %v3360 = vsel %vm2450, %v3106, 0.0
        %3361 = vadd.xlane.f32.xlu0 %v3360
        %v3362 = vpop.xlane.xlu0 %3361
        %v3363 = vsel %vm2450, %v3107, 0.0
        %3364 = vadd.xlane.f32.xlu0 %v3363
        %v3365 = vpop.xlane.xlu0 %3364
        %v3366 = vsel %vm2450, %v3108, 0.0
        %3367 = vadd.xlane.f32.xlu0 %v3366
        %v3368 = vpop.xlane.xlu0 %3367
        %v3369 = vsel %vm2450, %v3109, 0.0
        %3370 = vadd.xlane.f32.xlu0 %v3369
        %v3371 = vpop.xlane.xlu0 %3370
        %v3372 = vsel %vm2450, %v3110, 0.0
        %3373 = vadd.xlane.f32.xlu0 %v3372
        %v3374 = vpop.xlane.xlu0 %3373
        %v3375 = vsel %vm2450, %v3111, 0.0
        %3376 = vadd.xlane.f32.xlu0 %v3375
        %v3377 = vpop.xlane.xlu0 %3376
        %v3378 = vsel %vm2450, %v3112, 0.0
        %3379 = vadd.xlane.f32.xlu0 %v3378
        %v3380 = vpop.xlane.xlu0 %3379
        %v3381 = vsel %vm2450, %v3113, 0.0
        %3382 = vadd.xlane.f32.xlu0 %v3381
        %v3383 = vpop.xlane.xlu0 %3382
        %v3384 = vsel %vm2450, %v3114, 0.0
        %3385 = vadd.xlane.f32.xlu0 %v3384
        %v3386 = vpop.xlane.xlu0 %3385
        %v3387 = vsel %vm2450, %v3115, 0.0
        %3388 = vadd.xlane.f32.xlu0 %v3387
        %v3389 = vpop.xlane.xlu0 %3388
        %v3390 = vsel %vm2450, %v3116, 0.0
        %3391 = vadd.xlane.f32.xlu0 %v3390
        %v3392 = vpop.xlane.xlu0 %3391
        %v3393 = vsel %vm2450, %v3117, 0.0
        %3394 = vadd.xlane.f32.xlu0 %v3393
        %v3395 = vpop.xlane.xlu0 %3394
        %v3396 = vsel %vm2450, %v3118, 0.0
        %3397 = vadd.xlane.f32.xlu0 %v3396
        %v3398 = vpop.xlane.xlu0 %3397
        %v3399 = vsel %vm2450, %v3119, 0.0
        %3400 = vadd.xlane.f32.xlu0 %v3399
        %v3401 = vpop.xlane.xlu0 %3400
        %v3402 = vsel %vm2450, %v3120, 0.0
        %3403 = vadd.xlane.f32.xlu0 %v3402
        %v3404 = vpop.xlane.xlu0 %3403
        %v3405 = vsel %vm2450, %v3121, 0.0
        %3406 = vadd.xlane.f32.xlu0 %v3405
        %v3407 = vpop.xlane.xlu0 %3406
        %v3408 = vsel %vm2450, %v3122, 0.0
        %3409 = vadd.xlane.f32.xlu0 %v3408
        %v3410 = vpop.xlane.xlu0 %3409
        %v3411 = vsel %vm2450, %v3123, 0.0
        %3412 = vadd.xlane.f32.xlu0 %v3411
        %v3413 = vpop.xlane.xlu0 %3412
        %v3414 = vsel %vm2450, %v3124, 0.0
        %3415 = vadd.xlane.f32.xlu0 %v3414
        %v3416 = vpop.xlane.xlu0 %3415
        %v3417 = vsel %vm2450, %v3125, 0.0
        %3418 = vadd.xlane.f32.xlu0 %v3417
        %v3419 = vpop.xlane.xlu0 %3418
        %v3420 = vsel %vm2450, %v3126, 0.0
        %3421 = vadd.xlane.f32.xlu0 %v3420
        %v3422 = vpop.xlane.xlu0 %3421
        %v3423 = vsel %vm2450, %v3127, 0.0
        %3424 = vadd.xlane.f32.xlu0 %v3423
        %v3425 = vpop.xlane.xlu0 %3424
        %v3426 = vsel %vm2450, %v3128, 0.0
        %3427 = vadd.xlane.f32.xlu0 %v3426
        %v3428 = vpop.xlane.xlu0 %3427
        %v3429 = vsel %vm2450, %v3129, 0.0
        %3430 = vadd.xlane.f32.xlu0 %v3429
        %v3431 = vpop.xlane.xlu0 %3430
        %v3432 = vsel %vm2450, %v3130, 0.0
        %3433 = vadd.xlane.f32.xlu0 %v3432
        %v3434 = vpop.xlane.xlu0 %3433
        %v3435 = vsel %vm2450, %v3131, 0.0
        %3436 = vadd.xlane.f32.xlu0 %v3435
        %v3437 = vpop.xlane.xlu0 %3436
        %v3438 = vsel %vm2450, %v3132, 0.0
        %3439 = vadd.xlane.f32.xlu0 %v3438
        %v3440 = vpop.xlane.xlu0 %3439
        %v3441 = vsel %vm2450, %v3133, 0.0
        %3442 = vadd.xlane.f32.xlu0 %v3441
        %v3443 = vpop.xlane.xlu0 %3442
        %v3444 = vsel %vm2450, %v3134, 0.0
        %3445 = vadd.xlane.f32.xlu0 %v3444
        %v3446 = vpop.xlane.xlu0 %3445
        %v3447 = vsel %vm2450, %v3135, 0.0
        %3448 = vadd.xlane.f32.xlu0 %v3447
        %v3449 = vpop.xlane.xlu0 %3448
        %v3450 = vsel %vm2450, %v3136, 0.0
        %3451 = vadd.xlane.f32.xlu0 %v3450
        %v3452 = vpop.xlane.xlu0 %3451
        %v3453 = vsel %vm2450, %v3137, 0.0
        %3454 = vadd.xlane.f32.xlu0 %v3453
        %v3455 = vpop.xlane.xlu0 %3454
        %v3456 = vsel %vm2450, %v3138, 0.0
        %3457 = vadd.xlane.f32.xlu0 %v3456
        %v3458 = vpop.xlane.xlu0 %3457
        %v3459 = vsel %vm2450, %v3139, 0.0
        %3460 = vadd.xlane.f32.xlu0 %v3459
        %v3461 = vpop.xlane.xlu0 %3460
        %v3462 = vsel %vm2450, %v3140, 0.0
        %3463 = vadd.xlane.f32.xlu0 %v3462
        %v3464 = vpop.xlane.xlu0 %3463
        %v3465 = vsel %vm2450, %v3141, 0.0
        %3466 = vadd.xlane.f32.xlu0 %v3465
        %v3467 = vpop.xlane.xlu0 %3466
        %v3468 = vsel %vm2450, %v3142, 0.0
        %3469 = vadd.xlane.f32.xlu0 %v3468
        %v3470 = vpop.xlane.xlu0 %3469
        %v3471 = vsel %vm2450, %v3143, 0.0
        %3472 = vadd.xlane.f32.xlu0 %v3471
        %v3473 = vpop.xlane.xlu0 %3472
        %v3474 = vsel %vm2450, %v3144, 0.0
        %3475 = vadd.xlane.f32.xlu0 %v3474
        %v3476 = vpop.xlane.xlu0 %3475
        %v3477 = vsel %vm2450, %v3145, 0.0
        %3478 = vadd.xlane.f32.xlu0 %v3477
        %v3479 = vpop.xlane.xlu0 %3478
        %v3480 = vsel %vm2450, %v3146, 0.0
        %3481 = vadd.xlane.f32.xlu0 %v3480
        %v3482 = vpop.xlane.xlu0 %3481
        %v3483 = vsel %vm2450, %v3147, 0.0
        %3484 = vadd.xlane.f32.xlu0 %v3483
        %v3485 = vpop.xlane.xlu0 %3484
        %v3486 = vsel %vm2450, %v3148, 0.0
        %3487 = vadd.xlane.f32.xlu0 %v3486
        %v3488 = vpop.xlane.xlu0 %3487
        %v3489 = vsel %vm2450, %v3149, 0.0
        %3490 = vadd.xlane.f32.xlu0 %v3489
        %v3491 = vpop.xlane.xlu0 %3490
        %v3492 = vsel %vm2450, %v3150, 0.0
        %3493 = vadd.xlane.f32.xlu0 %v3492
        %v3494 = vpop.xlane.xlu0 %3493
        %v3495 = vsel %vm2450, %v3151, 0.0
        %3496 = vadd.xlane.f32.xlu0 %v3495
        %v3497 = vpop.xlane.xlu0 %3496
        %v3498 = vsel %vm2450, %v3152, 0.0
        %3499 = vadd.xlane.f32.xlu0 %v3498
        %v3500 = vpop.xlane.xlu0 %3499
        %v3501 = vsel %vm2450, %v3153, 0.0
        %3502 = vadd.xlane.f32.xlu0 %v3501
        %v3503 = vpop.xlane.xlu0 %3502
        %v3504 = vsel %vm2450, %v3154, 0.0
        %3505 = vadd.xlane.f32.xlu0 %v3504
        %v3506 = vpop.xlane.xlu0 %3505
        %v3507 = vsel %vm2450, %v3155, 0.0
        %3508 = vadd.xlane.f32.xlu0 %v3507
        %v3509 = vpop.xlane.xlu0 %3508
        %v3510 = vsel %vm2450, %v3156, 0.0
        %3511 = vadd.xlane.f32.xlu0 %v3510
        %v3512 = vpop.xlane.xlu0 %3511
        %v3513 = vsel %vm2450, %v3157, 0.0
        %3514 = vadd.xlane.f32.xlu0 %v3513
        %v3515 = vpop.xlane.xlu0 %3514
        %v3516 = vsel %vm2450, %v3158, 0.0
        %3517 = vadd.xlane.f32.xlu0 %v3516
        %v3518 = vpop.xlane.xlu0 %3517
        %v3519 = vsel %vm2450, %v3159, 0.0
        %3520 = vadd.xlane.f32.xlu0 %v3519
        %v3521 = vpop.xlane.xlu0 %3520
        %v3522 = vsel %vm2450, %v3160, 0.0
        %3523 = vadd.xlane.f32.xlu0 %v3522
        %v3524 = vpop.xlane.xlu0 %3523
        %v3525 = vsel %vm2450, %v3161, 0.0
        %3526 = vadd.xlane.f32.xlu0 %v3525
        %v3527 = vpop.xlane.xlu0 %3526
        %v3528 = vsel %vm2450, %v3162, 0.0
        %3529 = vadd.xlane.f32.xlu0 %v3528
        %v3530 = vpop.xlane.xlu0 %3529
        %v3531 = vsel %vm2450, %v3163, 0.0
        %3532 = vadd.xlane.f32.xlu0 %v3531
        %v3533 = vpop.xlane.xlu0 %3532
        %v3534 = vsel %vm2450, %v3164, 0.0
        %3535 = vadd.xlane.f32.xlu0 %v3534
        %v3536 = vpop.xlane.xlu0 %3535
        %v3537 = vsel %vm2450, %v3165, 0.0
        %3538 = vadd.xlane.f32.xlu0 %v3537
        %v3539 = vpop.xlane.xlu0 %3538
        %v3540 = vsel %vm2450, %v3166, 0.0
        %3541 = vadd.xlane.f32.xlu0 %v3540
        %v3542 = vpop.xlane.xlu0 %3541
        %v3543 = vsel %vm2450, %v3167, 0.0
        %3544 = vadd.xlane.f32.xlu0 %v3543
        %v3545 = vpop.xlane.xlu0 %3544
        %v3546 = vsel %vm2450, %v3168, 0.0
        %3547 = vadd.xlane.f32.xlu0 %v3546
        %v3548 = vpop.xlane.xlu0 %3547
        %v3549 = vsel %vm2450, %v3169, 0.0
        %3550 = vadd.xlane.f32.xlu0 %v3549
        %v3551 = vpop.xlane.xlu0 %3550
        %v3552 = vsel %vm2450, %v3170, 0.0
        %3553 = vadd.xlane.f32.xlu0 %v3552
        %v3554 = vpop.xlane.xlu0 %3553
        %v3555 = vsel %vm2450, %v3171, 0.0
        %3556 = vadd.xlane.f32.xlu0 %v3555
        %v3557 = vpop.xlane.xlu0 %3556
        %v3558 = vsel %vm2450, %v3172, 0.0
        %3559 = vadd.xlane.f32.xlu0 %v3558
        %v3560 = vpop.xlane.xlu0 %3559
        %v3561 = vsel %vm2450, %v3173, 0.0
        %3562 = vadd.xlane.f32.xlu0 %v3561
        %v3563 = vpop.xlane.xlu0 %3562
        %v3564 = vsel %vm2450, %v3174, 0.0
        %3565 = vadd.xlane.f32.xlu0 %v3564
        %v3566 = vpop.xlane.xlu0 %3565
        %v3567 = vsel %vm2450, %v3175, 0.0
        %3568 = vadd.xlane.f32.xlu0 %v3567
        %v3569 = vpop.xlane.xlu0 %3568
        %v3570 = vsel %vm2450, %v3176, 0.0
        %3571 = vadd.xlane.f32.xlu0 %v3570
        %v3572 = vpop.xlane.xlu0 %3571
        %v3573 = vsel %vm2450, %v3177, 0.0
        %3574 = vadd.xlane.f32.xlu0 %v3573
        %v3575 = vpop.xlane.xlu0 %3574
        %v3576 = vsel %vm2450, %v3178, 0.0
        %3577 = vadd.xlane.f32.xlu0 %v3576
        %v3578 = vpop.xlane.xlu0 %3577
        %v3579 = vsel %vm2450, %v3179, 0.0
        %3580 = vadd.xlane.f32.xlu0 %v3579
        %v3581 = vpop.xlane.xlu0 %3580
        %v3582 = vsel %vm2450, %v3180, 0.0
        %3583 = vadd.xlane.f32.xlu0 %v3582
        %v3584 = vpop.xlane.xlu0 %3583
        %v3585 = vsel %vm2450, %v3181, 0.0
        %3586 = vadd.xlane.f32.xlu0 %v3585
        %v3587 = vpop.xlane.xlu0 %3586
        %v3588 = vsel %vm2450, %v3182, 0.0
        %3589 = vadd.xlane.f32.xlu0 %v3588
        %v3590 = vpop.xlane.xlu0 %3589
        %v3591 = vsel %vm2450, %v3183, 0.0
        %3592 = vadd.xlane.f32.xlu0 %v3591
        %v3593 = vpop.xlane.xlu0 %3592
        %v3594 = vsel %vm2450, %v3184, 0.0
        %3595 = vadd.xlane.f32.xlu0 %v3594
        %v3596 = vpop.xlane.xlu0 %3595
        %v3597 = vsel %vm2450, %v3185, 0.0
        %3598 = vadd.xlane.f32.xlu0 %v3597
        %v3599 = vpop.xlane.xlu0 %3598
        %v3600 = vsel %vm2450, %v3186, 0.0
        %3601 = vadd.xlane.f32.xlu0 %v3600
        %v3602 = vpop.xlane.xlu0 %3601
        %v3603 = vsel %vm2450, %v3187, 0.0
        %3604 = vadd.xlane.f32.xlu0 %v3603
        %v3605 = vpop.xlane.xlu0 %3604
        %v3606 = vsel %vm2450, %v3188, 0.0
        %3607 = vadd.xlane.f32.xlu0 %v3606
        %v3608 = vpop.xlane.xlu0 %3607
        %v3609 = vsel %vm2450, %v3189, 0.0
        %3610 = vadd.xlane.f32.xlu0 %v3609
        %v3611 = vpop.xlane.xlu0 %3610
        %v3612 = vsel %vm2450, %v3190, 0.0
        %3613 = vadd.xlane.f32.xlu0 %v3612
        %v3614 = vpop.xlane.xlu0 %3613
        %v3615 = vsel %vm2450, %v3191, 0.0
        %3616 = vadd.xlane.f32.xlu0 %v3615
        %v3617 = vpop.xlane.xlu0 %3616
        %v3618 = vsel %vm2450, %v3192, 0.0
        %3619 = vadd.xlane.f32.xlu0 %v3618
        %v3620 = vpop.xlane.xlu0 %3619
        %v3621 = vsel %vm2450, %v3193, 0.0
        %3622 = vadd.xlane.f32.xlu0 %v3621
        %v3623 = vpop.xlane.xlu0 %3622
        %v3624 = vsel %vm2450, %v3194, 0.0
        %3625 = vadd.xlane.f32.xlu0 %v3624
        %v3626 = vpop.xlane.xlu0 %3625
        %v3627 = vsel %vm2450, %v3195, 0.0
        %3628 = vadd.xlane.f32.xlu0 %v3627
        %v3629 = vpop.xlane.xlu0 %3628
        %v3630 = vsel %vm2450, %v3196, 0.0
        %3631 = vadd.xlane.f32.xlu0 %v3630
        %v3632 = vpop.xlane.xlu0 %3631
        %v3633 = vsel %vm2450, %v3197, 0.0
        %3634 = vadd.xlane.f32.xlu0 %v3633
        %v3635 = vpop.xlane.xlu0 %3634
        %v3636 = vsel %vm2450, %v3198, 0.0
        %3637 = vadd.xlane.f32.xlu0 %v3636
        %v3638 = vpop.xlane.xlu0 %3637
        %v3639 = vsel %vm2450, %v3199, 0.0
        %3640 = vadd.xlane.f32.xlu0 %v3639
        %v3641 = vpop.xlane.xlu0 %3640
        %v3642 = vsel %vm2450, %v3200, 0.0
        %3643 = vadd.xlane.f32.xlu0 %v3642
        %v3644 = vpop.xlane.xlu0 %3643
        %v3645 = vsel %vm2450, %v3201, 0.0
        %3646 = vadd.xlane.f32.xlu0 %v3645
        %v3647 = vpop.xlane.xlu0 %3646
        %v3648 = vsel %vm2450, %v3202, 0.0
        %3649 = vadd.xlane.f32.xlu0 %v3648
        %v3650 = vpop.xlane.xlu0 %3649
        %v3651 = vsel %vm2450, %v3203, 0.0
        %3652 = vadd.xlane.f32.xlu0 %v3651
        %v3653 = vpop.xlane.xlu0 %3652
        %v3654 = vsel %vm2450, %v3204, 0.0
        %3655 = vadd.xlane.f32.xlu0 %v3654
        %v3656 = vpop.xlane.xlu0 %3655
        %v3657 = vsel %vm2450, %v3205, 0.0
        %3658 = vadd.xlane.f32.xlu0 %v3657
        %v3659 = vpop.xlane.xlu0 %3658
        %v3660 = vsel %vm2450, %v3206, 0.0
        %3661 = vadd.xlane.f32.xlu0 %v3660
        %v3662 = vpop.xlane.xlu0 %3661
        %v3663 = vsel %vm2450, %v3207, 0.0
        %3664 = vadd.xlane.f32.xlu0 %v3663
        %v3665 = vpop.xlane.xlu0 %3664
        %v3666 = vsel %vm2450, %v3208, 0.0
        %3667 = vadd.xlane.f32.xlu0 %v3666
        %v3668 = vpop.xlane.xlu0 %3667
        %v3669 = vsel %vm2450, %v3209, 0.0
        %3670 = vadd.xlane.f32.xlu0 %v3669
        %v3671 = vpop.xlane.xlu0 %3670
        %v3672 = vsel %vm2450, %v3210, 0.0
        %3673 = vadd.xlane.f32.xlu0 %v3672
        %v3674 = vpop.xlane.xlu0 %3673
        %v3675 = vsel %vm2450, %v3211, 0.0
        %3676 = vadd.xlane.f32.xlu0 %v3675
        %v3677 = vpop.xlane.xlu0 %3676
        %v3678 = vsel %vm2450, %v3212, 0.0
        %3679 = vadd.xlane.f32.xlu0 %v3678
        %v3680 = vpop.xlane.xlu0 %3679
        %v3681 = vsel %vm2450, %v3213, 0.0
        %3682 = vadd.xlane.f32.xlu0 %v3681
        %v3683 = vpop.xlane.xlu0 %3682
        %v3684 = vsel %vm2450, %v3214, 0.0
        %3685 = vadd.xlane.f32.xlu0 %v3684
        %v3686 = vpop.xlane.xlu0 %3685
        %v3687 = vsel %vm2450, %v3215, 0.0
        %3688 = vadd.xlane.f32.xlu0 %v3687
        %v3689 = vpop.xlane.xlu0 %3688
        %v3690 = vsel %vm2450, %v3216, 0.0
        %3691 = vadd.xlane.f32.xlu0 %v3690
        %v3692 = vpop.xlane.xlu0 %3691
        %v3693 = vsel %vm2450, %v3217, 0.0
        %3694 = vadd.xlane.f32.xlu0 %v3693
        %v3695 = vpop.xlane.xlu0 %3694
        %v3696 = vsel %vm2450, %v3218, 0.0
        %3697 = vadd.xlane.f32.xlu0 %v3696
        %v3698 = vpop.xlane.xlu0 %3697
        %v3699 = vsel %vm2450, %v3219, 0.0
        %3700 = vadd.xlane.f32.xlu0 %v3699
        %v3701 = vpop.xlane.xlu0 %3700
        %v3702 = vsel %vm2450, %v3220, 0.0
        %3703 = vadd.xlane.f32.xlu0 %v3702
        %v3704 = vpop.xlane.xlu0 %3703
        %v3705 = vsel %vm2450, %v3221, 0.0
        %3706 = vadd.xlane.f32.xlu0 %v3705
        %v3707 = vpop.xlane.xlu0 %3706
        %v3708 = vsel %vm2450, %v3222, 0.0
        %3709 = vadd.xlane.f32.xlu0 %v3708
        %v3710 = vpop.xlane.xlu0 %3709
        %v3711 = vsel %vm2450, %v3223, 0.0
        %3712 = vadd.xlane.f32.xlu0 %v3711
        %v3713 = vpop.xlane.xlu0 %3712
        %v3714 = vsel %vm2450, %v3224, 0.0
        %3715 = vadd.xlane.f32.xlu0 %v3714
        %v3716 = vpop.xlane.xlu0 %3715
        %v3717 = vsel %vm2450, %v3225, 0.0
        %3718 = vadd.xlane.f32.xlu0 %v3717
        %v3719 = vpop.xlane.xlu0 %3718
        %v3720 = vsel %vm2450, %v3226, 0.0
        %3721 = vadd.xlane.f32.xlu0 %v3720
        %v3722 = vpop.xlane.xlu0 %3721
        %v3723 = vsel %vm2450, %v3227, 0.0
        %3724 = vadd.xlane.f32.xlu0 %v3723
        %v3725 = vpop.xlane.xlu0 %3724
        %v3726 = vsel %vm2450, %v3228, 0.0
        %3727 = vadd.xlane.f32.xlu0 %v3726
        %v3728 = vpop.xlane.xlu0 %3727
        %v3729 = vsel %vm2450, %v3229, 0.0
        %3730 = vadd.xlane.f32.xlu0 %v3729
        %v3731 = vpop.xlane.xlu0 %3730
        %v3732 = vsel %vm2450, %v3230, 0.0
        %3733 = vadd.xlane.f32.xlu0 %v3732
        %v3734 = vpop.xlane.xlu0 %3733
        %v3735 = vsel %vm2450, %v3231, 0.0
        %3736 = vadd.xlane.f32.xlu0 %v3735
        %v3737 = vpop.xlane.xlu0 %3736
        %v3738 = vsel %vm2450, %v3232, 0.0
        %3739 = vadd.xlane.f32.xlu0 %v3738
        %v3740 = vpop.xlane.xlu0 %3739
        %v3741 = vsel %vm2450, %v3233, 0.0
        %3742 = vadd.xlane.f32.xlu0 %v3741
        %v3743 = vpop.xlane.xlu0 %3742
        %v3744 = vsel %vm2450, %v3234, 0.0
        %3745 = vadd.xlane.f32.xlu0 %v3744
        %v3746 = vpop.xlane.xlu0 %3745
        %v3747 = vsel %vm2450, %v3235, 0.0
        %3748 = vadd.xlane.f32.xlu0 %v3747
        %v3749 = vpop.xlane.xlu0 %3748
        %v3750 = vsel %vm2450, %v3236, 0.0
        %3751 = vadd.xlane.f32.xlu0 %v3750
        %v3752 = vpop.xlane.xlu0 %3751
        %v3753 = vsel %vm2450, %v3237, 0.0
        %3754 = vadd.xlane.f32.xlu0 %v3753
        %v3755 = vpop.xlane.xlu0 %3754
        %v3756 = vsel %vm2450, %v3238, 0.0
        %3757 = vadd.xlane.f32.xlu0 %v3756
        %v3758 = vpop.xlane.xlu0 %3757
        %v3759 = vsel %vm2450, %v3239, 0.0
        %3760 = vadd.xlane.f32.xlu0 %v3759
        %v3761 = vpop.xlane.xlu0 %3760
        %v3762 = vsel %vm2450, %v3240, 0.0
        %3763 = vadd.xlane.f32.xlu0 %v3762
        %v3764 = vpop.xlane.xlu0 %3763
        %v3765 = vsel %vm2450, %v3241, 0.0
        %3766 = vadd.xlane.f32.xlu0 %v3765
        %v3767 = vpop.xlane.xlu0 %3766
        %v3768 = vsel %vm2450, %v3242, 0.0
        %3769 = vadd.xlane.f32.xlu0 %v3768
        %v3770 = vpop.xlane.xlu0 %3769
        %v3771 = vsel %vm2450, %v3243, 0.0
        %3772 = vadd.xlane.f32.xlu0 %v3771
        %v3773 = vpop.xlane.xlu0 %3772
        %v3774 = vsel %vm2450, %v3244, 0.0
        %3775 = vadd.xlane.f32.xlu0 %v3774
        %v3776 = vpop.xlane.xlu0 %3775
        %v3777 = vsel %vm2450, %v3245, 0.0
        %3778 = vadd.xlane.f32.xlu0 %v3777
        %v3779 = vpop.xlane.xlu0 %3778
        %v3780 = vsel %vm2450, %v3246, 0.0
        %3781 = vadd.xlane.f32.xlu0 %v3780
        %v3782 = vpop.xlane.xlu0 %3781
        %v3783 = vsel %vm2450, %v3247, 0.0
        %3784 = vadd.xlane.f32.xlu0 %v3783
        %v3785 = vpop.xlane.xlu0 %3784
        %v3786 = vsel %vm2450, %v3248, 0.0
        %3787 = vadd.xlane.f32.xlu0 %v3786
        %v3788 = vpop.xlane.xlu0 %3787
        %v3789 = vsel %vm2450, %v3249, 0.0
        %3790 = vadd.xlane.f32.xlu0 %v3789
        %v3791 = vpop.xlane.xlu0 %3790
        %v3792 = vsel %vm2450, %v3250, 0.0
        %3793 = vadd.xlane.f32.xlu0 %v3792
        %v3794 = vpop.xlane.xlu0 %3793
        %v3795 = vsel %vm2450, %v3251, 0.0
        %3796 = vadd.xlane.f32.xlu0 %v3795
        %v3797 = vpop.xlane.xlu0 %3796
        %v3798 = vsel %vm2450, %v3252, 0.0
        %3799 = vadd.xlane.f32.xlu0 %v3798
        %v3800 = vpop.xlane.xlu0 %3799
        %v3801 = vsel %vm2450, %v3253, 0.0
        %3802 = vadd.xlane.f32.xlu0 %v3801
        %v3803 = vpop.xlane.xlu0 %3802
        %v3804 = vsel %vm2450, %v3254, 0.0
        %3805 = vadd.xlane.f32.xlu0 %v3804
        %v3806 = vpop.xlane.xlu0 %3805
        %v3807 = vsel %vm2450, %v3255, 0.0
        %3808 = vadd.xlane.f32.xlu0 %v3807
        %v3809 = vpop.xlane.xlu0 %3808
        %v3810 = vsel %vm2450, %v3256, 0.0
        %3811 = vadd.xlane.f32.xlu0 %v3810
        %v3812 = vpop.xlane.xlu0 %3811
        %v3813 = vsel %vm2450, %v3257, 0.0
        %3814 = vadd.xlane.f32.xlu0 %v3813
        %v3815 = vpop.xlane.xlu0 %3814
        %v3816 = vsel %vm2450, %v3258, 0.0
        %3817 = vadd.xlane.f32.xlu0 %v3816
        %v3818 = vpop.xlane.xlu0 %3817
        %v3819 = vsel %vm2450, %v3259, 0.0
        %3820 = vadd.xlane.f32.xlu0 %v3819
        %v3821 = vpop.xlane.xlu0 %3820
        %v3822 = vsel %vm2450, %v3260, 0.0
        %3823 = vadd.xlane.f32.xlu0 %v3822
        %v3824 = vpop.xlane.xlu0 %3823
        %v3825 = vsel %vm2450, %v3261, 0.0
        %3826 = vadd.xlane.f32.xlu0 %v3825
        %v3827 = vpop.xlane.xlu0 %3826
        %v3828 = vsel %vm2450, %v3262, 0.0
        %3829 = vadd.xlane.f32.xlu0 %v3828
        %v3830 = vpop.xlane.xlu0 %3829
        %v3831 = vsel %vm2450, %v3263, 0.0
        %3832 = vadd.xlane.f32.xlu0 %v3831
        %v3833 = vpop.xlane.xlu0 %3832
        %v3834 = vsel %vm2450, %v3264, 0.0
        %3835 = vadd.xlane.f32.xlu0 %v3834
        %v3836 = vpop.xlane.xlu0 %3835
        %v3837 = vsel %vm2450, %v3265, 0.0
        %3838 = vadd.xlane.f32.xlu0 %v3837
        %v3839 = vpop.xlane.xlu0 %3838
        %v3840 = vsel %vm2450, %v3266, 0.0
        %3841 = vadd.xlane.f32.xlu0 %v3840
        %v3842 = vpop.xlane.xlu0 %3841
        %v3867 = vlaneseq
        %v3868 = vand.u32 %v3867, 127
        %v3869 = vlaneseq
        %v3870 = vshrl.u32 %v3869, 7
        %v3871 = vsub.s32 %v3868, %v3870
        %v3872 = vrot.slane %v3269, %v3871
        %v3873 = vadd.s32 %v3868, 4294967288
        %v3874 = vlaneseq
        %v3875 = vshrl.u32 %v3874, 7
        %v3876 = vsub.s32 %v3873, %v3875
        %v3877 = vrot.slane %v3272, %v3876
        %vm3878 = vcmask 130112
        %v3879 = vsel %vm3878, %v3877, %v3872
        %v3880 = vadd.s32 %v3868, 4294967280
        %v3881 = vlaneseq
        %v3882 = vshrl.u32 %v3881, 7
        %v3883 = vsub.s32 %v3880, %v3882
        %v3884 = vrot.slane %v3275, %v3883
        %vm3885 = vcmask 195712
        %v3886 = vsel %vm3885, %v3884, %v3879
        %v3887 = vadd.s32 %v3868, 4294967272
        %v3888 = vlaneseq
        %v3889 = vshrl.u32 %v3888, 7
        %v3890 = vsub.s32 %v3887, %v3889
        %v3891 = vrot.slane %v3278, %v3890
        %vm3892 = vcmask 261312
        %v3893 = vsel %vm3892, %v3891, %v3886
        %v3894 = vlaneseq
        %v3895 = vshrl.u32 %v3894, 7
        %v3896 = vsub.s32 %v3868, %v3895
        %v3897 = vrot.slane %v3281, %v3896
        %v3898 = vlaneseq
        %v3899 = vshrl.u32 %v3898, 7
        %v3900 = vsub.s32 %v3873, %v3899
        %v3901 = vrot.slane %v3284, %v3900
        %v3902 = vsel %vm3878, %v3901, %v3897
        %v3903 = vlaneseq
        %v3904 = vshrl.u32 %v3903, 7
        %v3905 = vsub.s32 %v3880, %v3904
        %v3906 = vrot.slane %v3287, %v3905
        %v3907 = vsel %vm3885, %v3906, %v3902
        %v3908 = vlaneseq
        %v3909 = vshrl.u32 %v3908, 7
        %v3910 = vsub.s32 %v3887, %v3909
        %v3911 = vrot.slane %v3290, %v3910
        %v3912 = vsel %vm3892, %v3911, %v3907
        %v3913 = vlaneseq
        %v3914 = vshrl.u32 %v3913, 7
        %v3915 = vsub.s32 %v3868, %v3914
        %v3916 = vrot.slane %v3293, %v3915
        %v3917 = vlaneseq
        %v3918 = vshrl.u32 %v3917, 7
        %v3919 = vsub.s32 %v3873, %v3918
        %v3920 = vrot.slane %v3296, %v3919
        %v3921 = vsel %vm3878, %v3920, %v3916
        %v3922 = vlaneseq
        %v3923 = vshrl.u32 %v3922, 7
        %v3924 = vsub.s32 %v3880, %v3923
        %v3925 = vrot.slane %v3299, %v3924
        %v3926 = vsel %vm3885, %v3925, %v3921
        %v3927 = vlaneseq
        %v3928 = vshrl.u32 %v3927, 7
        %v3929 = vsub.s32 %v3887, %v3928
        %v3930 = vrot.slane %v3302, %v3929
        %v3931 = vsel %vm3892, %v3930, %v3926
        %v3932 = vlaneseq
        %v3933 = vshrl.u32 %v3932, 7
        %v3934 = vsub.s32 %v3868, %v3933
        %v3935 = vrot.slane %v3305, %v3934
        %v3936 = vlaneseq
        %v3937 = vshrl.u32 %v3936, 7
        %v3938 = vsub.s32 %v3873, %v3937
        %v3939 = vrot.slane %v3308, %v3938
        %v3940 = vsel %vm3878, %v3939, %v3935
        %v3941 = vlaneseq
        %v3942 = vshrl.u32 %v3941, 7
        %v3943 = vsub.s32 %v3880, %v3942
        %v3944 = vrot.slane %v3311, %v3943
        %v3945 = vsel %vm3885, %v3944, %v3940
        %v3946 = vlaneseq
        %v3947 = vshrl.u32 %v3946, 7
        %v3948 = vsub.s32 %v3887, %v3947
        %v3949 = vrot.slane %v3314, %v3948
        %v3950 = vsel %vm3892, %v3949, %v3945
        %v3951 = vlaneseq
        %v3952 = vshrl.u32 %v3951, 7
        %v3953 = vsub.s32 %v3868, %v3952
        %v3954 = vrot.slane %v3317, %v3953
        %v3955 = vlaneseq
        %v3956 = vshrl.u32 %v3955, 7
        %v3957 = vsub.s32 %v3873, %v3956
        %v3958 = vrot.slane %v3320, %v3957
        %v3959 = vsel %vm3878, %v3958, %v3954
        %v3960 = vlaneseq
        %v3961 = vshrl.u32 %v3960, 7
        %v3962 = vsub.s32 %v3880, %v3961
        %v3963 = vrot.slane %v3323, %v3962
        %v3964 = vsel %vm3885, %v3963, %v3959
        %v3965 = vlaneseq
        %v3966 = vshrl.u32 %v3965, 7
        %v3967 = vsub.s32 %v3887, %v3966
        %v3968 = vrot.slane %v3326, %v3967
        %v3969 = vsel %vm3892, %v3968, %v3964
        %v3970 = vlaneseq
        %v3971 = vshrl.u32 %v3970, 7
        %v3972 = vsub.s32 %v3868, %v3971
        %v3973 = vrot.slane %v3329, %v3972
        %v3974 = vlaneseq
        %v3975 = vshrl.u32 %v3974, 7
        %v3976 = vsub.s32 %v3873, %v3975
        %v3977 = vrot.slane %v3332, %v3976
        %v3978 = vsel %vm3878, %v3977, %v3973
        %v3979 = vlaneseq
        %v3980 = vshrl.u32 %v3979, 7
        %v3981 = vsub.s32 %v3880, %v3980
        %v3982 = vrot.slane %v3335, %v3981
        %v3983 = vsel %vm3885, %v3982, %v3978
        %v3984 = vlaneseq
        %v3985 = vshrl.u32 %v3984, 7
        %v3986 = vsub.s32 %v3887, %v3985
        %v3987 = vrot.slane %v3338, %v3986
        %v3988 = vsel %vm3892, %v3987, %v3983
        %vm3989 = vcmask 1041409
        %v3990 = vsel %vm3989, %v3912, %v3893
        %vm3991 = vcmask 1042434
        %v3992 = vsel %vm3991, %v3931, %v3990
        %vm3993 = vcmask 1043459
        %v3994 = vsel %vm3993, %v3950, %v3992
        %vm3995 = vcmask 1044484
        %v3996 = vsel %vm3995, %v3969, %v3994
        %vm3997 = vcmask 1045509
        %v3998 = vsel %vm3997, %v3988, %v3996
        %vm3999 = vcmask 261120
        %v4000 = vsel %vm3999, %v3998, 0
        %4002 = vmatprep.subr.mxu0 0.0
        %4003 = vmatpush1.msra.mxu0 0.0
        %4004 = vmatprep.subr.mxu0 0.0
        %4005 = vmatpush1.msra.mxu0 0.0
        %4006 = vmatprep.subr.mxu0 0.0
        %4007 = vmatpush1.msra.mxu0 0.0
        %4008 = vmatprep.subr.mxu0 0.0
        %4009 = vmatpush1.msra.mxu0 0.0
        %4010 = vmatprep.subr.mxu0 0.0
        %4011 = vmatpush1.msra.mxu0 0.0
        %4012 = vmatprep.subr.mxu0 0.0
        %4013 = vmatpush1.msra.mxu0 0.0
        %4014 = vmatprep.subr.mxu0 0.0
        %4015 = vmatpush1.msra.mxu0 0.0
        %4016 = vmatprep.subr.mxu0 0.0
        %4017 = vmatpush1.msra.mxu0 0.0
        %4018 = vmatprep.subr.mxu0 0.0
        %4019 = vmatpush1.msra.mxu0 0.0
        %4020 = vmatprep.subr.mxu0 0.0
        %4021 = vmatpush1.msra.mxu0 0.0
        %4022 = vmatprep.subr.mxu0 0.0
        %4023 = vmatpush1.msra.mxu0 0.0
        %4024 = vmatprep.subr.mxu0 0.0
        %4025 = vmatpush1.msra.mxu0 0.0
        %4026 = vmatprep.subr.mxu0 0.0
        %4027 = vmatpush1.msra.mxu0 %v732
        %4028 = vmatprep.subr.mxu0 0.0
        %4029 = vmatpush1.msra.mxu0 %v731
        %4030 = vmatprep.subr.mxu0 0.0
        %4031 = vmatpush1.msra.mxu0 %v730
        %4032 = vmatprep.subr.mxu0 0.0
        %4033 = vmatpush1.msra.mxu0 %v729
        %4034 = vmatprep.subr.mxu0 0.0
        %4035 = vmatpush2.msra.mxu0 0.0
        %4036 = vmatprep.subr.mxu0 0.0
        %4037 = vmatpush2.msra.mxu0 0.0
        %4038 = vmatprep.subr.mxu0 0.0
        %4039 = vmatpush2.msra.mxu0 0.0
        %4040 = vmatprep.subr.mxu0 0.0
        %4041 = vmatpush2.msra.mxu0 0.0
        %4042 = vmatprep.subr.mxu0 0.0
        %4043 = vmatpush2.msra.mxu0 0.0
        %4044 = vmatprep.subr.mxu0 0.0
        %4045 = vmatpush2.msra.mxu0 0.0
        %4046 = vmatprep.subr.mxu0 0.0
        %4047 = vmatpush2.msra.mxu0 0.0
        %4048 = vmatprep.subr.mxu0 0.0
        %4049 = vmatpush2.msra.mxu0 0.0
        %4050 = vmatprep.subr.mxu0 0.0
        %4051 = vmatpush2.msra.mxu0 0.0
        %4052 = vmatprep.subr.mxu0 0.0
        %4053 = vmatpush2.msra.mxu0 0.0
        %4054 = vmatprep.subr.mxu0 0.0
        %4055 = vmatpush2.msra.mxu0 0.0
        %4056 = vmatprep.subr.mxu0 0.0
        %4057 = vmatpush2.msra.mxu0 0.0
        %4058 = vmatprep.subr.mxu0 0.0
        %4059 = vmatpush2.msra.mxu0 0.0
        %4060 = vmatprep.subr.mxu0 0.0
        %4061 = vmatpush2.msra.mxu0 0.0
        %4062 = vmatprep.subr.mxu0 0.0
        %4063 = vmatpush2.msra.mxu0 0.0
        %4064 = vmatprep.subr.mxu0 0.0
        %4065 = vmatpush2.msra.mxu0 0.0
        %4066 = vmatprep.mubr.f32.mxu0 0.0
        %4067 = vmatmul.mubr.f32.gmra.mxu0 %v4000
        %v4068 = vpop.f32.mrf.mxu0
        %v4069 = vadd.f32 0.0, %v4068
        %v4070 = vpop.f32.mrf.mxu0
        %4071 = vdwg.mxu0
        %v4096 = vlaneseq
        %v4097 = vshrl.u32 %v4096, 7
        %v4098 = vsub.s32 %v3868, %v4097
        %v4099 = vrot.slane %v3341, %v4098
        %v4100 = vlaneseq
        %v4101 = vshrl.u32 %v4100, 7
        %v4102 = vsub.s32 %v3873, %v4101
        %v4103 = vrot.slane %v3344, %v4102
        %v4104 = vsel %vm3878, %v4103, %v4099
        %v4105 = vlaneseq
        %v4106 = vshrl.u32 %v4105, 7
        %v4107 = vsub.s32 %v3880, %v4106
        %v4108 = vrot.slane %v3347, %v4107
        %v4109 = vsel %vm3885, %v4108, %v4104
        %v4110 = vlaneseq
        %v4111 = vshrl.u32 %v4110, 7
        %v4112 = vsub.s32 %v3887, %v4111
        %v4113 = vrot.slane %v3350, %v4112
        %v4114 = vsel %vm3892, %v4113, %v4109
        %v4115 = vlaneseq
        %v4116 = vshrl.u32 %v4115, 7
        %v4117 = vsub.s32 %v3868, %v4116
        %v4118 = vrot.slane %v3353, %v4117
        %v4119 = vlaneseq
        %v4120 = vshrl.u32 %v4119, 7
        %v4121 = vsub.s32 %v3873, %v4120
        %v4122 = vrot.slane %v3356, %v4121
        %v4123 = vsel %vm3878, %v4122, %v4118
        %v4124 = vlaneseq
        %v4125 = vshrl.u32 %v4124, 7
        %v4126 = vsub.s32 %v3880, %v4125
        %v4127 = vrot.slane %v3359, %v4126
        %v4128 = vsel %vm3885, %v4127, %v4123
        %v4129 = vlaneseq
        %v4130 = vshrl.u32 %v4129, 7
        %v4131 = vsub.s32 %v3887, %v4130
        %v4132 = vrot.slane %v3362, %v4131
        %v4133 = vsel %vm3892, %v4132, %v4128
        %v4134 = vlaneseq
        %v4135 = vshrl.u32 %v4134, 7
        %v4136 = vsub.s32 %v3868, %v4135
        %v4137 = vrot.slane %v3365, %v4136
        %v4138 = vlaneseq
        %v4139 = vshrl.u32 %v4138, 7
        %v4140 = vsub.s32 %v3873, %v4139
        %v4141 = vrot.slane %v3368, %v4140
        %v4142 = vsel %vm3878, %v4141, %v4137
        %v4143 = vlaneseq
        %v4144 = vshrl.u32 %v4143, 7
        %v4145 = vsub.s32 %v3880, %v4144
        %v4146 = vrot.slane %v3371, %v4145
        %v4147 = vsel %vm3885, %v4146, %v4142
        %v4148 = vlaneseq
        %v4149 = vshrl.u32 %v4148, 7
        %v4150 = vsub.s32 %v3887, %v4149
        %v4151 = vrot.slane %v3374, %v4150
        %v4152 = vsel %vm3892, %v4151, %v4147
        %v4153 = vlaneseq
        %v4154 = vshrl.u32 %v4153, 7
        %v4155 = vsub.s32 %v3868, %v4154
        %v4156 = vrot.slane %v3377, %v4155
        %v4157 = vlaneseq
        %v4158 = vshrl.u32 %v4157, 7
        %v4159 = vsub.s32 %v3873, %v4158
        %v4160 = vrot.slane %v3380, %v4159
        %v4161 = vsel %vm3878, %v4160, %v4156
        %v4162 = vlaneseq
        %v4163 = vshrl.u32 %v4162, 7
        %v4164 = vsub.s32 %v3880, %v4163
        %v4165 = vrot.slane %v3383, %v4164
        %v4166 = vsel %vm3885, %v4165, %v4161
        %v4167 = vlaneseq
        %v4168 = vshrl.u32 %v4167, 7
        %v4169 = vsub.s32 %v3887, %v4168
        %v4170 = vrot.slane %v3386, %v4169
        %v4171 = vsel %vm3892, %v4170, %v4166
        %v4172 = vlaneseq
        %v4173 = vshrl.u32 %v4172, 7
        %v4174 = vsub.s32 %v3868, %v4173
        %v4175 = vrot.slane %v3389, %v4174
        %v4176 = vlaneseq
        %v4177 = vshrl.u32 %v4176, 7
        %v4178 = vsub.s32 %v3873, %v4177
        %v4179 = vrot.slane %v3392, %v4178
        %v4180 = vsel %vm3878, %v4179, %v4175
        %v4181 = vlaneseq
        %v4182 = vshrl.u32 %v4181, 7
        %v4183 = vsub.s32 %v3880, %v4182
        %v4184 = vrot.slane %v3395, %v4183
        %v4185 = vsel %vm3885, %v4184, %v4180
        %v4186 = vlaneseq
        %v4187 = vshrl.u32 %v4186, 7
        %v4188 = vsub.s32 %v3887, %v4187
        %v4189 = vrot.slane %v3398, %v4188
        %v4190 = vsel %vm3892, %v4189, %v4185
        %v4191 = vlaneseq
        %v4192 = vshrl.u32 %v4191, 7
        %v4193 = vsub.s32 %v3868, %v4192
        %v4194 = vrot.slane %v3401, %v4193
        %v4195 = vlaneseq
        %v4196 = vshrl.u32 %v4195, 7
        %v4197 = vsub.s32 %v3873, %v4196
        %v4198 = vrot.slane %v3404, %v4197
        %v4199 = vsel %vm3878, %v4198, %v4194
        %v4200 = vlaneseq
        %v4201 = vshrl.u32 %v4200, 7
        %v4202 = vsub.s32 %v3880, %v4201
        %v4203 = vrot.slane %v3407, %v4202
        %v4204 = vsel %vm3885, %v4203, %v4199
        %v4205 = vlaneseq
        %v4206 = vshrl.u32 %v4205, 7
        %v4207 = vsub.s32 %v3887, %v4206
        %v4208 = vrot.slane %v3410, %v4207
        %v4209 = vsel %vm3892, %v4208, %v4204
        %v4210 = vsel %vm3989, %v4133, %v4114
        %v4211 = vsel %vm3991, %v4152, %v4210
        %v4212 = vsel %vm3993, %v4171, %v4211
        %v4213 = vsel %vm3995, %v4190, %v4212
        %v4214 = vsel %vm3997, %v4209, %v4213
        %v4215 = vsel %vm3999, %v4214, 0
        %4217 = vmatprep.subr.mxu0 0.0
        %4218 = vmatpush1.msra.mxu0 0.0
        %4219 = vmatprep.subr.mxu0 0.0
        %4220 = vmatpush1.msra.mxu0 0.0
        %4221 = vmatprep.subr.mxu0 0.0
        %4222 = vmatpush1.msra.mxu0 0.0
        %4223 = vmatprep.subr.mxu0 0.0
        %4224 = vmatpush1.msra.mxu0 0.0
        %4225 = vmatprep.subr.mxu0 0.0
        %4226 = vmatpush1.msra.mxu0 0.0
        %4227 = vmatprep.subr.mxu0 0.0
        %4228 = vmatpush1.msra.mxu0 0.0
        %4229 = vmatprep.subr.mxu0 0.0
        %4230 = vmatpush1.msra.mxu0 0.0
        %4231 = vmatprep.subr.mxu0 0.0
        %4232 = vmatpush1.msra.mxu0 0.0
        %4233 = vmatprep.subr.mxu0 0.0
        %4234 = vmatpush1.msra.mxu0 0.0
        %4235 = vmatprep.subr.mxu0 0.0
        %4236 = vmatpush1.msra.mxu0 0.0
        %4237 = vmatprep.subr.mxu0 0.0
        %4238 = vmatpush1.msra.mxu0 0.0
        %4239 = vmatprep.subr.mxu0 0.0
        %4240 = vmatpush1.msra.mxu0 0.0
        %4241 = vmatprep.subr.mxu0 0.0
        %4242 = vmatpush1.msra.mxu0 %v736
        %4243 = vmatprep.subr.mxu0 0.0
        %4244 = vmatpush1.msra.mxu0 %v735
        %4245 = vmatprep.subr.mxu0 0.0
        %4246 = vmatpush1.msra.mxu0 %v734
        %4247 = vmatprep.subr.mxu0 0.0
        %4248 = vmatpush1.msra.mxu0 %v733
        %4249 = vmatprep.subr.mxu0 0.0
        %4250 = vmatpush2.msra.mxu0 0.0
        %4251 = vmatprep.subr.mxu0 0.0
        %4252 = vmatpush2.msra.mxu0 0.0
        %4253 = vmatprep.subr.mxu0 0.0
        %4254 = vmatpush2.msra.mxu0 0.0
        %4255 = vmatprep.subr.mxu0 0.0
        %4256 = vmatpush2.msra.mxu0 0.0
        %4257 = vmatprep.subr.mxu0 0.0
        %4258 = vmatpush2.msra.mxu0 0.0
        %4259 = vmatprep.subr.mxu0 0.0
        %4260 = vmatpush2.msra.mxu0 0.0
        %4261 = vmatprep.subr.mxu0 0.0
        %4262 = vmatpush2.msra.mxu0 0.0
        %4263 = vmatprep.subr.mxu0 0.0
        %4264 = vmatpush2.msra.mxu0 0.0
        %4265 = vmatprep.subr.mxu0 0.0
        %4266 = vmatpush2.msra.mxu0 0.0
        %4267 = vmatprep.subr.mxu0 0.0
        %4268 = vmatpush2.msra.mxu0 0.0
        %4269 = vmatprep.subr.mxu0 0.0
        %4270 = vmatpush2.msra.mxu0 0.0
        %4271 = vmatprep.subr.mxu0 0.0
        %4272 = vmatpush2.msra.mxu0 0.0
        %4273 = vmatprep.subr.mxu0 0.0
        %4274 = vmatpush2.msra.mxu0 0.0
        %4275 = vmatprep.subr.mxu0 0.0
        %4276 = vmatpush2.msra.mxu0 0.0
        %4277 = vmatprep.subr.mxu0 0.0
        %4278 = vmatpush2.msra.mxu0 0.0
        %4279 = vmatprep.subr.mxu0 0.0
        %4280 = vmatpush2.msra.mxu0 0.0
        %4281 = vmatprep.mubr.f32.mxu0 0.0
        %4282 = vmatmul.mubr.f32.gmra.mxu0 %v4215
        %v4283 = vpop.f32.mrf.mxu0
        %v4284 = vadd.f32 0.0, %v4283
        %v4285 = vpop.f32.mrf.mxu0
        %4286 = vdwg.mxu0
        %v4311 = vlaneseq
        %v4312 = vshrl.u32 %v4311, 7
        %v4313 = vsub.s32 %v3868, %v4312
        %v4314 = vrot.slane %v3413, %v4313
        %v4315 = vlaneseq
        %v4316 = vshrl.u32 %v4315, 7
        %v4317 = vsub.s32 %v3873, %v4316
        %v4318 = vrot.slane %v3416, %v4317
        %v4319 = vsel %vm3878, %v4318, %v4314
        %v4320 = vlaneseq
        %v4321 = vshrl.u32 %v4320, 7
        %v4322 = vsub.s32 %v3880, %v4321
        %v4323 = vrot.slane %v3419, %v4322
        %v4324 = vsel %vm3885, %v4323, %v4319
        %v4325 = vlaneseq
        %v4326 = vshrl.u32 %v4325, 7
        %v4327 = vsub.s32 %v3887, %v4326
        %v4328 = vrot.slane %v3422, %v4327
        %v4329 = vsel %vm3892, %v4328, %v4324
        %v4330 = vlaneseq
        %v4331 = vshrl.u32 %v4330, 7
        %v4332 = vsub.s32 %v3868, %v4331
        %v4333 = vrot.slane %v3425, %v4332
        %v4334 = vlaneseq
        %v4335 = vshrl.u32 %v4334, 7
        %v4336 = vsub.s32 %v3873, %v4335
        %v4337 = vrot.slane %v3428, %v4336
        %v4338 = vsel %vm3878, %v4337, %v4333
        %v4339 = vlaneseq
        %v4340 = vshrl.u32 %v4339, 7
        %v4341 = vsub.s32 %v3880, %v4340
        %v4342 = vrot.slane %v3431, %v4341
        %v4343 = vsel %vm3885, %v4342, %v4338
        %v4344 = vlaneseq
        %v4345 = vshrl.u32 %v4344, 7
        %v4346 = vsub.s32 %v3887, %v4345
        %v4347 = vrot.slane %v3434, %v4346
        %v4348 = vsel %vm3892, %v4347, %v4343
        %v4349 = vlaneseq
        %v4350 = vshrl.u32 %v4349, 7
        %v4351 = vsub.s32 %v3868, %v4350
        %v4352 = vrot.slane %v3437, %v4351
        %v4353 = vlaneseq
        %v4354 = vshrl.u32 %v4353, 7
        %v4355 = vsub.s32 %v3873, %v4354
        %v4356 = vrot.slane %v3440, %v4355
        %v4357 = vsel %vm3878, %v4356, %v4352
        %v4358 = vlaneseq
        %v4359 = vshrl.u32 %v4358, 7
        %v4360 = vsub.s32 %v3880, %v4359
        %v4361 = vrot.slane %v3443, %v4360
        %v4362 = vsel %vm3885, %v4361, %v4357
        %v4363 = vlaneseq
        %v4364 = vshrl.u32 %v4363, 7
        %v4365 = vsub.s32 %v3887, %v4364
        %v4366 = vrot.slane %v3446, %v4365
        %v4367 = vsel %vm3892, %v4366, %v4362
        %v4368 = vlaneseq
        %v4369 = vshrl.u32 %v4368, 7
        %v4370 = vsub.s32 %v3868, %v4369
        %v4371 = vrot.slane %v3449, %v4370
        %v4372 = vlaneseq
        %v4373 = vshrl.u32 %v4372, 7
        %v4374 = vsub.s32 %v3873, %v4373
        %v4375 = vrot.slane %v3452, %v4374
        %v4376 = vsel %vm3878, %v4375, %v4371
        %v4377 = vlaneseq
        %v4378 = vshrl.u32 %v4377, 7
        %v4379 = vsub.s32 %v3880, %v4378
        %v4380 = vrot.slane %v3455, %v4379
        %v4381 = vsel %vm3885, %v4380, %v4376
        %v4382 = vlaneseq
        %v4383 = vshrl.u32 %v4382, 7
        %v4384 = vsub.s32 %v3887, %v4383
        %v4385 = vrot.slane %v3458, %v4384
        %v4386 = vsel %vm3892, %v4385, %v4381
        %v4387 = vlaneseq
        %v4388 = vshrl.u32 %v4387, 7
        %v4389 = vsub.s32 %v3868, %v4388
        %v4390 = vrot.slane %v3461, %v4389
        %v4391 = vlaneseq
        %v4392 = vshrl.u32 %v4391, 7
        %v4393 = vsub.s32 %v3873, %v4392
        %v4394 = vrot.slane %v3464, %v4393
        %v4395 = vsel %vm3878, %v4394, %v4390
        %v4396 = vlaneseq
        %v4397 = vshrl.u32 %v4396, 7
        %v4398 = vsub.s32 %v3880, %v4397
        %v4399 = vrot.slane %v3467, %v4398
        %v4400 = vsel %vm3885, %v4399, %v4395
        %v4401 = vlaneseq
        %v4402 = vshrl.u32 %v4401, 7
        %v4403 = vsub.s32 %v3887, %v4402
        %v4404 = vrot.slane %v3470, %v4403
        %v4405 = vsel %vm3892, %v4404, %v4400
        %v4406 = vlaneseq
        %v4407 = vshrl.u32 %v4406, 7
        %v4408 = vsub.s32 %v3868, %v4407
        %v4409 = vrot.slane %v3473, %v4408
        %v4410 = vlaneseq
        %v4411 = vshrl.u32 %v4410, 7
        %v4412 = vsub.s32 %v3873, %v4411
        %v4413 = vrot.slane %v3476, %v4412
        %v4414 = vsel %vm3878, %v4413, %v4409
        %v4415 = vlaneseq
        %v4416 = vshrl.u32 %v4415, 7
        %v4417 = vsub.s32 %v3880, %v4416
        %v4418 = vrot.slane %v3479, %v4417
        %v4419 = vsel %vm3885, %v4418, %v4414
        %v4420 = vlaneseq
        %v4421 = vshrl.u32 %v4420, 7
        %v4422 = vsub.s32 %v3887, %v4421
        %v4423 = vrot.slane %v3482, %v4422
        %v4424 = vsel %vm3892, %v4423, %v4419
        %v4425 = vsel %vm3989, %v4348, %v4329
        %v4426 = vsel %vm3991, %v4367, %v4425
        %v4427 = vsel %vm3993, %v4386, %v4426
        %v4428 = vsel %vm3995, %v4405, %v4427
        %v4429 = vsel %vm3997, %v4424, %v4428
        %v4430 = vsel %vm3999, %v4429, 0
        %4432 = vmatprep.subr.mxu0 0.0
        %4433 = vmatpush1.msra.mxu0 0.0
        %4434 = vmatprep.subr.mxu0 0.0
        %4435 = vmatpush1.msra.mxu0 0.0
        %4436 = vmatprep.subr.mxu0 0.0
        %4437 = vmatpush1.msra.mxu0 0.0
        %4438 = vmatprep.subr.mxu0 0.0
        %4439 = vmatpush1.msra.mxu0 0.0
        %4440 = vmatprep.subr.mxu0 0.0
        %4441 = vmatpush1.msra.mxu0 0.0
        %4442 = vmatprep.subr.mxu0 0.0
        %4443 = vmatpush1.msra.mxu0 0.0
        %4444 = vmatprep.subr.mxu0 0.0
        %4445 = vmatpush1.msra.mxu0 0.0
        %4446 = vmatprep.subr.mxu0 0.0
        %4447 = vmatpush1.msra.mxu0 0.0
        %4448 = vmatprep.subr.mxu0 0.0
        %4449 = vmatpush1.msra.mxu0 0.0
        %4450 = vmatprep.subr.mxu0 0.0
        %4451 = vmatpush1.msra.mxu0 0.0
        %4452 = vmatprep.subr.mxu0 0.0
        %4453 = vmatpush1.msra.mxu0 0.0
        %4454 = vmatprep.subr.mxu0 0.0
        %4455 = vmatpush1.msra.mxu0 0.0
        %4456 = vmatprep.subr.mxu0 0.0
        %4457 = vmatpush1.msra.mxu0 %v740
        %4458 = vmatprep.subr.mxu0 0.0
        %4459 = vmatpush1.msra.mxu0 %v739
        %4460 = vmatprep.subr.mxu0 0.0
        %4461 = vmatpush1.msra.mxu0 %v738
        %4462 = vmatprep.subr.mxu0 0.0
        %4463 = vmatpush1.msra.mxu0 %v737
        %4464 = vmatprep.subr.mxu0 0.0
        %4465 = vmatpush2.msra.mxu0 0.0
        %4466 = vmatprep.subr.mxu0 0.0
        %4467 = vmatpush2.msra.mxu0 0.0
        %4468 = vmatprep.subr.mxu0 0.0
        %4469 = vmatpush2.msra.mxu0 0.0
        %4470 = vmatprep.subr.mxu0 0.0
        %4471 = vmatpush2.msra.mxu0 0.0
        %4472 = vmatprep.subr.mxu0 0.0
        %4473 = vmatpush2.msra.mxu0 0.0
        %4474 = vmatprep.subr.mxu0 0.0
        %4475 = vmatpush2.msra.mxu0 0.0
        %4476 = vmatprep.subr.mxu0 0.0
        %4477 = vmatpush2.msra.mxu0 0.0
        %4478 = vmatprep.subr.mxu0 0.0
        %4479 = vmatpush2.msra.mxu0 0.0
        %4480 = vmatprep.subr.mxu0 0.0
        %4481 = vmatpush2.msra.mxu0 0.0
        %4482 = vmatprep.subr.mxu0 0.0
        %4483 = vmatpush2.msra.mxu0 0.0
        %4484 = vmatprep.subr.mxu0 0.0
        %4485 = vmatpush2.msra.mxu0 0.0
        %4486 = vmatprep.subr.mxu0 0.0
        %4487 = vmatpush2.msra.mxu0 0.0
        %4488 = vmatprep.subr.mxu0 0.0
        %4489 = vmatpush2.msra.mxu0 0.0
        %4490 = vmatprep.subr.mxu0 0.0
        %4491 = vmatpush2.msra.mxu0 0.0
        %4492 = vmatprep.subr.mxu0 0.0
        %4493 = vmatpush2.msra.mxu0 0.0
        %4494 = vmatprep.subr.mxu0 0.0
        %4495 = vmatpush2.msra.mxu0 0.0
        %4496 = vmatprep.mubr.f32.mxu0 0.0
        %4497 = vmatmul.mubr.f32.gmra.mxu0 %v4430
        %v4498 = vpop.f32.mrf.mxu0
        %v4499 = vadd.f32 0.0, %v4498
        %v4500 = vpop.f32.mrf.mxu0
        %4501 = vdwg.mxu0
        %v4526 = vlaneseq
        %v4527 = vshrl.u32 %v4526, 7
        %v4528 = vsub.s32 %v3868, %v4527
        %v4529 = vrot.slane %v3485, %v4528
        %v4530 = vlaneseq
        %v4531 = vshrl.u32 %v4530, 7
        %v4532 = vsub.s32 %v3873, %v4531
        %v4533 = vrot.slane %v3488, %v4532
        %v4534 = vsel %vm3878, %v4533, %v4529
        %v4535 = vlaneseq
        %v4536 = vshrl.u32 %v4535, 7
        %v4537 = vsub.s32 %v3880, %v4536
        %v4538 = vrot.slane %v3491, %v4537
        %v4539 = vsel %vm3885, %v4538, %v4534
        %v4540 = vlaneseq
        %v4541 = vshrl.u32 %v4540, 7
        %v4542 = vsub.s32 %v3887, %v4541
        %v4543 = vrot.slane %v3494, %v4542
        %v4544 = vsel %vm3892, %v4543, %v4539
        %v4545 = vlaneseq
        %v4546 = vshrl.u32 %v4545, 7
        %v4547 = vsub.s32 %v3868, %v4546
        %v4548 = vrot.slane %v3497, %v4547
        %v4549 = vlaneseq
        %v4550 = vshrl.u32 %v4549, 7
        %v4551 = vsub.s32 %v3873, %v4550
        %v4552 = vrot.slane %v3500, %v4551
        %v4553 = vsel %vm3878, %v4552, %v4548
        %v4554 = vlaneseq
        %v4555 = vshrl.u32 %v4554, 7
        %v4556 = vsub.s32 %v3880, %v4555
        %v4557 = vrot.slane %v3503, %v4556
        %v4558 = vsel %vm3885, %v4557, %v4553
        %v4559 = vlaneseq
        %v4560 = vshrl.u32 %v4559, 7
        %v4561 = vsub.s32 %v3887, %v4560
        %v4562 = vrot.slane %v3506, %v4561
        %v4563 = vsel %vm3892, %v4562, %v4558
        %v4564 = vlaneseq
        %v4565 = vshrl.u32 %v4564, 7
        %v4566 = vsub.s32 %v3868, %v4565
        %v4567 = vrot.slane %v3509, %v4566
        %v4568 = vlaneseq
        %v4569 = vshrl.u32 %v4568, 7
        %v4570 = vsub.s32 %v3873, %v4569
        %v4571 = vrot.slane %v3512, %v4570
        %v4572 = vsel %vm3878, %v4571, %v4567
        %v4573 = vlaneseq
        %v4574 = vshrl.u32 %v4573, 7
        %v4575 = vsub.s32 %v3880, %v4574
        %v4576 = vrot.slane %v3515, %v4575
        %v4577 = vsel %vm3885, %v4576, %v4572
        %v4578 = vlaneseq
        %v4579 = vshrl.u32 %v4578, 7
        %v4580 = vsub.s32 %v3887, %v4579
        %v4581 = vrot.slane %v3518, %v4580
        %v4582 = vsel %vm3892, %v4581, %v4577
        %v4583 = vlaneseq
        %v4584 = vshrl.u32 %v4583, 7
        %v4585 = vsub.s32 %v3868, %v4584
        %v4586 = vrot.slane %v3521, %v4585
        %v4587 = vlaneseq
        %v4588 = vshrl.u32 %v4587, 7
        %v4589 = vsub.s32 %v3873, %v4588
        %v4590 = vrot.slane %v3524, %v4589
        %v4591 = vsel %vm3878, %v4590, %v4586
        %v4592 = vlaneseq
        %v4593 = vshrl.u32 %v4592, 7
        %v4594 = vsub.s32 %v3880, %v4593
        %v4595 = vrot.slane %v3527, %v4594
        %v4596 = vsel %vm3885, %v4595, %v4591
        %v4597 = vlaneseq
        %v4598 = vshrl.u32 %v4597, 7
        %v4599 = vsub.s32 %v3887, %v4598
        %v4600 = vrot.slane %v3530, %v4599
        %v4601 = vsel %vm3892, %v4600, %v4596
        %v4602 = vlaneseq
        %v4603 = vshrl.u32 %v4602, 7
        %v4604 = vsub.s32 %v3868, %v4603
        %v4605 = vrot.slane %v3533, %v4604
        %v4606 = vlaneseq
        %v4607 = vshrl.u32 %v4606, 7
        %v4608 = vsub.s32 %v3873, %v4607
        %v4609 = vrot.slane %v3536, %v4608
        %v4610 = vsel %vm3878, %v4609, %v4605
        %v4611 = vlaneseq
        %v4612 = vshrl.u32 %v4611, 7
        %v4613 = vsub.s32 %v3880, %v4612
        %v4614 = vrot.slane %v3539, %v4613
        %v4615 = vsel %vm3885, %v4614, %v4610
        %v4616 = vlaneseq
        %v4617 = vshrl.u32 %v4616, 7
        %v4618 = vsub.s32 %v3887, %v4617
        %v4619 = vrot.slane %v3542, %v4618
        %v4620 = vsel %vm3892, %v4619, %v4615
        %v4621 = vlaneseq
        %v4622 = vshrl.u32 %v4621, 7
        %v4623 = vsub.s32 %v3868, %v4622
        %v4624 = vrot.slane %v3545, %v4623
        %v4625 = vlaneseq
        %v4626 = vshrl.u32 %v4625, 7
        %v4627 = vsub.s32 %v3873, %v4626
        %v4628 = vrot.slane %v3548, %v4627
        %v4629 = vsel %vm3878, %v4628, %v4624
        %v4630 = vlaneseq
        %v4631 = vshrl.u32 %v4630, 7
        %v4632 = vsub.s32 %v3880, %v4631
        %v4633 = vrot.slane %v3551, %v4632
        %v4634 = vsel %vm3885, %v4633, %v4629
        %v4635 = vlaneseq
        %v4636 = vshrl.u32 %v4635, 7
        %v4637 = vsub.s32 %v3887, %v4636
        %v4638 = vrot.slane %v3554, %v4637
        %v4639 = vsel %vm3892, %v4638, %v4634
        %v4640 = vsel %vm3989, %v4563, %v4544
        %v4641 = vsel %vm3991, %v4582, %v4640
        %v4642 = vsel %vm3993, %v4601, %v4641
        %v4643 = vsel %vm3995, %v4620, %v4642
        %v4644 = vsel %vm3997, %v4639, %v4643
        %v4645 = vsel %vm3999, %v4644, 0
        %4647 = vmatprep.subr.mxu0 0.0
        %4648 = vmatpush1.msra.mxu0 0.0
        %4649 = vmatprep.subr.mxu0 0.0
        %4650 = vmatpush1.msra.mxu0 0.0
        %4651 = vmatprep.subr.mxu0 0.0
        %4652 = vmatpush1.msra.mxu0 0.0
        %4653 = vmatprep.subr.mxu0 0.0
        %4654 = vmatpush1.msra.mxu0 0.0
        %4655 = vmatprep.subr.mxu0 0.0
        %4656 = vmatpush1.msra.mxu0 0.0
        %4657 = vmatprep.subr.mxu0 0.0
        %4658 = vmatpush1.msra.mxu0 0.0
        %4659 = vmatprep.subr.mxu0 0.0
        %4660 = vmatpush1.msra.mxu0 0.0
        %4661 = vmatprep.subr.mxu0 0.0
        %4662 = vmatpush1.msra.mxu0 0.0
        %4663 = vmatprep.subr.mxu0 0.0
        %4664 = vmatpush1.msra.mxu0 0.0
        %4665 = vmatprep.subr.mxu0 0.0
        %4666 = vmatpush1.msra.mxu0 0.0
        %4667 = vmatprep.subr.mxu0 0.0
        %4668 = vmatpush1.msra.mxu0 0.0
        %4669 = vmatprep.subr.mxu0 0.0
        %4670 = vmatpush1.msra.mxu0 0.0
        %4671 = vmatprep.subr.mxu0 0.0
        %4672 = vmatpush1.msra.mxu0 %v744
        %4673 = vmatprep.subr.mxu0 0.0
        %4674 = vmatpush1.msra.mxu0 %v743
        %4675 = vmatprep.subr.mxu0 0.0
        %4676 = vmatpush1.msra.mxu0 %v742
        %4677 = vmatprep.subr.mxu0 0.0
        %4678 = vmatpush1.msra.mxu0 %v741
        %4679 = vmatprep.subr.mxu0 0.0
        %4680 = vmatpush2.msra.mxu0 0.0
        %4681 = vmatprep.subr.mxu0 0.0
        %4682 = vmatpush2.msra.mxu0 0.0
        %4683 = vmatprep.subr.mxu0 0.0
        %4684 = vmatpush2.msra.mxu0 0.0
        %4685 = vmatprep.subr.mxu0 0.0
        %4686 = vmatpush2.msra.mxu0 0.0
        %4687 = vmatprep.subr.mxu0 0.0
        %4688 = vmatpush2.msra.mxu0 0.0
        %4689 = vmatprep.subr.mxu0 0.0
        %4690 = vmatpush2.msra.mxu0 0.0
        %4691 = vmatprep.subr.mxu0 0.0
        %4692 = vmatpush2.msra.mxu0 0.0
        %4693 = vmatprep.subr.mxu0 0.0
        %4694 = vmatpush2.msra.mxu0 0.0
        %4695 = vmatprep.subr.mxu0 0.0
        %4696 = vmatpush2.msra.mxu0 0.0
        %4697 = vmatprep.subr.mxu0 0.0
        %4698 = vmatpush2.msra.mxu0 0.0
        %4699 = vmatprep.subr.mxu0 0.0
        %4700 = vmatpush2.msra.mxu0 0.0
        %4701 = vmatprep.subr.mxu0 0.0
        %4702 = vmatpush2.msra.mxu0 0.0
        %4703 = vmatprep.subr.mxu0 0.0
        %4704 = vmatpush2.msra.mxu0 0.0
        %4705 = vmatprep.subr.mxu0 0.0
        %4706 = vmatpush2.msra.mxu0 0.0
        %4707 = vmatprep.subr.mxu0 0.0
        %4708 = vmatpush2.msra.mxu0 0.0
        %4709 = vmatprep.subr.mxu0 0.0
        %4710 = vmatpush2.msra.mxu0 0.0
        %4711 = vmatprep.mubr.f32.mxu0 0.0
        %4712 = vmatmul.mubr.f32.gmra.mxu0 %v4645
        %v4713 = vpop.f32.mrf.mxu0
        %v4714 = vadd.f32 0.0, %v4713
        %v4715 = vpop.f32.mrf.mxu0
        %4716 = vdwg.mxu0
        %v4741 = vlaneseq
        %v4742 = vshrl.u32 %v4741, 7
        %v4743 = vsub.s32 %v3868, %v4742
        %v4744 = vrot.slane %v3557, %v4743
        %v4745 = vlaneseq
        %v4746 = vshrl.u32 %v4745, 7
        %v4747 = vsub.s32 %v3873, %v4746
        %v4748 = vrot.slane %v3560, %v4747
        %v4749 = vsel %vm3878, %v4748, %v4744
        %v4750 = vlaneseq
        %v4751 = vshrl.u32 %v4750, 7
        %v4752 = vsub.s32 %v3880, %v4751
        %v4753 = vrot.slane %v3563, %v4752
        %v4754 = vsel %vm3885, %v4753, %v4749
        %v4755 = vlaneseq
        %v4756 = vshrl.u32 %v4755, 7
        %v4757 = vsub.s32 %v3887, %v4756
        %v4758 = vrot.slane %v3566, %v4757
        %v4759 = vsel %vm3892, %v4758, %v4754
        %v4760 = vlaneseq
        %v4761 = vshrl.u32 %v4760, 7
        %v4762 = vsub.s32 %v3868, %v4761
        %v4763 = vrot.slane %v3569, %v4762
        %v4764 = vlaneseq
        %v4765 = vshrl.u32 %v4764, 7
        %v4766 = vsub.s32 %v3873, %v4765
        %v4767 = vrot.slane %v3572, %v4766
        %v4768 = vsel %vm3878, %v4767, %v4763
        %v4769 = vlaneseq
        %v4770 = vshrl.u32 %v4769, 7
        %v4771 = vsub.s32 %v3880, %v4770
        %v4772 = vrot.slane %v3575, %v4771
        %v4773 = vsel %vm3885, %v4772, %v4768
        %v4774 = vlaneseq
        %v4775 = vshrl.u32 %v4774, 7
        %v4776 = vsub.s32 %v3887, %v4775
        %v4777 = vrot.slane %v3578, %v4776
        %v4778 = vsel %vm3892, %v4777, %v4773
        %v4779 = vlaneseq
        %v4780 = vshrl.u32 %v4779, 7
        %v4781 = vsub.s32 %v3868, %v4780
        %v4782 = vrot.slane %v3581, %v4781
        %v4783 = vlaneseq
        %v4784 = vshrl.u32 %v4783, 7
        %v4785 = vsub.s32 %v3873, %v4784
        %v4786 = vrot.slane %v3584, %v4785
        %v4787 = vsel %vm3878, %v4786, %v4782
        %v4788 = vlaneseq
        %v4789 = vshrl.u32 %v4788, 7
        %v4790 = vsub.s32 %v3880, %v4789
        %v4791 = vrot.slane %v3587, %v4790
        %v4792 = vsel %vm3885, %v4791, %v4787
        %v4793 = vlaneseq
        %v4794 = vshrl.u32 %v4793, 7
        %v4795 = vsub.s32 %v3887, %v4794
        %v4796 = vrot.slane %v3590, %v4795
        %v4797 = vsel %vm3892, %v4796, %v4792
        %v4798 = vlaneseq
        %v4799 = vshrl.u32 %v4798, 7
        %v4800 = vsub.s32 %v3868, %v4799
        %v4801 = vrot.slane %v3593, %v4800
        %v4802 = vlaneseq
        %v4803 = vshrl.u32 %v4802, 7
        %v4804 = vsub.s32 %v3873, %v4803
        %v4805 = vrot.slane %v3596, %v4804
        %v4806 = vsel %vm3878, %v4805, %v4801
        %v4807 = vlaneseq
        %v4808 = vshrl.u32 %v4807, 7
        %v4809 = vsub.s32 %v3880, %v4808
        %v4810 = vrot.slane %v3599, %v4809
        %v4811 = vsel %vm3885, %v4810, %v4806
        %v4812 = vlaneseq
        %v4813 = vshrl.u32 %v4812, 7
        %v4814 = vsub.s32 %v3887, %v4813
        %v4815 = vrot.slane %v3602, %v4814
        %v4816 = vsel %vm3892, %v4815, %v4811
        %v4817 = vlaneseq
        %v4818 = vshrl.u32 %v4817, 7
        %v4819 = vsub.s32 %v3868, %v4818
        %v4820 = vrot.slane %v3605, %v4819
        %v4821 = vlaneseq
        %v4822 = vshrl.u32 %v4821, 7
        %v4823 = vsub.s32 %v3873, %v4822
        %v4824 = vrot.slane %v3608, %v4823
        %v4825 = vsel %vm3878, %v4824, %v4820
        %v4826 = vlaneseq
        %v4827 = vshrl.u32 %v4826, 7
        %v4828 = vsub.s32 %v3880, %v4827
        %v4829 = vrot.slane %v3611, %v4828
        %v4830 = vsel %vm3885, %v4829, %v4825
        %v4831 = vlaneseq
        %v4832 = vshrl.u32 %v4831, 7
        %v4833 = vsub.s32 %v3887, %v4832
        %v4834 = vrot.slane %v3614, %v4833
        %v4835 = vsel %vm3892, %v4834, %v4830
        %v4836 = vlaneseq
        %v4837 = vshrl.u32 %v4836, 7
        %v4838 = vsub.s32 %v3868, %v4837
        %v4839 = vrot.slane %v3617, %v4838
        %v4840 = vlaneseq
        %v4841 = vshrl.u32 %v4840, 7
        %v4842 = vsub.s32 %v3873, %v4841
        %v4843 = vrot.slane %v3620, %v4842
        %v4844 = vsel %vm3878, %v4843, %v4839
        %v4845 = vlaneseq
        %v4846 = vshrl.u32 %v4845, 7
        %v4847 = vsub.s32 %v3880, %v4846
        %v4848 = vrot.slane %v3623, %v4847
        %v4849 = vsel %vm3885, %v4848, %v4844
        %v4850 = vlaneseq
        %v4851 = vshrl.u32 %v4850, 7
        %v4852 = vsub.s32 %v3887, %v4851
        %v4853 = vrot.slane %v3626, %v4852
        %v4854 = vsel %vm3892, %v4853, %v4849
        %v4855 = vsel %vm3989, %v4778, %v4759
        %v4856 = vsel %vm3991, %v4797, %v4855
        %v4857 = vsel %vm3993, %v4816, %v4856
        %v4858 = vsel %vm3995, %v4835, %v4857
        %v4859 = vsel %vm3997, %v4854, %v4858
        %v4860 = vsel %vm3999, %v4859, 0
        %4862 = vmatprep.subr.mxu0 0.0
        %4863 = vmatpush1.msra.mxu0 0.0
        %4864 = vmatprep.subr.mxu0 0.0
        %4865 = vmatpush1.msra.mxu0 0.0
        %4866 = vmatprep.subr.mxu0 0.0
        %4867 = vmatpush1.msra.mxu0 0.0
        %4868 = vmatprep.subr.mxu0 0.0
        %4869 = vmatpush1.msra.mxu0 0.0
        %4870 = vmatprep.subr.mxu0 0.0
        %4871 = vmatpush1.msra.mxu0 0.0
        %4872 = vmatprep.subr.mxu0 0.0
        %4873 = vmatpush1.msra.mxu0 0.0
        %4874 = vmatprep.subr.mxu0 0.0
        %4875 = vmatpush1.msra.mxu0 0.0
        %4876 = vmatprep.subr.mxu0 0.0
        %4877 = vmatpush1.msra.mxu0 0.0
        %4878 = vmatprep.subr.mxu0 0.0
        %4879 = vmatpush1.msra.mxu0 0.0
        %4880 = vmatprep.subr.mxu0 0.0
        %4881 = vmatpush1.msra.mxu0 0.0
        %4882 = vmatprep.subr.mxu0 0.0
        %4883 = vmatpush1.msra.mxu0 0.0
        %4884 = vmatprep.subr.mxu0 0.0
        %4885 = vmatpush1.msra.mxu0 0.0
        %4886 = vmatprep.subr.mxu0 0.0
        %4887 = vmatpush1.msra.mxu0 %v748
        %4888 = vmatprep.subr.mxu0 0.0
        %4889 = vmatpush1.msra.mxu0 %v747
        %4890 = vmatprep.subr.mxu0 0.0
        %4891 = vmatpush1.msra.mxu0 %v746
        %4892 = vmatprep.subr.mxu0 0.0
        %4893 = vmatpush1.msra.mxu0 %v745
        %4894 = vmatprep.subr.mxu0 0.0
        %4895 = vmatpush2.msra.mxu0 0.0
        %4896 = vmatprep.subr.mxu0 0.0
        %4897 = vmatpush2.msra.mxu0 0.0
        %4898 = vmatprep.subr.mxu0 0.0
        %4899 = vmatpush2.msra.mxu0 0.0
        %4900 = vmatprep.subr.mxu0 0.0
        %4901 = vmatpush2.msra.mxu0 0.0
        %4902 = vmatprep.subr.mxu0 0.0
        %4903 = vmatpush2.msra.mxu0 0.0
        %4904 = vmatprep.subr.mxu0 0.0
        %4905 = vmatpush2.msra.mxu0 0.0
        %4906 = vmatprep.subr.mxu0 0.0
        %4907 = vmatpush2.msra.mxu0 0.0
        %4908 = vmatprep.subr.mxu0 0.0
        %4909 = vmatpush2.msra.mxu0 0.0
        %4910 = vmatprep.subr.mxu0 0.0
        %4911 = vmatpush2.msra.mxu0 0.0
        %4912 = vmatprep.subr.mxu0 0.0
        %4913 = vmatpush2.msra.mxu0 0.0
        %4914 = vmatprep.subr.mxu0 0.0
        %4915 = vmatpush2.msra.mxu0 0.0
        %4916 = vmatprep.subr.mxu0 0.0
        %4917 = vmatpush2.msra.mxu0 0.0
        %4918 = vmatprep.subr.mxu0 0.0
        %4919 = vmatpush2.msra.mxu0 0.0
        %4920 = vmatprep.subr.mxu0 0.0
        %4921 = vmatpush2.msra.mxu0 0.0
        %4922 = vmatprep.subr.mxu0 0.0
        %4923 = vmatpush2.msra.mxu0 0.0
        %4924 = vmatprep.subr.mxu0 0.0
        %4925 = vmatpush2.msra.mxu0 0.0
        %4926 = vmatprep.mubr.f32.mxu0 0.0
        %4927 = vmatmul.mubr.f32.gmra.mxu0 %v4860
        %v4928 = vpop.f32.mrf.mxu0
        %v4929 = vadd.f32 0.0, %v4928
        %v4930 = vpop.f32.mrf.mxu0
        %4931 = vdwg.mxu0
        %v4956 = vlaneseq
        %v4957 = vshrl.u32 %v4956, 7
        %v4958 = vsub.s32 %v3868, %v4957
        %v4959 = vrot.slane %v3629, %v4958
        %v4960 = vlaneseq
        %v4961 = vshrl.u32 %v4960, 7
        %v4962 = vsub.s32 %v3873, %v4961
        %v4963 = vrot.slane %v3632, %v4962
        %v4964 = vsel %vm3878, %v4963, %v4959
        %v4965 = vlaneseq
        %v4966 = vshrl.u32 %v4965, 7
        %v4967 = vsub.s32 %v3880, %v4966
        %v4968 = vrot.slane %v3635, %v4967
        %v4969 = vsel %vm3885, %v4968, %v4964
        %v4970 = vlaneseq
        %v4971 = vshrl.u32 %v4970, 7
        %v4972 = vsub.s32 %v3887, %v4971
        %v4973 = vrot.slane %v3638, %v4972
        %v4974 = vsel %vm3892, %v4973, %v4969
        %v4975 = vlaneseq
        %v4976 = vshrl.u32 %v4975, 7
        %v4977 = vsub.s32 %v3868, %v4976
        %v4978 = vrot.slane %v3641, %v4977
        %v4979 = vlaneseq
        %v4980 = vshrl.u32 %v4979, 7
        %v4981 = vsub.s32 %v3873, %v4980
        %v4982 = vrot.slane %v3644, %v4981
        %v4983 = vsel %vm3878, %v4982, %v4978
        %v4984 = vlaneseq
        %v4985 = vshrl.u32 %v4984, 7
        %v4986 = vsub.s32 %v3880, %v4985
        %v4987 = vrot.slane %v3647, %v4986
        %v4988 = vsel %vm3885, %v4987, %v4983
        %v4989 = vlaneseq
        %v4990 = vshrl.u32 %v4989, 7
        %v4991 = vsub.s32 %v3887, %v4990
        %v4992 = vrot.slane %v3650, %v4991
        %v4993 = vsel %vm3892, %v4992, %v4988
        %v4994 = vlaneseq
        %v4995 = vshrl.u32 %v4994, 7
        %v4996 = vsub.s32 %v3868, %v4995
        %v4997 = vrot.slane %v3653, %v4996
        %v4998 = vlaneseq
        %v4999 = vshrl.u32 %v4998, 7
        %v5000 = vsub.s32 %v3873, %v4999
        %v5001 = vrot.slane %v3656, %v5000
        %v5002 = vsel %vm3878, %v5001, %v4997
        %v5003 = vlaneseq
        %v5004 = vshrl.u32 %v5003, 7
        %v5005 = vsub.s32 %v3880, %v5004
        %v5006 = vrot.slane %v3659, %v5005
        %v5007 = vsel %vm3885, %v5006, %v5002
        %v5008 = vlaneseq
        %v5009 = vshrl.u32 %v5008, 7
        %v5010 = vsub.s32 %v3887, %v5009
        %v5011 = vrot.slane %v3662, %v5010
        %v5012 = vsel %vm3892, %v5011, %v5007
        %v5013 = vlaneseq
        %v5014 = vshrl.u32 %v5013, 7
        %v5015 = vsub.s32 %v3868, %v5014
        %v5016 = vrot.slane %v3665, %v5015
        %v5017 = vlaneseq
        %v5018 = vshrl.u32 %v5017, 7
        %v5019 = vsub.s32 %v3873, %v5018
        %v5020 = vrot.slane %v3668, %v5019
        %v5021 = vsel %vm3878, %v5020, %v5016
        %v5022 = vlaneseq
        %v5023 = vshrl.u32 %v5022, 7
        %v5024 = vsub.s32 %v3880, %v5023
        %v5025 = vrot.slane %v3671, %v5024
        %v5026 = vsel %vm3885, %v5025, %v5021
        %v5027 = vlaneseq
        %v5028 = vshrl.u32 %v5027, 7
        %v5029 = vsub.s32 %v3887, %v5028
        %v5030 = vrot.slane %v3674, %v5029
        %v5031 = vsel %vm3892, %v5030, %v5026
        %v5032 = vlaneseq
        %v5033 = vshrl.u32 %v5032, 7
        %v5034 = vsub.s32 %v3868, %v5033
        %v5035 = vrot.slane %v3677, %v5034
        %v5036 = vlaneseq
        %v5037 = vshrl.u32 %v5036, 7
        %v5038 = vsub.s32 %v3873, %v5037
        %v5039 = vrot.slane %v3680, %v5038
        %v5040 = vsel %vm3878, %v5039, %v5035
        %v5041 = vlaneseq
        %v5042 = vshrl.u32 %v5041, 7
        %v5043 = vsub.s32 %v3880, %v5042
        %v5044 = vrot.slane %v3683, %v5043
        %v5045 = vsel %vm3885, %v5044, %v5040
        %v5046 = vlaneseq
        %v5047 = vshrl.u32 %v5046, 7
        %v5048 = vsub.s32 %v3887, %v5047
        %v5049 = vrot.slane %v3686, %v5048
        %v5050 = vsel %vm3892, %v5049, %v5045
        %v5051 = vlaneseq
        %v5052 = vshrl.u32 %v5051, 7
        %v5053 = vsub.s32 %v3868, %v5052
        %v5054 = vrot.slane %v3689, %v5053
        %v5055 = vlaneseq
        %v5056 = vshrl.u32 %v5055, 7
        %v5057 = vsub.s32 %v3873, %v5056
        %v5058 = vrot.slane %v3692, %v5057
        %v5059 = vsel %vm3878, %v5058, %v5054
        %v5060 = vlaneseq
        %v5061 = vshrl.u32 %v5060, 7
        %v5062 = vsub.s32 %v3880, %v5061
        %v5063 = vrot.slane %v3695, %v5062
        %v5064 = vsel %vm3885, %v5063, %v5059
        %v5065 = vlaneseq
        %v5066 = vshrl.u32 %v5065, 7
        %v5067 = vsub.s32 %v3887, %v5066
        %v5068 = vrot.slane %v3698, %v5067
        %v5069 = vsel %vm3892, %v5068, %v5064
        %v5070 = vsel %vm3989, %v4993, %v4974
        %v5071 = vsel %vm3991, %v5012, %v5070
        %v5072 = vsel %vm3993, %v5031, %v5071
        %v5073 = vsel %vm3995, %v5050, %v5072
        %v5074 = vsel %vm3997, %v5069, %v5073
        %v5075 = vsel %vm3999, %v5074, 0
        %5077 = vmatprep.subr.mxu0 0.0
        %5078 = vmatpush1.msra.mxu0 0.0
        %5079 = vmatprep.subr.mxu0 0.0
        %5080 = vmatpush1.msra.mxu0 0.0
        %5081 = vmatprep.subr.mxu0 0.0
        %5082 = vmatpush1.msra.mxu0 0.0
        %5083 = vmatprep.subr.mxu0 0.0
        %5084 = vmatpush1.msra.mxu0 0.0
        %5085 = vmatprep.subr.mxu0 0.0
        %5086 = vmatpush1.msra.mxu0 0.0
        %5087 = vmatprep.subr.mxu0 0.0
        %5088 = vmatpush1.msra.mxu0 0.0
        %5089 = vmatprep.subr.mxu0 0.0
        %5090 = vmatpush1.msra.mxu0 0.0
        %5091 = vmatprep.subr.mxu0 0.0
        %5092 = vmatpush1.msra.mxu0 0.0
        %5093 = vmatprep.subr.mxu0 0.0
        %5094 = vmatpush1.msra.mxu0 0.0
        %5095 = vmatprep.subr.mxu0 0.0
        %5096 = vmatpush1.msra.mxu0 0.0
        %5097 = vmatprep.subr.mxu0 0.0
        %5098 = vmatpush1.msra.mxu0 0.0
        %5099 = vmatprep.subr.mxu0 0.0
        %5100 = vmatpush1.msra.mxu0 0.0
        %5101 = vmatprep.subr.mxu0 0.0
        %5102 = vmatpush1.msra.mxu0 %v752
        %5103 = vmatprep.subr.mxu0 0.0
        %5104 = vmatpush1.msra.mxu0 %v751
        %5105 = vmatprep.subr.mxu0 0.0
        %5106 = vmatpush1.msra.mxu0 %v750
        %5107 = vmatprep.subr.mxu0 0.0
        %5108 = vmatpush1.msra.mxu0 %v749
        %5109 = vmatprep.subr.mxu0 0.0
        %5110 = vmatpush2.msra.mxu0 0.0
        %5111 = vmatprep.subr.mxu0 0.0
        %5112 = vmatpush2.msra.mxu0 0.0
        %5113 = vmatprep.subr.mxu0 0.0
        %5114 = vmatpush2.msra.mxu0 0.0
        %5115 = vmatprep.subr.mxu0 0.0
        %5116 = vmatpush2.msra.mxu0 0.0
        %5117 = vmatprep.subr.mxu0 0.0
        %5118 = vmatpush2.msra.mxu0 0.0
        %5119 = vmatprep.subr.mxu0 0.0
        %5120 = vmatpush2.msra.mxu0 0.0
        %5121 = vmatprep.subr.mxu0 0.0
        %5122 = vmatpush2.msra.mxu0 0.0
        %5123 = vmatprep.subr.mxu0 0.0
        %5124 = vmatpush2.msra.mxu0 0.0
        %5125 = vmatprep.subr.mxu0 0.0
        %5126 = vmatpush2.msra.mxu0 0.0
        %5127 = vmatprep.subr.mxu0 0.0
        %5128 = vmatpush2.msra.mxu0 0.0
        %5129 = vmatprep.subr.mxu0 0.0
        %5130 = vmatpush2.msra.mxu0 0.0
        %5131 = vmatprep.subr.mxu0 0.0
        %5132 = vmatpush2.msra.mxu0 0.0
        %5133 = vmatprep.subr.mxu0 0.0
        %5134 = vmatpush2.msra.mxu0 0.0
        %5135 = vmatprep.subr.mxu0 0.0
        %5136 = vmatpush2.msra.mxu0 0.0
        %5137 = vmatprep.subr.mxu0 0.0
        %5138 = vmatpush2.msra.mxu0 0.0
        %5139 = vmatprep.subr.mxu0 0.0
        %5140 = vmatpush2.msra.mxu0 0.0
        %5141 = vmatprep.mubr.f32.mxu0 0.0
        %5142 = vmatmul.mubr.f32.gmra.mxu0 %v5075
        %v5143 = vpop.f32.mrf.mxu0
        %v5144 = vadd.f32 0.0, %v5143
        %v5145 = vpop.f32.mrf.mxu0
        %5146 = vdwg.mxu0
        %v5171 = vlaneseq
        %v5172 = vshrl.u32 %v5171, 7
        %v5173 = vsub.s32 %v3868, %v5172
        %v5174 = vrot.slane %v3701, %v5173
        %v5175 = vlaneseq
        %v5176 = vshrl.u32 %v5175, 7
        %v5177 = vsub.s32 %v3873, %v5176
        %v5178 = vrot.slane %v3704, %v5177
        %v5179 = vsel %vm3878, %v5178, %v5174
        %v5180 = vlaneseq
        %v5181 = vshrl.u32 %v5180, 7
        %v5182 = vsub.s32 %v3880, %v5181
        %v5183 = vrot.slane %v3707, %v5182
        %v5184 = vsel %vm3885, %v5183, %v5179
        %v5185 = vlaneseq
        %v5186 = vshrl.u32 %v5185, 7
        %v5187 = vsub.s32 %v3887, %v5186
        %v5188 = vrot.slane %v3710, %v5187
        %v5189 = vsel %vm3892, %v5188, %v5184
        %v5190 = vlaneseq
        %v5191 = vshrl.u32 %v5190, 7
        %v5192 = vsub.s32 %v3868, %v5191
        %v5193 = vrot.slane %v3713, %v5192
        %v5194 = vlaneseq
        %v5195 = vshrl.u32 %v5194, 7
        %v5196 = vsub.s32 %v3873, %v5195
        %v5197 = vrot.slane %v3716, %v5196
        %v5198 = vsel %vm3878, %v5197, %v5193
        %v5199 = vlaneseq
        %v5200 = vshrl.u32 %v5199, 7
        %v5201 = vsub.s32 %v3880, %v5200
        %v5202 = vrot.slane %v3719, %v5201
        %v5203 = vsel %vm3885, %v5202, %v5198
        %v5204 = vlaneseq
        %v5205 = vshrl.u32 %v5204, 7
        %v5206 = vsub.s32 %v3887, %v5205
        %v5207 = vrot.slane %v3722, %v5206
        %v5208 = vsel %vm3892, %v5207, %v5203
        %v5209 = vlaneseq
        %v5210 = vshrl.u32 %v5209, 7
        %v5211 = vsub.s32 %v3868, %v5210
        %v5212 = vrot.slane %v3725, %v5211
        %v5213 = vlaneseq
        %v5214 = vshrl.u32 %v5213, 7
        %v5215 = vsub.s32 %v3873, %v5214
        %v5216 = vrot.slane %v3728, %v5215
        %v5217 = vsel %vm3878, %v5216, %v5212
        %v5218 = vlaneseq
        %v5219 = vshrl.u32 %v5218, 7
        %v5220 = vsub.s32 %v3880, %v5219
        %v5221 = vrot.slane %v3731, %v5220
        %v5222 = vsel %vm3885, %v5221, %v5217
        %v5223 = vlaneseq
        %v5224 = vshrl.u32 %v5223, 7
        %v5225 = vsub.s32 %v3887, %v5224
        %v5226 = vrot.slane %v3734, %v5225
        %v5227 = vsel %vm3892, %v5226, %v5222
        %v5228 = vlaneseq
        %v5229 = vshrl.u32 %v5228, 7
        %v5230 = vsub.s32 %v3868, %v5229
        %v5231 = vrot.slane %v3737, %v5230
        %v5232 = vlaneseq
        %v5233 = vshrl.u32 %v5232, 7
        %v5234 = vsub.s32 %v3873, %v5233
        %v5235 = vrot.slane %v3740, %v5234
        %v5236 = vsel %vm3878, %v5235, %v5231
        %v5237 = vlaneseq
        %v5238 = vshrl.u32 %v5237, 7
        %v5239 = vsub.s32 %v3880, %v5238
        %v5240 = vrot.slane %v3743, %v5239
        %v5241 = vsel %vm3885, %v5240, %v5236
        %v5242 = vlaneseq
        %v5243 = vshrl.u32 %v5242, 7
        %v5244 = vsub.s32 %v3887, %v5243
        %v5245 = vrot.slane %v3746, %v5244
        %v5246 = vsel %vm3892, %v5245, %v5241
        %v5247 = vlaneseq
        %v5248 = vshrl.u32 %v5247, 7
        %v5249 = vsub.s32 %v3868, %v5248
        %v5250 = vrot.slane %v3749, %v5249
        %v5251 = vlaneseq
        %v5252 = vshrl.u32 %v5251, 7
        %v5253 = vsub.s32 %v3873, %v5252
        %v5254 = vrot.slane %v3752, %v5253
        %v5255 = vsel %vm3878, %v5254, %v5250
        %v5256 = vlaneseq
        %v5257 = vshrl.u32 %v5256, 7
        %v5258 = vsub.s32 %v3880, %v5257
        %v5259 = vrot.slane %v3755, %v5258
        %v5260 = vsel %vm3885, %v5259, %v5255
        %v5261 = vlaneseq
        %v5262 = vshrl.u32 %v5261, 7
        %v5263 = vsub.s32 %v3887, %v5262
        %v5264 = vrot.slane %v3758, %v5263
        %v5265 = vsel %vm3892, %v5264, %v5260
        %v5266 = vlaneseq
        %v5267 = vshrl.u32 %v5266, 7
        %v5268 = vsub.s32 %v3868, %v5267
        %v5269 = vrot.slane %v3761, %v5268
        %v5270 = vlaneseq
        %v5271 = vshrl.u32 %v5270, 7
        %v5272 = vsub.s32 %v3873, %v5271
        %v5273 = vrot.slane %v3764, %v5272
        %v5274 = vsel %vm3878, %v5273, %v5269
        %v5275 = vlaneseq
        %v5276 = vshrl.u32 %v5275, 7
        %v5277 = vsub.s32 %v3880, %v5276
        %v5278 = vrot.slane %v3767, %v5277
        %v5279 = vsel %vm3885, %v5278, %v5274
        %v5280 = vlaneseq
        %v5281 = vshrl.u32 %v5280, 7
        %v5282 = vsub.s32 %v3887, %v5281
        %v5283 = vrot.slane %v3770, %v5282
        %v5284 = vsel %vm3892, %v5283, %v5279
        %v5285 = vsel %vm3989, %v5208, %v5189
        %v5286 = vsel %vm3991, %v5227, %v5285
        %v5287 = vsel %vm3993, %v5246, %v5286
        %v5288 = vsel %vm3995, %v5265, %v5287
        %v5289 = vsel %vm3997, %v5284, %v5288
        %v5290 = vsel %vm3999, %v5289, 0
        %5292 = vmatprep.subr.mxu0 0.0
        %5293 = vmatpush1.msra.mxu0 0.0
        %5294 = vmatprep.subr.mxu0 0.0
        %5295 = vmatpush1.msra.mxu0 0.0
        %5296 = vmatprep.subr.mxu0 0.0
        %5297 = vmatpush1.msra.mxu0 0.0
        %5298 = vmatprep.subr.mxu0 0.0
        %5299 = vmatpush1.msra.mxu0 0.0
        %5300 = vmatprep.subr.mxu0 0.0
        %5301 = vmatpush1.msra.mxu0 0.0
        %5302 = vmatprep.subr.mxu0 0.0
        %5303 = vmatpush1.msra.mxu0 0.0
        %5304 = vmatprep.subr.mxu0 0.0
        %5305 = vmatpush1.msra.mxu0 0.0
        %5306 = vmatprep.subr.mxu0 0.0
        %5307 = vmatpush1.msra.mxu0 0.0
        %5308 = vmatprep.subr.mxu0 0.0
        %5309 = vmatpush1.msra.mxu0 0.0
        %5310 = vmatprep.subr.mxu0 0.0
        %5311 = vmatpush1.msra.mxu0 0.0
        %5312 = vmatprep.subr.mxu0 0.0
        %5313 = vmatpush1.msra.mxu0 0.0
        %5314 = vmatprep.subr.mxu0 0.0
        %5315 = vmatpush1.msra.mxu0 0.0
        %5316 = vmatprep.subr.mxu0 0.0
        %5317 = vmatpush1.msra.mxu0 %v756
        %5318 = vmatprep.subr.mxu0 0.0
        %5319 = vmatpush1.msra.mxu0 %v755
        %5320 = vmatprep.subr.mxu0 0.0
        %5321 = vmatpush1.msra.mxu0 %v754
        %5322 = vmatprep.subr.mxu0 0.0
        %5323 = vmatpush1.msra.mxu0 %v753
        %5324 = vmatprep.subr.mxu0 0.0
        %5325 = vmatpush2.msra.mxu0 0.0
        %5326 = vmatprep.subr.mxu0 0.0
        %5327 = vmatpush2.msra.mxu0 0.0
        %5328 = vmatprep.subr.mxu0 0.0
        %5329 = vmatpush2.msra.mxu0 0.0
        %5330 = vmatprep.subr.mxu0 0.0
        %5331 = vmatpush2.msra.mxu0 0.0
        %5332 = vmatprep.subr.mxu0 0.0
        %5333 = vmatpush2.msra.mxu0 0.0
        %5334 = vmatprep.subr.mxu0 0.0
        %5335 = vmatpush2.msra.mxu0 0.0
        %5336 = vmatprep.subr.mxu0 0.0
        %5337 = vmatpush2.msra.mxu0 0.0
        %5338 = vmatprep.subr.mxu0 0.0
        %5339 = vmatpush2.msra.mxu0 0.0
        %5340 = vmatprep.subr.mxu0 0.0
        %5341 = vmatpush2.msra.mxu0 0.0
        %5342 = vmatprep.subr.mxu0 0.0
        %5343 = vmatpush2.msra.mxu0 0.0
        %5344 = vmatprep.subr.mxu0 0.0
        %5345 = vmatpush2.msra.mxu0 0.0
        %5346 = vmatprep.subr.mxu0 0.0
        %5347 = vmatpush2.msra.mxu0 0.0
        %5348 = vmatprep.subr.mxu0 0.0
        %5349 = vmatpush2.msra.mxu0 0.0
        %5350 = vmatprep.subr.mxu0 0.0
        %5351 = vmatpush2.msra.mxu0 0.0
        %5352 = vmatprep.subr.mxu0 0.0
        %5353 = vmatpush2.msra.mxu0 0.0
        %5354 = vmatprep.subr.mxu0 0.0
        %5355 = vmatpush2.msra.mxu0 0.0
        %5356 = vmatprep.mubr.f32.mxu0 0.0
        %5357 = vmatmul.mubr.f32.gmra.mxu0 %v5290
        %v5358 = vpop.f32.mrf.mxu0
        %v5359 = vadd.f32 0.0, %v5358
        %v5360 = vpop.f32.mrf.mxu0
        %5361 = vdwg.mxu0
        %v5386 = vlaneseq
        %v5387 = vshrl.u32 %v5386, 7
        %v5388 = vsub.s32 %v3868, %v5387
        %v5389 = vrot.slane %v3773, %v5388
        %v5390 = vlaneseq
        %v5391 = vshrl.u32 %v5390, 7
        %v5392 = vsub.s32 %v3873, %v5391
        %v5393 = vrot.slane %v3776, %v5392
        %v5394 = vsel %vm3878, %v5393, %v5389
        %v5395 = vlaneseq
        %v5396 = vshrl.u32 %v5395, 7
        %v5397 = vsub.s32 %v3880, %v5396
        %v5398 = vrot.slane %v3779, %v5397
        %v5399 = vsel %vm3885, %v5398, %v5394
        %v5400 = vlaneseq
        %v5401 = vshrl.u32 %v5400, 7
        %v5402 = vsub.s32 %v3887, %v5401
        %v5403 = vrot.slane %v3782, %v5402
        %v5404 = vsel %vm3892, %v5403, %v5399
        %v5405 = vlaneseq
        %v5406 = vshrl.u32 %v5405, 7
        %v5407 = vsub.s32 %v3868, %v5406
        %v5408 = vrot.slane %v3785, %v5407
        %v5409 = vlaneseq
        %v5410 = vshrl.u32 %v5409, 7
        %v5411 = vsub.s32 %v3873, %v5410
        %v5412 = vrot.slane %v3788, %v5411
        %v5413 = vsel %vm3878, %v5412, %v5408
        %v5414 = vlaneseq
        %v5415 = vshrl.u32 %v5414, 7
        %v5416 = vsub.s32 %v3880, %v5415
        %v5417 = vrot.slane %v3791, %v5416
        %v5418 = vsel %vm3885, %v5417, %v5413
        %v5419 = vlaneseq
        %v5420 = vshrl.u32 %v5419, 7
        %v5421 = vsub.s32 %v3887, %v5420
        %v5422 = vrot.slane %v3794, %v5421
        %v5423 = vsel %vm3892, %v5422, %v5418
        %v5424 = vlaneseq
        %v5425 = vshrl.u32 %v5424, 7
        %v5426 = vsub.s32 %v3868, %v5425
        %v5427 = vrot.slane %v3797, %v5426
        %v5428 = vlaneseq
        %v5429 = vshrl.u32 %v5428, 7
        %v5430 = vsub.s32 %v3873, %v5429
        %v5431 = vrot.slane %v3800, %v5430
        %v5432 = vsel %vm3878, %v5431, %v5427
        %v5433 = vlaneseq
        %v5434 = vshrl.u32 %v5433, 7
        %v5435 = vsub.s32 %v3880, %v5434
        %v5436 = vrot.slane %v3803, %v5435
        %v5437 = vsel %vm3885, %v5436, %v5432
        %v5438 = vlaneseq
        %v5439 = vshrl.u32 %v5438, 7
        %v5440 = vsub.s32 %v3887, %v5439
        %v5441 = vrot.slane %v3806, %v5440
        %v5442 = vsel %vm3892, %v5441, %v5437
        %v5443 = vlaneseq
        %v5444 = vshrl.u32 %v5443, 7
        %v5445 = vsub.s32 %v3868, %v5444
        %v5446 = vrot.slane %v3809, %v5445
        %v5447 = vlaneseq
        %v5448 = vshrl.u32 %v5447, 7
        %v5449 = vsub.s32 %v3873, %v5448
        %v5450 = vrot.slane %v3812, %v5449
        %v5451 = vsel %vm3878, %v5450, %v5446
        %v5452 = vlaneseq
        %v5453 = vshrl.u32 %v5452, 7
        %v5454 = vsub.s32 %v3880, %v5453
        %v5455 = vrot.slane %v3815, %v5454
        %v5456 = vsel %vm3885, %v5455, %v5451
        %v5457 = vlaneseq
        %v5458 = vshrl.u32 %v5457, 7
        %v5459 = vsub.s32 %v3887, %v5458
        %v5460 = vrot.slane %v3818, %v5459
        %v5461 = vsel %vm3892, %v5460, %v5456
        %v5462 = vlaneseq
        %v5463 = vshrl.u32 %v5462, 7
        %v5464 = vsub.s32 %v3868, %v5463
        %v5465 = vrot.slane %v3821, %v5464
        %v5466 = vlaneseq
        %v5467 = vshrl.u32 %v5466, 7
        %v5468 = vsub.s32 %v3873, %v5467
        %v5469 = vrot.slane %v3824, %v5468
        %v5470 = vsel %vm3878, %v5469, %v5465
        %v5471 = vlaneseq
        %v5472 = vshrl.u32 %v5471, 7
        %v5473 = vsub.s32 %v3880, %v5472
        %v5474 = vrot.slane %v3827, %v5473
        %v5475 = vsel %vm3885, %v5474, %v5470
        %v5476 = vlaneseq
        %v5477 = vshrl.u32 %v5476, 7
        %v5478 = vsub.s32 %v3887, %v5477
        %v5479 = vrot.slane %v3830, %v5478
        %v5480 = vsel %vm3892, %v5479, %v5475
        %v5481 = vlaneseq
        %v5482 = vshrl.u32 %v5481, 7
        %v5483 = vsub.s32 %v3868, %v5482
        %v5484 = vrot.slane %v3833, %v5483
        %v5485 = vlaneseq
        %v5486 = vshrl.u32 %v5485, 7
        %v5487 = vsub.s32 %v3873, %v5486
        %v5488 = vrot.slane %v3836, %v5487
        %v5489 = vsel %vm3878, %v5488, %v5484
        %v5490 = vlaneseq
        %v5491 = vshrl.u32 %v5490, 7
        %v5492 = vsub.s32 %v3880, %v5491
        %v5493 = vrot.slane %v3839, %v5492
        %v5494 = vsel %vm3885, %v5493, %v5489
        %v5495 = vlaneseq
        %v5496 = vshrl.u32 %v5495, 7
        %v5497 = vsub.s32 %v3887, %v5496
        %v5498 = vrot.slane %v3842, %v5497
        %v5499 = vsel %vm3892, %v5498, %v5494
        %v5500 = vsel %vm3989, %v5423, %v5404
        %v5501 = vsel %vm3991, %v5442, %v5500
        %v5502 = vsel %vm3993, %v5461, %v5501
        %v5503 = vsel %vm3995, %v5480, %v5502
        %v5504 = vsel %vm3997, %v5499, %v5503
        %v5505 = vsel %vm3999, %v5504, 0
        %5507 = vmatprep.subr.mxu0 0.0
        %5508 = vmatpush1.msra.mxu0 0.0
        %5509 = vmatprep.subr.mxu0 0.0
        %5510 = vmatpush1.msra.mxu0 0.0
        %5511 = vmatprep.subr.mxu0 0.0
        %5512 = vmatpush1.msra.mxu0 0.0
        %5513 = vmatprep.subr.mxu0 0.0
        %5514 = vmatpush1.msra.mxu0 0.0
        %5515 = vmatprep.subr.mxu0 0.0
        %5516 = vmatpush1.msra.mxu0 0.0
        %5517 = vmatprep.subr.mxu0 0.0
        %5518 = vmatpush1.msra.mxu0 0.0
        %5519 = vmatprep.subr.mxu0 0.0
        %5520 = vmatpush1.msra.mxu0 0.0
        %5521 = vmatprep.subr.mxu0 0.0
        %5522 = vmatpush1.msra.mxu0 0.0
        %5523 = vmatprep.subr.mxu0 0.0
        %5524 = vmatpush1.msra.mxu0 0.0
        %5525 = vmatprep.subr.mxu0 0.0
        %5526 = vmatpush1.msra.mxu0 0.0
        %5527 = vmatprep.subr.mxu0 0.0
        %5528 = vmatpush1.msra.mxu0 0.0
        %5529 = vmatprep.subr.mxu0 0.0
        %5530 = vmatpush1.msra.mxu0 0.0
        %5531 = vmatprep.subr.mxu0 0.0
        %5532 = vmatpush1.msra.mxu0 %v760
        %5533 = vmatprep.subr.mxu0 0.0
        %5534 = vmatpush1.msra.mxu0 %v759
        %5535 = vmatprep.subr.mxu0 0.0
        %5536 = vmatpush1.msra.mxu0 %v758
        %5537 = vmatprep.subr.mxu0 0.0
        %5538 = vmatpush1.msra.mxu0 %v757
        %5539 = vmatprep.subr.mxu0 0.0
        %5540 = vmatpush2.msra.mxu0 0.0
        %5541 = vmatprep.subr.mxu0 0.0
        %5542 = vmatpush2.msra.mxu0 0.0
        %5543 = vmatprep.subr.mxu0 0.0
        %5544 = vmatpush2.msra.mxu0 0.0
        %5545 = vmatprep.subr.mxu0 0.0
        %5546 = vmatpush2.msra.mxu0 0.0
        %5547 = vmatprep.subr.mxu0 0.0
        %5548 = vmatpush2.msra.mxu0 0.0
        %5549 = vmatprep.subr.mxu0 0.0
        %5550 = vmatpush2.msra.mxu0 0.0
        %5551 = vmatprep.subr.mxu0 0.0
        %5552 = vmatpush2.msra.mxu0 0.0
        %5553 = vmatprep.subr.mxu0 0.0
        %5554 = vmatpush2.msra.mxu0 0.0
        %5555 = vmatprep.subr.mxu0 0.0
        %5556 = vmatpush2.msra.mxu0 0.0
        %5557 = vmatprep.subr.mxu0 0.0
        %5558 = vmatpush2.msra.mxu0 0.0
        %5559 = vmatprep.subr.mxu0 0.0
        %5560 = vmatpush2.msra.mxu0 0.0
        %5561 = vmatprep.subr.mxu0 0.0
        %5562 = vmatpush2.msra.mxu0 0.0
        %5563 = vmatprep.subr.mxu0 0.0
        %5564 = vmatpush2.msra.mxu0 0.0
        %5565 = vmatprep.subr.mxu0 0.0
        %5566 = vmatpush2.msra.mxu0 0.0
        %5567 = vmatprep.subr.mxu0 0.0
        %5568 = vmatpush2.msra.mxu0 0.0
        %5569 = vmatprep.subr.mxu0 0.0
        %5570 = vmatpush2.msra.mxu0 0.0
        %5571 = vmatprep.mubr.f32.mxu0 0.0
        %5572 = vmatmul.mubr.f32.gmra.mxu0 %v5505
        %v5573 = vpop.f32.mrf.mxu0
        %v5574 = vadd.f32 0.0, %v5573
        %v5575 = vpop.f32.mrf.mxu0
        %5576 = vdwg.mxu0
        %v5577 = vcombine.low %v4069, %v4499
        %v5578 = vcombine.high %v4069, %v4499
        %v5580 = vunpack.c.l.s4 1983009808
        %v5581 = vunpack.c.0.s8 %v5580
        %v5582 = vlaneseq
        %v5583 = vshrl.u32 %v5582, 7
        %v5584 = vsub.s32 %v5581, %v5583
        %v5585 = vrot.slane %v5577, %v5584
        %v5587 = vunpack.c.l.s4 1983009808
        %v5588 = vunpack.c.0.s8 %v5587
        %v5589 = vlaneseq
        %v5590 = vshrl.u32 %v5589, 7
        %v5591 = vsub.s32 %v5588, %v5590
        %v5592 = vrot.slane %v5578, %v5591
        %v5593 = vcombine.low %v4284, %v4714
        %v5594 = vcombine.high %v4284, %v4714
        %v5596 = vunpack.c.l.s4 1983009808
        %v5597 = vunpack.c.0.s8 %v5596
        %v5598 = vlaneseq
        %v5599 = vshrl.u32 %v5598, 7
        %v5600 = vsub.s32 %v5597, %v5599
        %v5601 = vrot.slane %v5593, %v5600
        %v5603 = vunpack.c.l.s4 1983009808
        %v5604 = vunpack.c.0.s8 %v5603
        %v5605 = vlaneseq
        %v5606 = vshrl.u32 %v5605, 7
        %v5607 = vsub.s32 %v5604, %v5606
        %v5608 = vrot.slane %v5594, %v5607
        %v5609 = vcombine.low %v4929, %v5359
        %v5610 = vcombine.high %v4929, %v5359
        %v5612 = vunpack.c.l.s4 1983009808
        %v5613 = vunpack.c.0.s8 %v5612
        %v5614 = vlaneseq
        %v5615 = vshrl.u32 %v5614, 7
        %v5616 = vsub.s32 %v5613, %v5615
        %v5617 = vrot.slane %v5609, %v5616
        %v5619 = vunpack.c.l.s4 1983009808
        %v5620 = vunpack.c.0.s8 %v5619
        %v5621 = vlaneseq
        %v5622 = vshrl.u32 %v5621, 7
        %v5623 = vsub.s32 %v5620, %v5622
        %v5624 = vrot.slane %v5610, %v5623
        %v5625 = vcombine.low %v5144, %v5574
        %v5626 = vcombine.high %v5144, %v5574
        %v5628 = vunpack.c.l.s4 1983009808
        %v5629 = vunpack.c.0.s8 %v5628
        %v5630 = vlaneseq
        %v5631 = vshrl.u32 %v5630, 7
        %v5632 = vsub.s32 %v5629, %v5631
        %v5633 = vrot.slane %v5625, %v5632
        %v5635 = vunpack.c.l.s4 1983009808
        %v5636 = vunpack.c.0.s8 %v5635
        %v5637 = vlaneseq
        %v5638 = vshrl.u32 %v5637, 7
        %v5639 = vsub.s32 %v5636, %v5638
        %v5640 = vrot.slane %v5626, %v5639
        %v5641 = vcombine.low %v5585, %v5601
        %v5642 = vcombine.high %v5585, %v5601
        %v5644 = vunpack.c.l.s4 1934713408
        %v5645 = vunpack.c.0.s8 %v5644
        %v5646 = vlaneseq
        %v5647 = vshrl.u32 %v5646, 7
        %v5648 = vsub.s32 %v5645, %v5647
        %v5649 = vrot.slane %v5641, %v5648
        %v5651 = vunpack.c.l.s4 1934713408
        %v5652 = vunpack.c.0.s8 %v5651
        %v5653 = vlaneseq
        %v5654 = vshrl.u32 %v5653, 7
        %v5655 = vsub.s32 %v5652, %v5654
        %v5656 = vrot.slane %v5642, %v5655
        %v5657 = vcombine.low %v5592, %v5608
        %v5659 = vunpack.c.l.s4 1934713408
        %v5660 = vunpack.c.0.s8 %v5659
        %v5661 = vlaneseq
        %v5662 = vshrl.u32 %v5661, 7
        %v5663 = vsub.s32 %v5660, %v5662
        %v5664 = vrot.slane %v5657, %v5663
        %v5665 = vcombine.low %v5617, %v5633
        %v5666 = vcombine.high %v5617, %v5633
        %v5668 = vunpack.c.l.s4 1934713408
        %v5669 = vunpack.c.0.s8 %v5668
        %v5670 = vlaneseq
        %v5671 = vshrl.u32 %v5670, 7
        %v5672 = vsub.s32 %v5669, %v5671
        %v5673 = vrot.slane %v5665, %v5672
        %v5675 = vunpack.c.l.s4 1934713408
        %v5676 = vunpack.c.0.s8 %v5675
        %v5677 = vlaneseq
        %v5678 = vshrl.u32 %v5677, 7
        %v5679 = vsub.s32 %v5676, %v5678
        %v5680 = vrot.slane %v5666, %v5679
        %v5681 = vcombine.low %v5624, %v5640
        %v5683 = vunpack.c.l.s4 1934713408
        %v5684 = vunpack.c.0.s8 %v5683
        %v5685 = vlaneseq
        %v5686 = vshrl.u32 %v5685, 7
        %v5687 = vsub.s32 %v5684, %v5686
        %v5688 = vrot.slane %v5681, %v5687
        %v5689 = vcombine.low %v5649, %v5673
        %v5690 = vcombine.high %v5649, %v5673
        %v5691 = vcombine.low %v5656, %v5680
        %v5692 = vcombine.high %v5656, %v5680
        %v5693 = vcombine.low %v5664, %v5688
        %v5694 = vcombine.high %v5664, %v5688
        %5696 = vrot.lane.b32.xlu0 %v5690, 32
        %v5697 = vpop.permute.xlu0 %5696
        %5700 = vrot.lane.b32.xlu0 %v5691, 64
        %v5701 = vpop.permute.xlu0 %5700
        %5704 = vrot.lane.b32.xlu0 %v5692, 96
        %v5705 = vpop.permute.xlu0 %5704
        %5708 = vrot.lane.b32.xlu0 %v5694, 32
        %v5709 = vpop.permute.xlu0 %5708
        %v5711 = vsel %vm3999, %v5689, %v5697
        %vm5712 = vcmask 523264
        %v5713 = vsel %vm5712, %v5711, %v5701
        %vm5714 = vcmask 785408
        %v5715 = vsel %vm5714, %v5713, %v5705
        %v5716 = vsel %vm3999, %v5693, %v5709
        %5717 = vst [vmem:[%s311] sm:$0xff] %v5715
        %5718 = vst.msk [vmem:[%s311 + $0x8] sm:$0xff] %vm5712, %v5716
        %s5719 = sand.u32 %s136, 1
        %s5720 = scalar_lea.sflag [#allocation4], %s5719
        %s5721 = sand.u32 %s136, 1
        %s5722 = smul.addr %s5721, 16
        %s5723 = scalar_lea.vmem [#allocation8], %s5722
        // Predicated region
        $region49: #{tpu_custom_call.1} parent=35 // pred_check
          %p5724 = pneg %p146
        $region50: #{tpu_custom_call.1} parent=35 // pred_check_branch
          %5726 = sbr.rel (%p5724) target = $region52
        $region51: #{tpu_custom_call.1} parent=35 // pred_region
          %s5728 = ssub.s32 256, 256
          %5729 = vsyncadd %s5720, %s5728
          %s5730 = smul.addr %s24, 2
          %s5731 = smul.addr %s5730, 128
          %s5732 = scalar_lea.hbm %s4, %s5731
          %s5734 = sshll.u32 %s5723, 4
          %s5735 = int_to_ptr.vmem [resolvable:$true] %s5734
          %5737 = dma.vmem_to_hbm [thread:$0]  %s5735, 256, %s5732, %s5720
        $region52: #{tpu_custom_call.1} parent=35 // pred_fallthru
          _
      $region36: #{tpu_custom_call.1} parent=5 // pred_fallthru
        _
      %p5738 = scmp.le.s32.totalorder 2, %s19
      // Predicated region
      $region53: #{tpu_custom_call.1} parent=5 // pred_check
        %p5739 = pneg %p5738
      $region54: #{tpu_custom_call.1} parent=5 // pred_check_branch
        %5741 = sbr.rel (%p5739) target = $region56
      $region55: #{tpu_custom_call.1} parent=5 // pred_region
        %s5742 = ssub.s32 %s19, 2
        // Predicated region
        $region57: #{tpu_custom_call.1} parent=55 // pred_check
          %p5743 = pneg %p152
        $region58: #{tpu_custom_call.1} parent=55 // pred_check_branch
          %5745 = sbr.rel (%p5743) target = $region60
        $region59: #{tpu_custom_call.1} parent=55 // pred_region
          %s5746 = sand.u32 %s137, 1
          %s5747 = scalar_lea.sflag [#allocation4], %s5746
          %s5748 = sand.u32 %s137, 1
          %s5749 = smul.addr %s5748, 16
          %s5750 = scalar_lea.vmem [#allocation8], %s5749
          %5751 = dma.done %s5747, 256
        $region60: #{tpu_custom_call.1} parent=55 // pred_fallthru
          _
      $region56: #{tpu_custom_call.1} parent=5 // pred_fallthru
        _
    $region6: #{tpu_custom_call.1} parent=1 // loop_footer
      %s23 = sadd.s32 1, %s19
    $region7: #{tpu_custom_call.1} parent=1 // loop_footer_branch
      %18 = sbr.rel target = $region3
    $region8: #{tpu_custom_call.1} parent=1 // loop_exit
      _
    %5752 = vsyncpa [#allocation3], 1
    %s5753 = scalar_lea.sflag [#allocation3], 1
    %5754 = vsyncpa %s5753, 1
    %5755 = vsyncpa [#allocation6], 1
    %s5756 = scalar_lea.sflag [#allocation6], 1
    %5757 = vsyncpa %s5756, 1
    %5758 = vsyncpa [#allocation4], 1
    %s5759 = scalar_lea.sflag [#allocation4], 1
    %5760 = vsyncpa %s5759, 1

</llo_original>
